<compile_context>
chip_gen: v6e
topology: v6e:2x2x1
jax: 0.10.0
libtpu: 0.0.40
codegen_flags: <defaults>
</compile_context>

<pallas_src>
import functools

import jax
import jax.numpy as jnp
import numpy as np
from jax import lax
from jax.experimental import pallas as pl
from jax.experimental.pallas import tpu as pltpu


VMEM_LIMIT = 48 * 1024 * 1024     # <= 48 MiB: safe on v5e/v6e (128 MiB) & v7x (64 MiB)

ALL_PADS = [0, 0, 1, 3, 7]
CONSTANT_FEATURES = 32


# ----------------------------------------------------------------------------
# Fused stage kernel: [1x1 conv + tanh] -> [stride-2 ConvTranspose2d], 1 image.
# ----------------------------------------------------------------------------
def _stage_kernel(x_ref, w1_ref, b1_ref, w2_ref, b2_ref, m_ref, o_ref,
                  mid_ref, patch_ref, *, H, W, T, c, P, Cmid, Cout, use_mxu):
    """Refs:
      x_ref    : (1, Cpre, L)   flat-padded spatial slab, L = H*W + 2*P
      w1_ref   : (Cmid, Cpre)   1x1-conv weight        b1_ref: (Cmid, 1)
      w2_ref   : (4, Cout, Kc)  [MXU] or (4, Kc, 1) [VPU],  Kc = T*T*Cmid
      b2_ref   : (Cout, 1)
      m_ref    : (2T-1, HW)     column-wrap validity mask per dw offset
      o_ref    : (1, Cout, 4*HW) phase-major output, phase p = 2*ah + aw
      mid_ref  : (Cmid, L)      scratch: post-tanh slab (pad lanes zeroed)
      patch_ref: (Kc, HW)       scratch: per-phase im2col patch matrix
    """
    HW = H * W
    L = mid_ref.shape[-1]

    # Fused pointwise 1x1 conv + tanh over the whole padded slab, then zero the
    # pad lanes so every deconv tap reads true zeros out of range.
    g = lax.broadcasted_iota(jnp.int32, (1, L), 1)
    valid = ((g >= P) & (g < P + HW)).astype(jnp.float32)
    pre = jnp.dot(w1_ref[...], x_ref[0], preferred_element_type=jnp.float32)
    mid_ref[...] = jnp.tanh(pre + b1_ref[...]) * valid

    bias2 = b2_ref[...]                                     # (Cout, 1)
    for ah in range(2):                                     # output-row parity
        for aw in range(2):                                 # output-col parity
            p = 2 * ah + aw
            # Masked im2col (VMEM only): stack the T*T tap windows.
            for th in range(T):
                for tw in range(T):
                    dh = c[ah] - th                         # input row offset
                    dw = c[aw] - tw                         # input col offset
                    start = dh * W + dw + P                 # static lane offset
                    win = mid_ref[:, pl.ds(start, HW)]      # (Cmid, HW)
                    if dw != 0:                             # kill row-wrap lanes
                        win = win * m_ref[pl.ds(dw + T - 1, 1), :]
                    t = th * T + tw
                    patch_ref[pl.ds(t * Cmid, Cmid), :] = win
            # One GEMM per phase (deep Kc contraction), VPU reduce when Cout=1.
            if use_mxu:
                y = jnp.dot(w2_ref[p], patch_ref[...],
                            preferred_element_type=jnp.float32)
            else:
                y = jnp.sum(w2_ref[p] * patch_ref[...], axis=0, keepdims=True)
            # Dense lane store: phase flattened into the lane axis.
            o_ref[0, :, pl.ds(p * HW, HW)] = (y + bias2).astype(o_ref.dtype)


def _run_stage(slab, conv_w, conv_b, deconv_w, deconv_b, H, W, K, pad):
    """slab: (N, Cpre, L) flat-padded spatial input.  Returns phase-major
    (N, Cout, 4*H*W) with out[:, :, p*HW + j*W + i] = y[:, :, 2j+ah, 2i+aw],
    p = 2*ah + aw."""
    N, Cpre, L = slab.shape
    Cmid = conv_w.shape[0]
    Cout = deconv_w.shape[1]
    T = K // 2
    HW = H * W
    P = (T - 1) * (W + 1)
    assert L == HW + 2 * P, (L, HW, P)
    c = (pad // 2, (1 + pad) // 2)          # per-parity base offset
    Kc = T * T * Cmid
    use_mxu = Cout != 1

    w1 = conv_w.reshape(Cmid, Cpre).astype(jnp.float32)
    b1 = conv_b.reshape(Cmid, 1).astype(jnp.float32)
    b2 = deconv_b.reshape(Cout, 1).astype(jnp.float32)

    # Phase/tap-stacked deconv weights:
    #   w2[p, co, (th*T+tw)*Cmid + ci] = W[ci, co, 2*th+(ah+pad)%2, 2*tw+(aw+pad)%2]
    w_oc = jnp.transpose(deconv_w, (1, 0, 2, 3)).astype(jnp.float32)  # (Cout,Cmid,K,K)
    phases = []
    for ah in range(2):
        rh = (ah + pad) % 2
        for aw in range(2):
            rw = (aw + pad) % 2
            sub = w_oc[:, :, rh::2, rw::2]                             # (Cout,Cmid,T,T)
            phases.append(jnp.transpose(sub, (0, 2, 3, 1)).reshape(Cout, Kc))
    w2 = jnp.stack(phases, 0)                                          # (4, Cout, Kc)
    if not use_mxu:
        w2 = jnp.transpose(w2, (0, 2, 1))                              # (4, Kc, 1)

    # Column-wrap validity mask per horizontal offset dw in [-(T-1), T-1].
    cols = np.arange(HW) % W
    masks = jnp.asarray(
        np.stack([((cols + d) >= 0) & ((cols + d) < W)
                  for d in range(-(T - 1), T)], 0).astype(np.float32))

    kernel = functools.partial(_stage_kernel, H=H, W=W, T=T, c=c, P=P,
                               Cmid=Cmid, Cout=Cout, use_mxu=use_mxu)
    return pl.pallas_call(
        kernel,
        out_shape=jax.ShapeDtypeStruct((N, Cout, 4 * HW), jnp.float32),
        grid_spec=pltpu.PrefetchScalarGridSpec(
            num_scalar_prefetch=0,
            grid=(N,),
            in_specs=[
                pl.BlockSpec((1, Cpre, L), lambda n: (n, 0, 0)),
                pl.BlockSpec((Cmid, Cpre), lambda n: (0, 0)),
                pl.BlockSpec((Cmid, 1), lambda n: (0, 0)),
                pl.BlockSpec(w2.shape, lambda n: (0, 0, 0)),
                pl.BlockSpec((Cout, 1), lambda n: (0, 0)),
                pl.BlockSpec((2 * T - 1, HW), lambda n: (0, 0)),
            ],
            out_specs=pl.BlockSpec((1, Cout, 4 * HW), lambda n: (n, 0, 0)),
            scratch_shapes=[
                pltpu.VMEM((Cmid, L), jnp.float32),   # post-tanh slab
                pltpu.VMEM((Kc, HW), jnp.float32),    # per-phase im2col patches
            ],
        ),
        compiler_params=pltpu.CompilerParams(
            dimension_semantics=("parallel",),
            vmem_limit_bytes=VMEM_LIMIT),
    )(slab.astype(jnp.float32), w1, b1, w2, b2, masks)


# ----------------------------------------------------------------------------
# UpConvBlock forward
# ----------------------------------------------------------------------------
def compute_out_features(idx, up_scale):
    return 1 if idx == up_scale - 1 else CONSTANT_FEATURES


def init_upconvblock_params(key, in_features, up_scale, scale=0.1):
    params = []
    for i in range(up_scale):
        k = 2 ** up_scale
        out_features = compute_out_features(i, up_scale)
        key, k1, k2, k3, k4 = jax.random.split(key, 5)
        params.append(dict(
            conv_w=scale * jax.random.normal(k1, (out_features, in_features, 1, 1), jnp.float32),
            conv_b=scale * jax.random.normal(k2, (out_features,), jnp.float32),
            deconv_w=scale * jax.random.normal(k3, (out_features, out_features, k, k), jnp.float32),
            deconv_b=scale * jax.random.normal(k4, (out_features,), jnp.float32),
        ))
        in_features = out_features
    return params


def upconvblock_forward(x, params, up_scale):
    assert 1 <= up_scale < len(ALL_PADS), "up_scale out of supported range"
    K = 2 ** up_scale
    pad = ALL_PADS[up_scale]
    T = K // 2
    N, C, H, W = x.shape
    curH, curW = H, W
    flat = x.astype(jnp.float32).reshape(N, C, H * W)      # spatial-flat (N, C, HW)
    for stage in params:
        P = (T - 1) * (curW + 1)
        slab = jnp.pad(flat, ((0, 0), (0, 0), (P, P)))     # single flat pad per stage
        pm = _run_stage(slab, stage["conv_w"], stage["conv_b"],
                        stage["deconv_w"], stage["deconv_b"],
                        curH, curW, K, pad)                # (N, C', 4*HW) phase-major
        Cn = pm.shape[1]
        # Phase-major -> spatial-flat repack (one XLA pass) for the next stage.
        t = pm.reshape(N, Cn, 2, 2, curH, curW)
        t = jnp.transpose(t, (0, 1, 4, 2, 5, 3))
        curH, curW = 2 * curH, 2 * curW
        flat = t.reshape(N, Cn, curH * curW)
    return flat.reshape(N, flat.shape[1], curH, curW)


# ----------------------------------------------------------------------------
# Pure-JAX reference (lax convs) for correctness check
# ----------------------------------------------------------------------------
def _ref_forward(x, params, up_scale):
    pad = ALL_PADS[up_scale]
    dn = ("NCHW", "OIHW", "NCHW")
    for stage in params:
        w, b = stage["conv_w"], stage["conv_b"]
        x = lax.conv_general_dilated(x, w, (1, 1), [(0, 0), (0, 0)],
                                     dimension_numbers=dn)
        x = jnp.tanh(x + b.reshape(1, -1, 1, 1))
        w, b = stage["deconv_w"], stage["deconv_b"]
        K = w.shape[-1]
        rhs = jnp.transpose(w, (1, 0, 2, 3))[:, :, ::-1, ::-1]
        x = lax.conv_general_dilated(
            x, rhs, (1, 1), [(K - 1 - pad, K - 1 - pad)] * 2,
            lhs_dilation=(2, 2), dimension_numbers=dn)
        x = x + b.reshape(1, -1, 1, 1)
    return x


def _check(up_scale, in_features, N, H, W):
    key = jax.random.PRNGKey(0)
    key, kx = jax.random.split(key)
    x = jax.random.normal(kx, (N, in_features, H, W), jnp.float32)
    params = init_upconvblock_params(key, in_features, up_scale)
    fwd = jax.jit(lambda x, p: upconvblock_forward(x, p, up_scale))
    out = jax.block_until_ready(fwd(x, params))
    assert out.shape == (N, 1, H * (2 ** up_scale), W * (2 ** up_scale)), out.shape
    ref = jax.block_until_ready(_ref_forward(x, params, up_scale))
    np.testing.assert_allclose(np.asarray(out), np.asarray(ref),
                               rtol=1e-4, atol=1e-4)


if __name__ == "__main__":
    # Primary config (as in the spec example): up_scale=2 -> K=4, pad=1.
    _check(up_scale=2, in_features=4, N=2, H=16, W=16)
    # Validate the phase/parity math for the other supported pads (review item).
    _check(up_scale=1, in_features=4, N=2, H=16, W=16)   # K=2, pad=0
    _check(up_scale=3, in_features=4, N=1, H=8, W=8)     # K=8, pad=3
    print("KERNEL_OK")
</pallas_src>

<mosaic_0001>
module attributes {stable_mosaic.version = 11 : i64} {
  func.func @_stage_kernel(%arg0: i32, %arg1: memref<1x4x290xf32, #tpu.memory_space<vmem>>, %arg2: memref<32x4xf32, #tpu.memory_space<vmem>>, %arg3: memref<32x1xf32, #tpu.memory_space<vmem>>, %arg4: memref<4x32x128xf32, #tpu.memory_space<vmem>>, %arg5: memref<32x1xf32, #tpu.memory_space<vmem>>, %arg6: memref<3x256xf32, #tpu.memory_space<vmem>>, %arg7: memref<1x32x1024xf32, #tpu.memory_space<vmem>>, %arg8: memref<32x290xf32, #tpu.memory_space<vmem>>, %arg9: memref<128x256xf32, #tpu.memory_space<vmem>>) attributes {dimension_semantics = [#tpu.dimension_semantics<parallel>], iteration_bounds = array<i64: 2>, scalar_prefetch = 0 : i64, scratch_operands = 2 : i64, tpu.core_type = #tpu.core_type<tc>, window_params = [{transform_indices = @transform_0, window_bounds = array<i64: 1, 4, 290>}, {pipeline_mode = #tpu.pipeline_mode<synchronous>, transform_indices = @transform_1, window_bounds = array<i64: 32, 4>}, {pipeline_mode = #tpu.pipeline_mode<synchronous>, transform_indices = @transform_2, window_bounds = array<i64: 32, 1>}, {pipeline_mode = #tpu.pipeline_mode<synchronous>, transform_indices = @transform_3, window_bounds = array<i64: 4, 32, 128>}, {pipeline_mode = #tpu.pipeline_mode<synchronous>, transform_indices = @transform_4, window_bounds = array<i64: 32, 1>}, {pipeline_mode = #tpu.pipeline_mode<synchronous>, transform_indices = @transform_5, window_bounds = array<i64: 3, 256>}, {transform_indices = @transform_6, window_bounds = array<i64: 1, 32, 1024>}]} {
    %0 = tpu.iota {dimensions = array<i32: 1>} : vector<1x290xi32>
    %c17_i32 = arith.constant 17 : i32
    %1 = vector.broadcast %c17_i32 : i32 to vector<1x290xi32>
    %2 = arith.cmpi sge, %0, %1 : vector<1x290xi32>
    %c273_i32 = arith.constant 273 : i32
    %3 = vector.broadcast %c273_i32 : i32 to vector<1x290xi32>
    %4 = arith.cmpi slt, %0, %3 : vector<1x290xi32>
    %5 = arith.andi %2, %4 : vector<1x290xi1>
    %6 = arith.extui %5 : vector<1x290xi1> to vector<1x290xi32>
    %7 = arith.sitofp %6 : vector<1x290xi32> to vector<1x290xf32>
    %c0 = arith.constant 0 : index
    %c0_0 = arith.constant 0 : index
    %8 = vector.load %arg2[%c0, %c0_0] : memref<32x4xf32, #tpu.memory_space<vmem>>, vector<32x4xf32>
    %c0_1 = arith.constant 0 : index
    %c0_2 = arith.constant 0 : index
    %c0_3 = arith.constant 0 : index
    %9 = vector.load %arg1[%c0_1, %c0_2, %c0_3] : memref<1x4x290xf32, #tpu.memory_space<vmem>>, vector<1x4x290xf32>
    %10 = vector.shape_cast %9 : vector<1x4x290xf32> to vector<4x290xf32>
    %cst = arith.constant dense<0.000000e+00> : vector<32x290xf32>
    %11 = tpu.matmul %8, %10, %cst {dimension_numbers = #tpu.dot_dimension_numbers<[1], [0], [0], [1], [0, 0, 1, 1], [], []>} : vector<32x4xf32>, vector<4x290xf32>, vector<32x290xf32> -> vector<32x290xf32>
    %c0_4 = arith.constant 0 : index
    %c0_5 = arith.constant 0 : index
    %12 = vector.load %arg3[%c0_4, %c0_5] : memref<32x1xf32, #tpu.memory_space<vmem>>, vector<32x1xf32>
    %13 = vector.broadcast %12 : vector<32x1xf32> to vector<32x290xf32>
    %14 = arith.addf %11, %13 : vector<32x290xf32>
    %15 = math.tanh %14 : vector<32x290xf32>
    %16 = vector.broadcast %7 : vector<1x290xf32> to vector<32x290xf32>
    %17 = arith.mulf %15, %16 : vector<32x290xf32>
    %c0_6 = arith.constant 0 : index
    %c0_7 = arith.constant 0 : index
    %18 = vector.load %arg8[%c0_6, %c0_7] : memref<32x290xf32, #tpu.memory_space<vmem>>, vector<32x290xf32>
    tpu.vector_store %arg8[%c0_6, %c0_7], %17 {strides = array<i32>} : memref<32x290xf32, #tpu.memory_space<vmem>>, vector<32x290xf32>,
    %c0_8 = arith.constant 0 : index
    %c0_9 = arith.constant 0 : index
    %19 = vector.load %arg5[%c0_8, %c0_9] : memref<32x1xf32, #tpu.memory_space<vmem>>, vector<32x1xf32>
    %c0_10 = arith.constant 0 : index
    %c17 = arith.constant 17 : index
    %20 = vector.load %arg8[%c0_10, %c17] : memref<32x290xf32, #tpu.memory_space<vmem>>, vector<32x256xf32>
    %c0_11 = arith.constant 0 : index
    %c0_12 = arith.constant 0 : index
    %21 = vector.load %arg9[%c0_11, %c0_12] : memref<128x256xf32, #tpu.memory_space<vmem>>, vector<32x256xf32>
    tpu.vector_store %arg9[%c0_11, %c0_12], %20 {strides = array<i32>} : memref<128x256xf32, #tpu.memory_space<vmem>>, vector<32x256xf32>,
    %c0_13 = arith.constant 0 : index
    %c16 = arith.constant 16 : index
    %22 = vector.load %arg8[%c0_13, %c16] : memref<32x290xf32, #tpu.memory_space<vmem>>, vector<32x256xf32>
    %c0_14 = arith.constant 0 : index
    %c0_15 = arith.constant 0 : index
    %23 = vector.load %arg6[%c0_14, %c0_15] : memref<3x256xf32, #tpu.memory_space<vmem>>, vector<1x256xf32>
    %24 = vector.broadcast %23 : vector<1x256xf32> to vector<32x256xf32>
    %25 = arith.mulf %22, %24 : vector<32x256xf32>
    %c32 = arith.constant 32 : index
    %c0_16 = arith.constant 0 : index
    %26 = vector.load %arg9[%c32, %c0_16] : memref<128x256xf32, #tpu.memory_space<vmem>>, vector<32x256xf32>
    tpu.vector_store %arg9[%c32, %c0_16], %25 {strides = array<i32>} : memref<128x256xf32, #tpu.memory_space<vmem>>, vector<32x256xf32>,
    %c0_17 = arith.constant 0 : index
    %c1 = arith.constant 1 : index
    %27 = vector.load %arg8[%c0_17, %c1] : memref<32x290xf32, #tpu.memory_space<vmem>>, vector<32x256xf32>
    %c64 = arith.constant 64 : index
    %c0_18 = arith.constant 0 : index
    %28 = vector.load %arg9[%c64, %c0_18] : memref<128x256xf32, #tpu.memory_space<vmem>>, vector<32x256xf32>
    tpu.vector_store %arg9[%c64, %c0_18], %27 {strides = array<i32>} : memref<128x256xf32, #tpu.memory_space<vmem>>, vector<32x256xf32>,
    %c0_19 = arith.constant 0 : index
    %c0_20 = arith.constant 0 : index
    %29 = vector.load %arg8[%c0_19, %c0_20] : memref<32x290xf32, #tpu.memory_space<vmem>>, vector<32x256xf32>
    %c0_21 = arith.constant 0 : index
    %c0_22 = arith.constant 0 : index
    %30 = vector.load %arg6[%c0_21, %c0_22] : memref<3x256xf32, #tpu.memory_space<vmem>>, vector<1x256xf32>
    %31 = vector.broadcast %30 : vector<1x256xf32> to vector<32x256xf32>
    %32 = arith.mulf %29, %31 : vector<32x256xf32>
    %c96 = arith.constant 96 : index
    %c0_23 = arith.constant 0 : index
    %33 = vector.load %arg9[%c96, %c0_23] : memref<128x256xf32, #tpu.memory_space<vmem>>, vector<32x256xf32>
    tpu.vector_store %arg9[%c96, %c0_23], %32 {strides = array<i32>} : memref<128x256xf32, #tpu.memory_space<vmem>>, vector<32x256xf32>,
    %c0_24 = arith.constant 0 : index
    %c0_25 = arith.constant 0 : index
    %c0_26 = arith.constant 0 : index
    %34 = vector.load %arg4[%c0_24, %c0_25, %c0_26] : memref<4x32x128xf32, #tpu.memory_space<vmem>>, vector<1x32x128xf32>
    %35 = vector.shape_cast %34 : vector<1x32x128xf32> to vector<32x128xf32>
    %c0_27 = arith.constant 0 : index
    %c0_28 = arith.constant 0 : index
    %36 = vector.load %arg9[%c0_27, %c0_28] : memref<128x256xf32, #tpu.memory_space<vmem>>, vector<128x256xf32>
    %cst_29 = arith.constant dense<0.000000e+00> : vector<32x256xf32>
    %37 = tpu.matmul %35, %36, %cst_29 {dimension_numbers = #tpu.dot_dimension_numbers<[1], [0], [0], [1], [0, 0, 1, 1], [], []>} : vector<32x128xf32>, vector<128x256xf32>, vector<32x256xf32> -> vector<32x256xf32>
    %38 = vector.broadcast %19 : vector<32x1xf32> to vector<32x256xf32>
    %39 = arith.addf %37, %38 : vector<32x256xf32>
    %c0_30 = arith.constant 0 : index
    %c0_31 = arith.constant 0 : index
    %c0_32 = arith.constant 0 : index
    %40 = vector.load %arg7[%c0_30, %c0_31, %c0_32] : memref<1x32x1024xf32, #tpu.memory_space<vmem>>, vector<1x32x256xf32>
    %41 = vector.shape_cast %40 : vector<1x32x256xf32> to vector<32x256xf32>
    %42 = vector.shape_cast %39 : vector<32x256xf32> to vector<1x32x256xf32>
    tpu.vector_store %arg7[%c0_30, %c0_31, %c0_32], %42 {strides = array<i32>} : memref<1x32x1024xf32, #tpu.memory_space<vmem>>, vector<1x32x256xf32>,
    %c0_33 = arith.constant 0 : index
    %c18 = arith.constant 18 : index
    %43 = vector.load %arg8[%c0_33, %c18] : memref<32x290xf32, #tpu.memory_space<vmem>>, vector<32x256xf32>
    %c2 = arith.constant 2 : index
    %c0_34 = arith.constant 0 : index
    %44 = vector.load %arg6[%c2, %c0_34] : memref<3x256xf32, #tpu.memory_space<vmem>>, vector<1x256xf32>
    %45 = vector.broadcast %44 : vector<1x256xf32> to vector<32x256xf32>
    %46 = arith.mulf %43, %45 : vector<32x256xf32>
    %c0_35 = arith.constant 0 : index
    %c0_36 = arith.constant 0 : index
    %47 = vector.load %arg9[%c0_35, %c0_36] : memref<128x256xf32, #tpu.memory_space<vmem>>, vector<32x256xf32>
    tpu.vector_store %arg9[%c0_35, %c0_36], %46 {strides = array<i32>} : memref<128x256xf32, #tpu.memory_space<vmem>>, vector<32x256xf32>,
    %c0_37 = arith.constant 0 : index
    %c17_38 = arith.constant 17 : index
    %48 = vector.load %arg8[%c0_37, %c17_38] : memref<32x290xf32, #tpu.memory_space<vmem>>, vector<32x256xf32>
    %c32_39 = arith.constant 32 : index
    %c0_40 = arith.constant 0 : index
    %49 = vector.load %arg9[%c32_39, %c0_40] : memref<128x256xf32, #tpu.memory_space<vmem>>, vector<32x256xf32>
    tpu.vector_store %arg9[%c32_39, %c0_40], %48 {strides = array<i32>} : memref<128x256xf32, #tpu.memory_space<vmem>>, vector<32x256xf32>,
    %c0_41 = arith.constant 0 : index
    %c2_42 = arith.constant 2 : index
    %50 = vector.load %arg8[%c0_41, %c2_42] : memref<32x290xf32, #tpu.memory_space<vmem>>, vector<32x256xf32>
    %c2_43 = arith.constant 2 : index
    %c0_44 = arith.constant 0 : index
    %51 = vector.load %arg6[%c2_43, %c0_44] : memref<3x256xf32, #tpu.memory_space<vmem>>, vector<1x256xf32>
    %52 = vector.broadcast %51 : vector<1x256xf32> to vector<32x256xf32>
    %53 = arith.mulf %50, %52 : vector<32x256xf32>
    %c64_45 = arith.constant 64 : index
    %c0_46 = arith.constant 0 : index
    %54 = vector.load %arg9[%c64_45, %c0_46] : memref<128x256xf32, #tpu.memory_space<vmem>>, vector<32x256xf32>
    tpu.vector_store %arg9[%c64_45, %c0_46], %53 {strides = array<i32>} : memref<128x256xf32, #tpu.memory_space<vmem>>, vector<32x256xf32>,
    %c0_47 = arith.constant 0 : index
    %c1_48 = arith.constant 1 : index
    %55 = vector.load %arg8[%c0_47, %c1_48] : memref<32x290xf32, #tpu.memory_space<vmem>>, vector<32x256xf32>
    %c96_49 = arith.constant 96 : index
    %c0_50 = arith.constant 0 : index
    %56 = vector.load %arg9[%c96_49, %c0_50] : memref<128x256xf32, #tpu.memory_space<vmem>>, vector<32x256xf32>
    tpu.vector_store %arg9[%c96_49, %c0_50], %55 {strides = array<i32>} : memref<128x256xf32, #tpu.memory_space<vmem>>, vector<32x256xf32>,
    %c1_51 = arith.constant 1 : index
    %c0_52 = arith.constant 0 : index
    %c0_53 = arith.constant 0 : index
    %57 = vector.load %arg4[%c1_51, %c0_52, %c0_53] : memref<4x32x128xf32, #tpu.memory_space<vmem>>, vector<1x32x128xf32>
    %58 = vector.shape_cast %57 : vector<1x32x128xf32> to vector<32x128xf32>
    %c0_54 = arith.constant 0 : index
    %c0_55 = arith.constant 0 : index
    %59 = vector.load %arg9[%c0_54, %c0_55] : memref<128x256xf32, #tpu.memory_space<vmem>>, vector<128x256xf32>
    %cst_56 = arith.constant dense<0.000000e+00> : vector<32x256xf32>
    %60 = tpu.matmul %58, %59, %cst_56 {dimension_numbers = #tpu.dot_dimension_numbers<[1], [0], [0], [1], [0, 0, 1, 1], [], []>} : vector<32x128xf32>, vector<128x256xf32>, vector<32x256xf32> -> vector<32x256xf32>
    %61 = vector.broadcast %19 : vector<32x1xf32> to vector<32x256xf32>
    %62 = arith.addf %60, %61 : vector<32x256xf32>
    %c0_57 = arith.constant 0 : index
    %c0_58 = arith.constant 0 : index
    %c256 = arith.constant 256 : index
    %63 = vector.load %arg7[%c0_57, %c0_58, %c256] : memref<1x32x1024xf32, #tpu.memory_space<vmem>>, vector<1x32x256xf32>
    %64 = vector.shape_cast %63 : vector<1x32x256xf32> to vector<32x256xf32>
    %65 = vector.shape_cast %62 : vector<32x256xf32> to vector<1x32x256xf32>
    tpu.vector_store %arg7[%c0_57, %c0_58, %c256], %65 {strides = array<i32>} : memref<1x32x1024xf32, #tpu.memory_space<vmem>>, vector<1x32x256xf32>,
    %c0_59 = arith.constant 0 : index
    %c33 = arith.constant 33 : index
    %66 = vector.load %arg8[%c0_59, %c33] : memref<32x290xf32, #tpu.memory_space<vmem>>, vector<32x256xf32>
    %c0_60 = arith.constant 0 : index
    %c0_61 = arith.constant 0 : index
    %67 = vector.load %arg9[%c0_60, %c0_61] : memref<128x256xf32, #tpu.memory_space<vmem>>, vector<32x256xf32>
    tpu.vector_store %arg9[%c0_60, %c0_61], %66 {strides = array<i32>} : memref<128x256xf32, #tpu.memory_space<vmem>>, vector<32x256xf32>,
    %c0_62 = arith.constant 0 : index
    %c32_63 = arith.constant 32 : index
    %68 = vector.load %arg8[%c0_62, %c32_63] : memref<32x290xf32, #tpu.memory_space<vmem>>, vector<32x256xf32>
    %c0_64 = arith.constant 0 : index
    %c0_65 = arith.constant 0 : index
    %69 = vector.load %arg6[%c0_64, %c0_65] : memref<3x256xf32, #tpu.memory_space<vmem>>, vector<1x256xf32>
    %70 = vector.broadcast %69 : vector<1x256xf32> to vector<32x256xf32>
    %71 = arith.mulf %68, %70 : vector<32x256xf32>
    %c32_66 = arith.constant 32 : index
    %c0_67 = arith.constant 0 : index
    %72 = vector.load %arg9[%c32_66, %c0_67] : memref<128x256xf32, #tpu.memory_space<vmem>>, vector<32x256xf32>
    tpu.vector_store %arg9[%c32_66, %c0_67], %71 {strides = array<i32>} : memref<128x256xf32, #tpu.memory_space<vmem>>, vector<32x256xf32>,
    %c0_68 = arith.constant 0 : index
    %c17_69 = arith.constant 17 : index
    %73 = vector.load %arg8[%c0_68, %c17_69] : memref<32x290xf32, #tpu.memory_space<vmem>>, vector<32x256xf32>
    %c64_70 = arith.constant 64 : index
    %c0_71 = arith.constant 0 : index
    %74 = vector.load %arg9[%c64_70, %c0_71] : memref<128x256xf32, #tpu.memory_space<vmem>>, vector<32x256xf32>
    tpu.vector_store %arg9[%c64_70, %c0_71], %73 {strides = array<i32>} : memref<128x256xf32, #tpu.memory_space<vmem>>, vector<32x256xf32>,
    %c0_72 = arith.constant 0 : index
    %c16_73 = arith.constant 16 : index
    %75 = vector.load %arg8[%c0_72, %c16_73] : memref<32x290xf32, #tpu.memory_space<vmem>>, vector<32x256xf32>
    %c0_74 = arith.constant 0 : index
    %c0_75 = arith.constant 0 : index
    %76 = vector.load %arg6[%c0_74, %c0_75] : memref<3x256xf32, #tpu.memory_space<vmem>>, vector<1x256xf32>
    %77 = vector.broadcast %76 : vector<1x256xf32> to vector<32x256xf32>
    %78 = arith.mulf %75, %77 : vector<32x256xf32>
    %c96_76 = arith.constant 96 : index
    %c0_77 = arith.constant 0 : index
    %79 = vector.load %arg9[%c96_76, %c0_77] : memref<128x256xf32, #tpu.memory_space<vmem>>, vector<32x256xf32>
    tpu.vector_store %arg9[%c96_76, %c0_77], %78 {strides = array<i32>} : memref<128x256xf32, #tpu.memory_space<vmem>>, vector<32x256xf32>,
    %c2_78 = arith.constant 2 : index
    %c0_79 = arith.constant 0 : index
    %c0_80 = arith.constant 0 : index
    %80 = vector.load %arg4[%c2_78, %c0_79, %c0_80] : memref<4x32x128xf32, #tpu.memory_space<vmem>>, vector<1x32x128xf32>
    %81 = vector.shape_cast %80 : vector<1x32x128xf32> to vector<32x128xf32>
    %c0_81 = arith.constant 0 : index
    %c0_82 = arith.constant 0 : index
    %82 = vector.load %arg9[%c0_81, %c0_82] : memref<128x256xf32, #tpu.memory_space<vmem>>, vector<128x256xf32>
    %cst_83 = arith.constant dense<0.000000e+00> : vector<32x256xf32>
    %83 = tpu.matmul %81, %82, %cst_83 {dimension_numbers = #tpu.dot_dimension_numbers<[1], [0], [0], [1], [0, 0, 1, 1], [], []>} : vector<32x128xf32>, vector<128x256xf32>, vector<32x256xf32> -> vector<32x256xf32>
    %84 = vector.broadcast %19 : vector<32x1xf32> to vector<32x256xf32>
    %85 = arith.addf %83, %84 : vector<32x256xf32>
    %c0_84 = arith.constant 0 : index
    %c0_85 = arith.constant 0 : index
    %c512 = arith.constant 512 : index
    %86 = vector.load %arg7[%c0_84, %c0_85, %c512] : memref<1x32x1024xf32, #tpu.memory_space<vmem>>, vector<1x32x256xf32>
    %87 = vector.shape_cast %86 : vector<1x32x256xf32> to vector<32x256xf32>
    %88 = vector.shape_cast %85 : vector<32x256xf32> to vector<1x32x256xf32>
    tpu.vector_store %arg7[%c0_84, %c0_85, %c512], %88 {strides = array<i32>} : memref<1x32x1024xf32, #tpu.memory_space<vmem>>, vector<1x32x256xf32>,
    %c0_86 = arith.constant 0 : index
    %c34 = arith.constant 34 : index
    %89 = vector.load %arg8[%c0_86, %c34] : memref<32x290xf32, #tpu.memory_space<vmem>>, vector<32x256xf32>
    %c2_87 = arith.constant 2 : index
    %c0_88 = arith.constant 0 : index
    %90 = vector.load %arg6[%c2_87, %c0_88] : memref<3x256xf32, #tpu.memory_space<vmem>>, vector<1x256xf32>
    %91 = vector.broadcast %90 : vector<1x256xf32> to vector<32x256xf32>
    %92 = arith.mulf %89, %91 : vector<32x256xf32>
    %c0_89 = arith.constant 0 : index
    %c0_90 = arith.constant 0 : index
    %93 = vector.load %arg9[%c0_89, %c0_90] : memref<128x256xf32, #tpu.memory_space<vmem>>, vector<32x256xf32>
    tpu.vector_store %arg9[%c0_89, %c0_90], %92 {strides = array<i32>} : memref<128x256xf32, #tpu.memory_space<vmem>>, vector<32x256xf32>,
    %c0_91 = arith.constant 0 : index
    %c33_92 = arith.constant 33 : index
    %94 = vector.load %arg8[%c0_91, %c33_92] : memref<32x290xf32, #tpu.memory_space<vmem>>, vector<32x256xf32>
    %c32_93 = arith.constant 32 : index
    %c0_94 = arith.constant 0 : index
    %95 = vector.load %arg9[%c32_93, %c0_94] : memref<128x256xf32, #tpu.memory_space<vmem>>, vector<32x256xf32>
    tpu.vector_store %arg9[%c32_93, %c0_94], %94 {strides = array<i32>} : memref<128x256xf32, #tpu.memory_space<vmem>>, vector<32x256xf32>,
    %c0_95 = arith.constant 0 : index
    %c18_96 = arith.constant 18 : index
    %96 = vector.load %arg8[%c0_95, %c18_96] : memref<32x290xf32, #tpu.memory_space<vmem>>, vector<32x256xf32>
    %c2_97 = arith.constant 2 : index
    %c0_98 = arith.constant 0 : index
    %97 = vector.load %arg6[%c2_97, %c0_98] : memref<3x256xf32, #tpu.memory_space<vmem>>, vector<1x256xf32>
    %98 = vector.broadcast %97 : vector<1x256xf32> to vector<32x256xf32>
    %99 = arith.mulf %96, %98 : vector<32x256xf32>
    %c64_99 = arith.constant 64 : index
    %c0_100 = arith.constant 0 : index
    %100 = vector.load %arg9[%c64_99, %c0_100] : memref<128x256xf32, #tpu.memory_space<vmem>>, vector<32x256xf32>
    tpu.vector_store %arg9[%c64_99, %c0_100], %99 {strides = array<i32>} : memref<128x256xf32, #tpu.memory_space<vmem>>, vector<32x256xf32>,
    %c0_101 = arith.constant 0 : index
    %c17_102 = arith.constant 17 : index
    %101 = vector.load %arg8[%c0_101, %c17_102] : memref<32x290xf32, #tpu.memory_space<vmem>>, vector<32x256xf32>
    %c96_103 = arith.constant 96 : index
    %c0_104 = arith.constant 0 : index
    %102 = vector.load %arg9[%c96_103, %c0_104] : memref<128x256xf32, #tpu.memory_space<vmem>>, vector<32x256xf32>
    tpu.vector_store %arg9[%c96_103, %c0_104], %101 {strides = array<i32>} : memref<128x256xf32, #tpu.memory_space<vmem>>, vector<32x256xf32>,
    %c3 = arith.constant 3 : index
    %c0_105 = arith.constant 0 : index
    %c0_106 = arith.constant 0 : index
    %103 = vector.load %arg4[%c3, %c0_105, %c0_106] : memref<4x32x128xf32, #tpu.memory_space<vmem>>, vector<1x32x128xf32>
    %104 = vector.shape_cast %103 : vector<1x32x128xf32> to vector<32x128xf32>
    %c0_107 = arith.constant 0 : index
    %c0_108 = arith.constant 0 : index
    %105 = vector.load %arg9[%c0_107, %c0_108] : memref<128x256xf32, #tpu.memory_space<vmem>>, vector<128x256xf32>
    %cst_109 = arith.constant dense<0.000000e+00> : vector<32x256xf32>
    %106 = tpu.matmul %104, %105, %cst_109 {dimension_numbers = #tpu.dot_dimension_numbers<[1], [0], [0], [1], [0, 0, 1, 1], [], []>} : vector<32x128xf32>, vector<128x256xf32>, vector<32x256xf32> -> vector<32x256xf32>
    %107 = vector.broadcast %19 : vector<32x1xf32> to vector<32x256xf32>
    %108 = arith.addf %106, %107 : vector<32x256xf32>
    %c0_110 = arith.constant 0 : index
    %c0_111 = arith.constant 0 : index
    %c768 = arith.constant 768 : index
    %109 = vector.load %arg7[%c0_110, %c0_111, %c768] : memref<1x32x1024xf32, #tpu.memory_space<vmem>>, vector<1x32x256xf32>
    %110 = vector.shape_cast %109 : vector<1x32x256xf32> to vector<32x256xf32>
    %111 = vector.shape_cast %108 : vector<32x256xf32> to vector<1x32x256xf32>
    tpu.vector_store %arg7[%c0_110, %c0_111, %c768], %111 {strides = array<i32>} : memref<1x32x1024xf32, #tpu.memory_space<vmem>>, vector<1x32x256xf32>,
    return
  }
  func.func @transform_0(%arg0: i32) -> (i32, i32, i32) {
    %c0_i32 = arith.constant 0 : i32
    %c0_i32_0 = arith.constant 0 : i32
    %c0_i32_1 = arith.constant 0 : i32
    return %arg0, %c0_i32, %c0_i32_0 : i32, i32, i32
  }
  func.func @transform_1(%arg0: i32) -> (i32, i32) {
    %c0_i32 = arith.constant 0 : i32
    %c0_i32_0 = arith.constant 0 : i32
    %c0_i32_1 = arith.constant 0 : i32
    return %c0_i32, %c0_i32_0 : i32, i32
  }
  func.func @transform_2(%arg0: i32) -> (i32, i32) {
    %c0_i32 = arith.constant 0 : i32
    %c0_i32_0 = arith.constant 0 : i32
    %c0_i32_1 = arith.constant 0 : i32
    return %c0_i32, %c0_i32_0 : i32, i32
  }
  func.func @transform_3(%arg0: i32) -> (i32, i32, i32) {
    %c0_i32 = arith.constant 0 : i32
    %c0_i32_0 = arith.constant 0 : i32
    %c0_i32_1 = arith.constant 0 : i32
    %c0_i32_2 = arith.constant 0 : i32
    return %c0_i32, %c0_i32_0, %c0_i32_1 : i32, i32, i32
  }
  func.func @transform_4(%arg0: i32) -> (i32, i32) {
    %c0_i32 = arith.constant 0 : i32
    %c0_i32_0 = arith.constant 0 : i32
    %c0_i32_1 = arith.constant 0 : i32
    return %c0_i32, %c0_i32_0 : i32, i32
  }
  func.func @transform_5(%arg0: i32) -> (i32, i32) {
    %c0_i32 = arith.constant 0 : i32
    %c0_i32_0 = arith.constant 0 : i32
    %c0_i32_1 = arith.constant 0 : i32
    return %c0_i32, %c0_i32_0 : i32, i32
  }
  func.func @transform_6(%arg0: i32) -> (i32, i32, i32) {
    %c0_i32 = arith.constant 0 : i32
    %c0_i32_0 = arith.constant 0 : i32
    %c0_i32_1 = arith.constant 0 : i32
    return %arg0, %c0_i32, %c0_i32_0 : i32, i32, i32
  }
}

module attributes {stable_mosaic.version = 11 : i64} {
  func.func @_stage_kernel(%arg0: i32, %arg1: memref<1x32x1090xf32, #tpu.memory_space<vmem>>, %arg2: memref<1x32xf32, #tpu.memory_space<vmem>>, %arg3: memref<1x1xf32, #tpu.memory_space<vmem>>, %arg4: memref<4x4x1xf32, #tpu.memory_space<vmem>>, %arg5: memref<1x1xf32, #tpu.memory_space<vmem>>, %arg6: memref<3x1024xf32, #tpu.memory_space<vmem>>, %arg7: memref<1x1x4096xf32, #tpu.memory_space<vmem>>, %arg8: memref<1x1090xf32, #tpu.memory_space<vmem>>, %arg9: memref<4x1024xf32, #tpu.memory_space<vmem>>) attributes {dimension_semantics = [#tpu.dimension_semantics<parallel>], iteration_bounds = array<i64: 2>, scalar_prefetch = 0 : i64, scratch_operands = 2 : i64, tpu.core_type = #tpu.core_type<tc>, window_params = [{transform_indices = @transform_0, window_bounds = array<i64: 1, 32, 1090>}, {pipeline_mode = #tpu.pipeline_mode<synchronous>, transform_indices = @transform_1, window_bounds = array<i64: 1, 32>}, {pipeline_mode = #tpu.pipeline_mode<synchronous>, transform_indices = @transform_2, window_bounds = array<i64: 1, 1>}, {pipeline_mode = #tpu.pipeline_mode<synchronous>, transform_indices = @transform_3, window_bounds = array<i64: 4, 4, 1>}, {pipeline_mode = #tpu.pipeline_mode<synchronous>, transform_indices = @transform_4, window_bounds = array<i64: 1, 1>}, {pipeline_mode = #tpu.pipeline_mode<synchronous>, transform_indices = @transform_5, window_bounds = array<i64: 3, 1024>}, {transform_indices = @transform_6, window_bounds = array<i64: 1, 1, 4096>}]} {
    %0 = tpu.iota {dimensions = array<i32: 1>} : vector<1x1090xi32>
    %c33_i32 = arith.constant 33 : i32
    %1 = vector.broadcast %c33_i32 : i32 to vector<1x1090xi32>
    %2 = arith.cmpi sge, %0, %1 : vector<1x1090xi32>
    %c1057_i32 = arith.constant 1057 : i32
    %3 = vector.broadcast %c1057_i32 : i32 to vector<1x1090xi32>
    %4 = arith.cmpi slt, %0, %3 : vector<1x1090xi32>
    %5 = arith.andi %2, %4 : vector<1x1090xi1>
    %6 = arith.extui %5 : vector<1x1090xi1> to vector<1x1090xi32>
    %7 = arith.sitofp %6 : vector<1x1090xi32> to vector<1x1090xf32>
    %c0 = arith.constant 0 : index
    %c0_0 = arith.constant 0 : index
    %8 = vector.load %arg2[%c0, %c0_0] : memref<1x32xf32, #tpu.memory_space<vmem>>, vector<1x32xf32>
    %c0_1 = arith.constant 0 : index
    %c0_2 = arith.constant 0 : index
    %c0_3 = arith.constant 0 : index
    %9 = vector.load %arg1[%c0_1, %c0_2, %c0_3] : memref<1x32x1090xf32, #tpu.memory_space<vmem>>, vector<1x32x1090xf32>
    %10 = vector.shape_cast %9 : vector<1x32x1090xf32> to vector<32x1090xf32>
    %cst = arith.constant dense<0.000000e+00> : vector<1x1090xf32>
    %11 = tpu.matmul %8, %10, %cst {dimension_numbers = #tpu.dot_dimension_numbers<[1], [0], [0], [1], [0, 0, 1, 1], [], []>} : vector<1x32xf32>, vector<32x1090xf32>, vector<1x1090xf32> -> vector<1x1090xf32>
    %c0_4 = arith.constant 0 : index
    %c0_5 = arith.constant 0 : index
    %12 = vector.load %arg3[%c0_4, %c0_5] : memref<1x1xf32, #tpu.memory_space<vmem>>, vector<1x1xf32>
    %13 = vector.broadcast %12 : vector<1x1xf32> to vector<1x1090xf32>
    %14 = arith.addf %11, %13 : vector<1x1090xf32>
    %15 = math.tanh %14 : vector<1x1090xf32>
    %16 = arith.mulf %15, %7 : vector<1x1090xf32>
    %c0_6 = arith.constant 0 : index
    %c0_7 = arith.constant 0 : index
    %17 = vector.load %arg8[%c0_6, %c0_7] : memref<1x1090xf32, #tpu.memory_space<vmem>>, vector<1x1090xf32>
    tpu.vector_store %arg8[%c0_6, %c0_7], %16 {strides = array<i32>} : memref<1x1090xf32, #tpu.memory_space<vmem>>, vector<1x1090xf32>,
    %c0_8 = arith.constant 0 : index
    %c0_9 = arith.constant 0 : index
    %18 = vector.load %arg5[%c0_8, %c0_9] : memref<1x1xf32, #tpu.memory_space<vmem>>, vector<1x1xf32>
    %c0_10 = arith.constant 0 : index
    %c33 = arith.constant 33 : index
    %19 = vector.load %arg8[%c0_10, %c33] : memref<1x1090xf32, #tpu.memory_space<vmem>>, vector<1x1024xf32>
    %c0_11 = arith.constant 0 : index
    %c0_12 = arith.constant 0 : index
    %20 = vector.load %arg9[%c0_11, %c0_12] : memref<4x1024xf32, #tpu.memory_space<vmem>>, vector<1x1024xf32>
    tpu.vector_store %arg9[%c0_11, %c0_12], %19 {strides = array<i32>} : memref<4x1024xf32, #tpu.memory_space<vmem>>, vector<1x1024xf32>,
    %c0_13 = arith.constant 0 : index
    %c32 = arith.constant 32 : index
    %21 = vector.load %arg8[%c0_13, %c32] : memref<1x1090xf32, #tpu.memory_space<vmem>>, vector<1x1024xf32>
    %c0_14 = arith.constant 0 : index
    %c0_15 = arith.constant 0 : index
    %22 = vector.load %arg6[%c0_14, %c0_15] : memref<3x1024xf32, #tpu.memory_space<vmem>>, vector<1x1024xf32>
    %23 = arith.mulf %21, %22 : vector<1x1024xf32>
    %c1 = arith.constant 1 : index
    %c0_16 = arith.constant 0 : index
    %24 = vector.load %arg9[%c1, %c0_16] : memref<4x1024xf32, #tpu.memory_space<vmem>>, vector<1x1024xf32>
    tpu.vector_store %arg9[%c1, %c0_16], %23 {strides = array<i32>} : memref<4x1024xf32, #tpu.memory_space<vmem>>, vector<1x1024xf32>,
    %c0_17 = arith.constant 0 : index
    %c1_18 = arith.constant 1 : index
    %25 = vector.load %arg8[%c0_17, %c1_18] : memref<1x1090xf32, #tpu.memory_space<vmem>>, vector<1x1024xf32>
    %c2 = arith.constant 2 : index
    %c0_19 = arith.constant 0 : index
    %26 = vector.load %arg9[%c2, %c0_19] : memref<4x1024xf32, #tpu.memory_space<vmem>>, vector<1x1024xf32>
    tpu.vector_store %arg9[%c2, %c0_19], %25 {strides = array<i32>} : memref<4x1024xf32, #tpu.memory_space<vmem>>, vector<1x1024xf32>,
    %c0_20 = arith.constant 0 : index
    %c0_21 = arith.constant 0 : index
    %27 = vector.load %arg8[%c0_20, %c0_21] : memref<1x1090xf32, #tpu.memory_space<vmem>>, vector<1x1024xf32>
    %c0_22 = arith.constant 0 : index
    %c0_23 = arith.constant 0 : index
    %28 = vector.load %arg6[%c0_22, %c0_23] : memref<3x1024xf32, #tpu.memory_space<vmem>>, vector<1x1024xf32>
    %29 = arith.mulf %27, %28 : vector<1x1024xf32>
    %c3 = arith.constant 3 : index
    %c0_24 = arith.constant 0 : index
    %30 = vector.load %arg9[%c3, %c0_24] : memref<4x1024xf32, #tpu.memory_space<vmem>>, vector<1x1024xf32>
    tpu.vector_store %arg9[%c3, %c0_24], %29 {strides = array<i32>} : memref<4x1024xf32, #tpu.memory_space<vmem>>, vector<1x1024xf32>,
    %c0_25 = arith.constant 0 : index
    %c0_26 = arith.constant 0 : index
    %c0_27 = arith.constant 0 : index
    %31 = vector.load %arg4[%c0_25, %c0_26, %c0_27] : memref<4x4x1xf32, #tpu.memory_space<vmem>>, vector<1x4x1xf32>
    %32 = vector.shape_cast %31 : vector<1x4x1xf32> to vector<4x1xf32>
    %c0_28 = arith.constant 0 : index
    %c0_29 = arith.constant 0 : index
    %33 = vector.load %arg9[%c0_28, %c0_29] : memref<4x1024xf32, #tpu.memory_space<vmem>>, vector<4x1024xf32>
    %34 = vector.broadcast %32 : vector<4x1xf32> to vector<4x1024xf32>
    %35 = arith.mulf %34, %33 : vector<4x1024xf32>
    %cst_30 = arith.constant dense<0.000000e+00> : vector<1024xf32>
    %36 = vector.multi_reduction <add>, %35, %cst_30 [0] : vector<4x1024xf32> to vector<1024xf32>
    %37 = vector.shape_cast %36 : vector<1024xf32> to vector<1x1024xf32>
    %38 = vector.broadcast %18 : vector<1x1xf32> to vector<1x1024xf32>
    %39 = arith.addf %37, %38 : vector<1x1024xf32>
    %c0_31 = arith.constant 0 : index
    %c0_32 = arith.constant 0 : index
    %c0_33 = arith.constant 0 : index
    %40 = vector.load %arg7[%c0_31, %c0_32, %c0_33] : memref<1x1x4096xf32, #tpu.memory_space<vmem>>, vector<1x1x1024xf32>
    %41 = vector.shape_cast %40 : vector<1x1x1024xf32> to vector<1x1024xf32>
    %42 = vector.shape_cast %39 : vector<1x1024xf32> to vector<1x1x1024xf32>
    tpu.vector_store %arg7[%c0_31, %c0_32, %c0_33], %42 {strides = array<i32>} : memref<1x1x4096xf32, #tpu.memory_space<vmem>>, vector<1x1x1024xf32>,
    %c0_34 = arith.constant 0 : index
    %c34 = arith.constant 34 : index
    %43 = vector.load %arg8[%c0_34, %c34] : memref<1x1090xf32, #tpu.memory_space<vmem>>, vector<1x1024xf32>
    %c2_35 = arith.constant 2 : index
    %c0_36 = arith.constant 0 : index
    %44 = vector.load %arg6[%c2_35, %c0_36] : memref<3x1024xf32, #tpu.memory_space<vmem>>, vector<1x1024xf32>
    %45 = arith.mulf %43, %44 : vector<1x1024xf32>
    %c0_37 = arith.constant 0 : index
    %c0_38 = arith.constant 0 : index
    %46 = vector.load %arg9[%c0_37, %c0_38] : memref<4x1024xf32, #tpu.memory_space<vmem>>, vector<1x1024xf32>
    tpu.vector_store %arg9[%c0_37, %c0_38], %45 {strides = array<i32>} : memref<4x1024xf32, #tpu.memory_space<vmem>>, vector<1x1024xf32>,
    %c0_39 = arith.constant 0 : index
    %c33_40 = arith.constant 33 : index
    %47 = vector.load %arg8[%c0_39, %c33_40] : memref<1x1090xf32, #tpu.memory_space<vmem>>, vector<1x1024xf32>
    %c1_41 = arith.constant 1 : index
    %c0_42 = arith.constant 0 : index
    %48 = vector.load %arg9[%c1_41, %c0_42] : memref<4x1024xf32, #tpu.memory_space<vmem>>, vector<1x1024xf32>
    tpu.vector_store %arg9[%c1_41, %c0_42], %47 {strides = array<i32>} : memref<4x1024xf32, #tpu.memory_space<vmem>>, vector<1x1024xf32>,
    %c0_43 = arith.constant 0 : index
    %c2_44 = arith.constant 2 : index
    %49 = vector.load %arg8[%c0_43, %c2_44] : memref<1x1090xf32, #tpu.memory_space<vmem>>, vector<1x1024xf32>
    %c2_45 = arith.constant 2 : index
    %c0_46 = arith.constant 0 : index
    %50 = vector.load %arg6[%c2_45, %c0_46] : memref<3x1024xf32, #tpu.memory_space<vmem>>, vector<1x1024xf32>
    %51 = arith.mulf %49, %50 : vector<1x1024xf32>
    %c2_47 = arith.constant 2 : index
    %c0_48 = arith.constant 0 : index
    %52 = vector.load %arg9[%c2_47, %c0_48] : memref<4x1024xf32, #tpu.memory_space<vmem>>, vector<1x1024xf32>
    tpu.vector_store %arg9[%c2_47, %c0_48], %51 {strides = array<i32>} : memref<4x1024xf32, #tpu.memory_space<vmem>>, vector<1x1024xf32>,
    %c0_49 = arith.constant 0 : index
    %c1_50 = arith.constant 1 : index
    %53 = vector.load %arg8[%c0_49, %c1_50] : memref<1x1090xf32, #tpu.memory_space<vmem>>, vector<1x1024xf32>
    %c3_51 = arith.constant 3 : index
    %c0_52 = arith.constant 0 : index
    %54 = vector.load %arg9[%c3_51, %c0_52] : memref<4x1024xf32, #tpu.memory_space<vmem>>, vector<1x1024xf32>
    tpu.vector_store %arg9[%c3_51, %c0_52], %53 {strides = array<i32>} : memref<4x1024xf32, #tpu.memory_space<vmem>>, vector<1x1024xf32>,
    %c1_53 = arith.constant 1 : index
    %c0_54 = arith.constant 0 : index
    %c0_55 = arith.constant 0 : index
    %55 = vector.load %arg4[%c1_53, %c0_54, %c0_55] : memref<4x4x1xf32, #tpu.memory_space<vmem>>, vector<1x4x1xf32>
    %56 = vector.shape_cast %55 : vector<1x4x1xf32> to vector<4x1xf32>
    %c0_56 = arith.constant 0 : index
    %c0_57 = arith.constant 0 : index
    %57 = vector.load %arg9[%c0_56, %c0_57] : memref<4x1024xf32, #tpu.memory_space<vmem>>, vector<4x1024xf32>
    %58 = vector.broadcast %56 : vector<4x1xf32> to vector<4x1024xf32>
    %59 = arith.mulf %58, %57 : vector<4x1024xf32>
    %cst_58 = arith.constant dense<0.000000e+00> : vector<1024xf32>
    %60 = vector.multi_reduction <add>, %59, %cst_58 [0] : vector<4x1024xf32> to vector<1024xf32>
    %61 = vector.shape_cast %60 : vector<1024xf32> to vector<1x1024xf32>
    %62 = vector.broadcast %18 : vector<1x1xf32> to vector<1x1024xf32>
    %63 = arith.addf %61, %62 : vector<1x1024xf32>
    %c0_59 = arith.constant 0 : index
    %c0_60 = arith.constant 0 : index
    %c1024 = arith.constant 1024 : index
    %64 = vector.load %arg7[%c0_59, %c0_60, %c1024] : memref<1x1x4096xf32, #tpu.memory_space<vmem>>, vector<1x1x1024xf32>
    %65 = vector.shape_cast %64 : vector<1x1x1024xf32> to vector<1x1024xf32>
    %66 = vector.shape_cast %63 : vector<1x1024xf32> to vector<1x1x1024xf32>
    tpu.vector_store %arg7[%c0_59, %c0_60, %c1024], %66 {strides = array<i32>} : memref<1x1x4096xf32, #tpu.memory_space<vmem>>, vector<1x1x1024xf32>,
    %c0_61 = arith.constant 0 : index
    %c65 = arith.constant 65 : index
    %67 = vector.load %arg8[%c0_61, %c65] : memref<1x1090xf32, #tpu.memory_space<vmem>>, vector<1x1024xf32>
    %c0_62 = arith.constant 0 : index
    %c0_63 = arith.constant 0 : index
    %68 = vector.load %arg9[%c0_62, %c0_63] : memref<4x1024xf32, #tpu.memory_space<vmem>>, vector<1x1024xf32>
    tpu.vector_store %arg9[%c0_62, %c0_63], %67 {strides = array<i32>} : memref<4x1024xf32, #tpu.memory_space<vmem>>, vector<1x1024xf32>,
    %c0_64 = arith.constant 0 : index
    %c64 = arith.constant 64 : index
    %69 = vector.load %arg8[%c0_64, %c64] : memref<1x1090xf32, #tpu.memory_space<vmem>>, vector<1x1024xf32>
    %c0_65 = arith.constant 0 : index
    %c0_66 = arith.constant 0 : index
    %70 = vector.load %arg6[%c0_65, %c0_66] : memref<3x1024xf32, #tpu.memory_space<vmem>>, vector<1x1024xf32>
    %71 = arith.mulf %69, %70 : vector<1x1024xf32>
    %c1_67 = arith.constant 1 : index
    %c0_68 = arith.constant 0 : index
    %72 = vector.load %arg9[%c1_67, %c0_68] : memref<4x1024xf32, #tpu.memory_space<vmem>>, vector<1x1024xf32>
    tpu.vector_store %arg9[%c1_67, %c0_68], %71 {strides = array<i32>} : memref<4x1024xf32, #tpu.memory_space<vmem>>, vector<1x1024xf32>,
    %c0_69 = arith.constant 0 : index
    %c33_70 = arith.constant 33 : index
    %73 = vector.load %arg8[%c0_69, %c33_70] : memref<1x1090xf32, #tpu.memory_space<vmem>>, vector<1x1024xf32>
    %c2_71 = arith.constant 2 : index
    %c0_72 = arith.constant 0 : index
    %74 = vector.load %arg9[%c2_71, %c0_72] : memref<4x1024xf32, #tpu.memory_space<vmem>>, vector<1x1024xf32>
    tpu.vector_store %arg9[%c2_71, %c0_72], %73 {strides = array<i32>} : memref<4x1024xf32, #tpu.memory_space<vmem>>, vector<1x1024xf32>,
    %c0_73 = arith.constant 0 : index
    %c32_74 = arith.constant 32 : index
    %75 = vector.load %arg8[%c0_73, %c32_74] : memref<1x1090xf32, #tpu.memory_space<vmem>>, vector<1x1024xf32>
    %c0_75 = arith.constant 0 : index
    %c0_76 = arith.constant 0 : index
    %76 = vector.load %arg6[%c0_75, %c0_76] : memref<3x1024xf32, #tpu.memory_space<vmem>>, vector<1x1024xf32>
    %77 = arith.mulf %75, %76 : vector<1x1024xf32>
    %c3_77 = arith.constant 3 : index
    %c0_78 = arith.constant 0 : index
    %78 = vector.load %arg9[%c3_77, %c0_78] : memref<4x1024xf32, #tpu.memory_space<vmem>>, vector<1x1024xf32>
    tpu.vector_store %arg9[%c3_77, %c0_78], %77 {strides = array<i32>} : memref<4x1024xf32, #tpu.memory_space<vmem>>, vector<1x1024xf32>,
    %c2_79 = arith.constant 2 : index
    %c0_80 = arith.constant 0 : index
    %c0_81 = arith.constant 0 : index
    %79 = vector.load %arg4[%c2_79, %c0_80, %c0_81] : memref<4x4x1xf32, #tpu.memory_space<vmem>>, vector<1x4x1xf32>
    %80 = vector.shape_cast %79 : vector<1x4x1xf32> to vector<4x1xf32>
    %c0_82 = arith.constant 0 : index
    %c0_83 = arith.constant 0 : index
    %81 = vector.load %arg9[%c0_82, %c0_83] : memref<4x1024xf32, #tpu.memory_space<vmem>>, vector<4x1024xf32>
    %82 = vector.broadcast %80 : vector<4x1xf32> to vector<4x1024xf32>
    %83 = arith.mulf %82, %81 : vector<4x1024xf32>
    %cst_84 = arith.constant dense<0.000000e+00> : vector<1024xf32>
    %84 = vector.multi_reduction <add>, %83, %cst_84 [0] : vector<4x1024xf32> to vector<1024xf32>
    %85 = vector.shape_cast %84 : vector<1024xf32> to vector<1x1024xf32>
    %86 = vector.broadcast %18 : vector<1x1xf32> to vector<1x1024xf32>
    %87 = arith.addf %85, %86 : vector<1x1024xf32>
    %c0_85 = arith.constant 0 : index
    %c0_86 = arith.constant 0 : index
    %c2048 = arith.constant 2048 : index
    %88 = vector.load %arg7[%c0_85, %c0_86, %c2048] : memref<1x1x4096xf32, #tpu.memory_space<vmem>>, vector<1x1x1024xf32>
    %89 = vector.shape_cast %88 : vector<1x1x1024xf32> to vector<1x1024xf32>
    %90 = vector.shape_cast %87 : vector<1x1024xf32> to vector<1x1x1024xf32>
    tpu.vector_store %arg7[%c0_85, %c0_86, %c2048], %90 {strides = array<i32>} : memref<1x1x4096xf32, #tpu.memory_space<vmem>>, vector<1x1x1024xf32>,
    %c0_87 = arith.constant 0 : index
    %c66 = arith.constant 66 : index
    %91 = vector.load %arg8[%c0_87, %c66] : memref<1x1090xf32, #tpu.memory_space<vmem>>, vector<1x1024xf32>
    %c2_88 = arith.constant 2 : index
    %c0_89 = arith.constant 0 : index
    %92 = vector.load %arg6[%c2_88, %c0_89] : memref<3x1024xf32, #tpu.memory_space<vmem>>, vector<1x1024xf32>
    %93 = arith.mulf %91, %92 : vector<1x1024xf32>
    %c0_90 = arith.constant 0 : index
    %c0_91 = arith.constant 0 : index
    %94 = vector.load %arg9[%c0_90, %c0_91] : memref<4x1024xf32, #tpu.memory_space<vmem>>, vector<1x1024xf32>
    tpu.vector_store %arg9[%c0_90, %c0_91], %93 {strides = array<i32>} : memref<4x1024xf32, #tpu.memory_space<vmem>>, vector<1x1024xf32>,
    %c0_92 = arith.constant 0 : index
    %c65_93 = arith.constant 65 : index
    %95 = vector.load %arg8[%c0_92, %c65_93] : memref<1x1090xf32, #tpu.memory_space<vmem>>, vector<1x1024xf32>
    %c1_94 = arith.constant 1 : index
    %c0_95 = arith.constant 0 : index
    %96 = vector.load %arg9[%c1_94, %c0_95] : memref<4x1024xf32, #tpu.memory_space<vmem>>, vector<1x1024xf32>
    tpu.vector_store %arg9[%c1_94, %c0_95], %95 {strides = array<i32>} : memref<4x1024xf32, #tpu.memory_space<vmem>>, vector<1x1024xf32>,
    %c0_96 = arith.constant 0 : index
    %c34_97 = arith.constant 34 : index
    %97 = vector.load %arg8[%c0_96, %c34_97] : memref<1x1090xf32, #tpu.memory_space<vmem>>, vector<1x1024xf32>
    %c2_98 = arith.constant 2 : index
    %c0_99 = arith.constant 0 : index
    %98 = vector.load %arg6[%c2_98, %c0_99] : memref<3x1024xf32, #tpu.memory_space<vmem>>, vector<1x1024xf32>
    %99 = arith.mulf %97, %98 : vector<1x1024xf32>
    %c2_100 = arith.constant 2 : index
    %c0_101 = arith.constant 0 : index
    %100 = vector.load %arg9[%c2_100, %c0_101] : memref<4x1024xf32, #tpu.memory_space<vmem>>, vector<1x1024xf32>
    tpu.vector_store %arg9[%c2_100, %c0_101], %99 {strides = array<i32>} : memref<4x1024xf32, #tpu.memory_space<vmem>>, vector<1x1024xf32>,
    %c0_102 = arith.constant 0 : index
    %c33_103 = arith.constant 33 : index
    %101 = vector.load %arg8[%c0_102, %c33_103] : memref<1x1090xf32, #tpu.memory_space<vmem>>, vector<1x1024xf32>
    %c3_104 = arith.constant 3 : index
    %c0_105 = arith.constant 0 : index
    %102 = vector.load %arg9[%c3_104, %c0_105] : memref<4x1024xf32, #tpu.memory_space<vmem>>, vector<1x1024xf32>
    tpu.vector_store %arg9[%c3_104, %c0_105], %101 {strides = array<i32>} : memref<4x1024xf32, #tpu.memory_space<vmem>>, vector<1x1024xf32>,
    %c3_106 = arith.constant 3 : index
    %c0_107 = arith.constant 0 : index
    %c0_108 = arith.constant 0 : index
    %103 = vector.load %arg4[%c3_106, %c0_107, %c0_108] : memref<4x4x1xf32, #tpu.memory_space<vmem>>, vector<1x4x1xf32>
    %104 = vector.shape_cast %103 : vector<1x4x1xf32> to vector<4x1xf32>
    %c0_109 = arith.constant 0 : index
    %c0_110 = arith.constant 0 : index
    %105 = vector.load %arg9[%c0_109, %c0_110] : memref<4x1024xf32, #tpu.memory_space<vmem>>, vector<4x1024xf32>
    %106 = vector.broadcast %104 : vector<4x1xf32> to vector<4x1024xf32>
    %107 = arith.mulf %106, %105 : vector<4x1024xf32>
    %cst_111 = arith.constant dense<0.000000e+00> : vector<1024xf32>
    %108 = vector.multi_reduction <add>, %107, %cst_111 [0] : vector<4x1024xf32> to vector<1024xf32>
    %109 = vector.shape_cast %108 : vector<1024xf32> to vector<1x1024xf32>
    %110 = vector.broadcast %18 : vector<1x1xf32> to vector<1x1024xf32>
    %111 = arith.addf %109, %110 : vector<1x1024xf32>
    %c0_112 = arith.constant 0 : index
    %c0_113 = arith.constant 0 : index
    %c3072 = arith.constant 3072 : index
    %112 = vector.load %arg7[%c0_112, %c0_113, %c3072] : memref<1x1x4096xf32, #tpu.memory_space<vmem>>, vector<1x1x1024xf32>
    %113 = vector.shape_cast %112 : vector<1x1x1024xf32> to vector<1x1024xf32>
    %114 = vector.shape_cast %111 : vector<1x1024xf32> to vector<1x1x1024xf32>
    tpu.vector_store %arg7[%c0_112, %c0_113, %c3072], %114 {strides = array<i32>} : memref<1x1x4096xf32, #tpu.memory_space<vmem>>, vector<1x1x1024xf32>,
    return
  }
  func.func @transform_0(%arg0: i32) -> (i32, i32, i32) {
    %c0_i32 = arith.constant 0 : i32
    %c0_i32_0 = arith.constant 0 : i32
    %c0_i32_1 = arith.constant 0 : i32
    return %arg0, %c0_i32, %c0_i32_0 : i32, i32, i32
  }
  func.func @transform_1(%arg0: i32) -> (i32, i32) {
    %c0_i32 = arith.constant 0 : i32
    %c0_i32_0 = arith.constant 0 : i32
    %c0_i32_1 = arith.constant 0 : i32
    return %c0_i32, %c0_i32_0 : i32, i32
  }
  func.func @transform_2(%arg0: i32) -> (i32, i32) {
    %c0_i32 = arith.constant 0 : i32
    %c0_i32_0 = arith.constant 0 : i32
    %c0_i32_1 = arith.constant 0 : i32
    return %c0_i32, %c0_i32_0 : i32, i32
  }
  func.func @transform_3(%arg0: i32) -> (i32, i32, i32) {
    %c0_i32 = arith.constant 0 : i32
    %c0_i32_0 = arith.constant 0 : i32
    %c0_i32_1 = arith.constant 0 : i32
    %c0_i32_2 = arith.constant 0 : i32
    return %c0_i32, %c0_i32_0, %c0_i32_1 : i32, i32, i32
  }
  func.func @transform_4(%arg0: i32) -> (i32, i32) {
    %c0_i32 = arith.constant 0 : i32
    %c0_i32_0 = arith.constant 0 : i32
    %c0_i32_1 = arith.constant 0 : i32
    return %c0_i32, %c0_i32_0 : i32, i32
  }
  func.func @transform_5(%arg0: i32) -> (i32, i32) {
    %c0_i32 = arith.constant 0 : i32
    %c0_i32_0 = arith.constant 0 : i32
    %c0_i32_1 = arith.constant 0 : i32
    return %c0_i32, %c0_i32_0 : i32, i32
  }
  func.func @transform_6(%arg0: i32) -> (i32, i32, i32) {
    %c0_i32 = arith.constant 0 : i32
    %c0_i32_0 = arith.constant 0 : i32
    %c0_i32_1 = arith.constant 0 : i32
    return %arg0, %c0_i32, %c0_i32_0 : i32, i32, i32
  }
}

</mosaic_0001>

<llo_original>
// kernel: _lambda_.3
$region0: #{_lambda_.3}
  #allocation0 [shape = 'u32[]', space=smem, size = 0x4, offset = 0x4, fixed_abs, tag = 'smem constant byte address 0x4 - core index']
  #allocation1 [shape = 'u32[144,128]{1,0:T(1,128)}', space=vmem, size = 0x12000, scoped, tag = 'internal scratch']
  #allocation2 [shape = 'f32[1,1090]{1,0:T(1,128)}', space=vmem, size = 0x1200, scoped, tag = 'scratch operand']
  #allocation3 [shape = 'f32[4,1024]{1,0:T(4,128)}', space=vmem, size = 0x4000, scoped, tag = 'scratch operand']
  #allocation4 [shape = 'f32[1,1]{1,0:T(1,128)S(1)}', space=vmem, size = 0x200, scoped, tag = 'scoped memory for _lambda_.3']
  #allocation5 [shape = 'f32[1,1]{1,0:T(1,128)S(1)}', space=vmem, size = 0x200, scoped, tag = 'scoped memory for _lambda_.3']
  %s0 = inlined_call_operand.vmem [shape: f32[2,32,1090], index: 0, kind: input, shape index: {}]
  %s1 = inlined_call_operand.vmem [shape: f32[1,32], index: 1, kind: input, shape index: {}]
  %s2 = inlined_call_operand.<no memory space> [shape: f32[1,1], index: 2, kind: input, shape index: {}]
  %s3 = inlined_call_operand.vmem [shape: f32[4,4,1], index: 3, kind: input, shape index: {}]
  %s4 = inlined_call_operand.<no memory space> [shape: f32[1,1], index: 4, kind: input, shape index: {}]
  %s5 = inlined_call_operand.vmem [shape: f32[3,1024], index: 5, kind: input, shape index: {}]
  %s6 = inlined_call_operand.vmem [shape: f32[2,1,4096], index: 6, kind: output, shape index: {}]
  %s7 = sld [smem:[#allocation0]]
  $region57: #{_lambda_.3} parent=0
    _
  %s9 = ssub.s32 1, %s7
  %s10 = scalar_select 0, %s9, %s7
  %v11 = vstv %s2
  %12 = vst [vmem:[#allocation4] sm:$0x1] %v11
  %v13 = vstv %s4
  %14 = vst [vmem:[#allocation5] sm:$0x1] %v13
  loop: start=0, step=1, limit=4
  $region2: #{_lambda_.3} parent=0 // loop_pre_header
    _
  $region3: #{_lambda_.3} parent=0 // loop_header
    %s16 = sphi 0, %s20
    %p17 = scmp.ge.s32.totalorder %s16, 4
    %s26 = sphi 0, %s28
    %s29 = sphi 0, %s26
    %s30 = sphi 0, %s29
    %s46 = sphi 0, %s30
    %s50 = sphi 0, %s50
    %s52 = sphi 0, %s50
    %s53 = sphi 0, %s52
    %s67 = sphi 0, %s53
    %s71 = sphi 0, %s71
    %s73 = sphi 0, %s71
    %s74 = sphi 0, %s73
    %s88 = sphi 0, %s74
    %s92 = sphi 0, %s92
    %s94 = sphi 0, %s92
    %s95 = sphi 0, %s94
    %s109 = sphi 0, %s95
    %s113 = sphi 0, %s113
    %s115 = sphi 0, %s113
    %s116 = sphi 0, %s115
    %s130 = sphi 0, %s116
    %s134 = sphi 0, %s134
    %s136 = sphi 0, %s134
    %s137 = sphi 0, %s136
    %s151 = sphi 0, %s137
    %s157 = sphi 0, %s159
    %s160 = sphi 0, %s157
    %s161 = sphi 0, %s160
    %s177 = sphi 0, %s161
  $region4: #{_lambda_.3} parent=0 // loop_header_branch
    %19 = sbr.rel (%p17) target = $region8
  $region5: #{_lambda_.3} parent=0 // loop_body
    %s21 = ssub.s32 %s16, 1
    %s22 = ssub.s32 %s16, 2
    %s23 = sadd.s32 %s16, 1
    %s24 = ssub.s32 %s16, %s23
    %p25 = scmp.eq.s32.totalorder %s24, 0
    %s27 = sadd.s32 %s26, 1
    %s28 = scalar_select %p25, %s26, %s27
    %p31 = pneg %p25
    %p32 = scmp.eq.s32.totalorder %s16, 1
    %p33 = por %p31, %p32
    %p34 = scmp.ne.s32.totalorder %s26, %s29
    %p35 = scmp.eq.s32.totalorder %s16, 0
    %p36 = por %p34, %p35
    %p37 = scmp.ne.s32.totalorder %s26, %s29
    %p38 = scmp.eq.s32.totalorder %s21, 1
    %p39 = por %p37, %p38
    %p40 = scmp.ne.s32.totalorder %s29, %s30
    %p41 = scmp.eq.s32.totalorder %s21, 0
    %p42 = por %p40, %p41
    %p43 = scmp.ne.s32.totalorder %s29, %s30
    %p44 = scmp.eq.s32.totalorder %s22, 1
    %p45 = por %p43, %p44
    %p47 = scmp.ne.s32.totalorder %s30, %s46
    %p48 = scmp.eq.s32.totalorder %s22, 0
    %p49 = por %p47, %p48
    %s51 = sadd.s32 %s50, 1
    %p54 = scmp.eq.s32.totalorder %s16, 1
    %p55 = scmp.ne.s32.totalorder %s50, %s52
    %p56 = scmp.eq.s32.totalorder %s16, 0
    %p57 = por %p55, %p56
    %p58 = scmp.ne.s32.totalorder %s50, %s52
    %p59 = scmp.eq.s32.totalorder %s21, 1
    %p60 = por %p58, %p59
    %p61 = scmp.ne.s32.totalorder %s52, %s53
    %p62 = scmp.eq.s32.totalorder %s21, 0
    %p63 = por %p61, %p62
    %p64 = scmp.ne.s32.totalorder %s52, %s53
    %p65 = scmp.eq.s32.totalorder %s22, 1
    %p66 = por %p64, %p65
    %p68 = scmp.ne.s32.totalorder %s53, %s67
    %p69 = scmp.eq.s32.totalorder %s22, 0
    %p70 = por %p68, %p69
    %s72 = sadd.s32 %s71, 1
    %p75 = scmp.eq.s32.totalorder %s16, 1
    %p76 = scmp.ne.s32.totalorder %s71, %s73
    %p77 = scmp.eq.s32.totalorder %s16, 0
    %p78 = por %p76, %p77
    %p79 = scmp.ne.s32.totalorder %s71, %s73
    %p80 = scmp.eq.s32.totalorder %s21, 1
    %p81 = por %p79, %p80
    %p82 = scmp.ne.s32.totalorder %s73, %s74
    %p83 = scmp.eq.s32.totalorder %s21, 0
    %p84 = por %p82, %p83
    %p85 = scmp.ne.s32.totalorder %s73, %s74
    %p86 = scmp.eq.s32.totalorder %s22, 1
    %p87 = por %p85, %p86
    %p89 = scmp.ne.s32.totalorder %s74, %s88
    %p90 = scmp.eq.s32.totalorder %s22, 0
    %p91 = por %p89, %p90
    %s93 = sadd.s32 %s92, 1
    %p96 = scmp.eq.s32.totalorder %s16, 1
    %p97 = scmp.ne.s32.totalorder %s92, %s94
    %p98 = scmp.eq.s32.totalorder %s16, 0
    %p99 = por %p97, %p98
    %p100 = scmp.ne.s32.totalorder %s92, %s94
    %p101 = scmp.eq.s32.totalorder %s21, 1
    %p102 = por %p100, %p101
    %p103 = scmp.ne.s32.totalorder %s94, %s95
    %p104 = scmp.eq.s32.totalorder %s21, 0
    %p105 = por %p103, %p104
    %p106 = scmp.ne.s32.totalorder %s94, %s95
    %p107 = scmp.eq.s32.totalorder %s22, 1
    %p108 = por %p106, %p107
    %p110 = scmp.ne.s32.totalorder %s95, %s109
    %p111 = scmp.eq.s32.totalorder %s22, 0
    %p112 = por %p110, %p111
    %s114 = sadd.s32 %s113, 1
    %p117 = scmp.eq.s32.totalorder %s16, 1
    %p118 = scmp.ne.s32.totalorder %s113, %s115
    %p119 = scmp.eq.s32.totalorder %s16, 0
    %p120 = por %p118, %p119
    %p121 = scmp.ne.s32.totalorder %s113, %s115
    %p122 = scmp.eq.s32.totalorder %s21, 1
    %p123 = por %p121, %p122
    %p124 = scmp.ne.s32.totalorder %s115, %s116
    %p125 = scmp.eq.s32.totalorder %s21, 0
    %p126 = por %p124, %p125
    %p127 = scmp.ne.s32.totalorder %s115, %s116
    %p128 = scmp.eq.s32.totalorder %s22, 1
    %p129 = por %p127, %p128
    %p131 = scmp.ne.s32.totalorder %s116, %s130
    %p132 = scmp.eq.s32.totalorder %s22, 0
    %p133 = por %p131, %p132
    %s135 = sadd.s32 %s134, 1
    %p138 = scmp.eq.s32.totalorder %s16, 1
    %p139 = scmp.ne.s32.totalorder %s134, %s136
    %p140 = scmp.eq.s32.totalorder %s16, 0
    %p141 = por %p139, %p140
    %p142 = scmp.ne.s32.totalorder %s134, %s136
    %p143 = scmp.eq.s32.totalorder %s21, 1
    %p144 = por %p142, %p143
    %p145 = scmp.ne.s32.totalorder %s136, %s137
    %p146 = scmp.eq.s32.totalorder %s21, 0
    %p147 = por %p145, %p146
    %p148 = scmp.ne.s32.totalorder %s136, %s137
    %p149 = scmp.eq.s32.totalorder %s22, 1
    %p150 = por %p148, %p149
    %p152 = scmp.ne.s32.totalorder %s137, %s151
    %p153 = scmp.eq.s32.totalorder %s22, 0
    %p154 = por %p152, %p153
    %s155 = ssub.s32 %s16, %s23
    %p156 = scmp.eq.s32.totalorder %s155, 0
    %s158 = sadd.s32 %s157, 1
    %s159 = scalar_select %p156, %s157, %s158
    %p162 = pneg %p156
    %p163 = scmp.eq.s32.totalorder %s16, 1
    %p164 = por %p162, %p163
    %p165 = scmp.ne.s32.totalorder %s157, %s160
    %p166 = scmp.eq.s32.totalorder %s16, 0
    %p167 = por %p165, %p166
    %p168 = scmp.ne.s32.totalorder %s157, %s160
    %p169 = scmp.eq.s32.totalorder %s21, 1
    %p170 = por %p168, %p169
    %p171 = scmp.ne.s32.totalorder %s160, %s161
    %p172 = scmp.eq.s32.totalorder %s21, 0
    %p173 = por %p171, %p172
    %p174 = scmp.ne.s32.totalorder %s160, %s161
    %p175 = scmp.eq.s32.totalorder %s22, 1
    %p176 = por %p174, %p175
    %p178 = scmp.ne.s32.totalorder %s161, %s177
    %p179 = scmp.eq.s32.totalorder %s22, 0
    %p180 = por %p178, %p179
    %p181 = scmp.le.s32.totalorder 1, %s16
    %p182 = scmp.lt.s32.totalorder %s16, 3
    %p183 = pnand %p181, %p182
    %p184 = pneg %p183
    // Predicated region
    $region9: #{_lambda_.3} parent=5 // pred_check
      _
    $region10: #{_lambda_.3} parent=5 // pred_check_branch
      %186 = sbr.rel (%p183) target = $region12
    $region11: #{_lambda_.3} parent=5 // pred_region
      %s187 = ssub.s32 %s16, 1
      // Predicated region
      $region13: #{_lambda_.3} parent=11 // pred_check
        %p188 = pneg %p63
      $region14: #{_lambda_.3} parent=11 // pred_check_branch
        %190 = sbr.rel (%p188) target = $region16
      $region15: #{_lambda_.3} parent=11 // pred_region
        _
      $region16: #{_lambda_.3} parent=11 // pred_fallthru
        _
      // Predicated region
      $region17: #{_lambda_.3} parent=11 // pred_check
        %p191 = pneg %p84
      $region18: #{_lambda_.3} parent=11 // pred_check_branch
        %193 = sbr.rel (%p191) target = $region20
      $region19: #{_lambda_.3} parent=11 // pred_region
        _
      $region20: #{_lambda_.3} parent=11 // pred_fallthru
        _
      // Predicated region
      $region21: #{_lambda_.3} parent=11 // pred_check
        %p194 = pneg %p105
      $region22: #{_lambda_.3} parent=11 // pred_check_branch
        %196 = sbr.rel (%p194) target = $region24
      $region23: #{_lambda_.3} parent=11 // pred_region
        _
      $region24: #{_lambda_.3} parent=11 // pred_fallthru
        _
      // Predicated region
      $region25: #{_lambda_.3} parent=11 // pred_check
        %p197 = pneg %p126
      $region26: #{_lambda_.3} parent=11 // pred_check_branch
        %199 = sbr.rel (%p197) target = $region28
      $region27: #{_lambda_.3} parent=11 // pred_region
        _
      $region28: #{_lambda_.3} parent=11 // pred_fallthru
        _
      // Predicated region
      $region29: #{_lambda_.3} parent=11 // pred_check
        %p200 = pneg %p147
      $region30: #{_lambda_.3} parent=11 // pred_check_branch
        %202 = sbr.rel (%p200) target = $region32
      $region31: #{_lambda_.3} parent=11 // pred_region
        _
      $region32: #{_lambda_.3} parent=11 // pred_fallthru
        _
    $region12: #{_lambda_.3} parent=5 // pred_fallthru
      _
    %p203 = scmp.lt.s32.totalorder %s16, 2
    // Predicated region
    $region33: #{_lambda_.3} parent=5 // pred_check
      %p204 = pneg %p203
    $region34: #{_lambda_.3} parent=5 // pred_check_branch
      %206 = sbr.rel (%p204) target = $region36
    $region35: #{_lambda_.3} parent=5 // pred_region
      // Predicated region
      $region37: #{_lambda_.3} parent=35 // pred_check
        %p207 = pneg %p36
      $region38: #{_lambda_.3} parent=35 // pred_check_branch
        %209 = sbr.rel (%p207) target = $region40
      $region39: #{_lambda_.3} parent=35 // pred_region
        %p210 = scmp.lt.s32.totalorder %s16, 1
        %s211 = scalar_select %p210, %s16, 1
        %s212 = smul.addr %s211, 36
        %s213 = smul.addr %s212, 8
        %s214 = scalar_lea.vmem %s0, %s213
      $region40: #{_lambda_.3} parent=35 // pred_fallthru
        _
    $region36: #{_lambda_.3} parent=5 // pred_fallthru
      _
    %p215 = scmp.le.s32.totalorder 1, %s16
    %p216 = scmp.lt.s32.totalorder %s16, 3
    %p217 = pnand %p215, %p216
    %p218 = pneg %p217
    // Predicated region
    $region41: #{_lambda_.3} parent=5 // pred_check
      _
    $region42: #{_lambda_.3} parent=5 // pred_check_branch
      %220 = sbr.rel (%p217) target = $region44
    $region43: #{_lambda_.3} parent=5 // pred_region
      %s221 = ssub.s32 %s16, 1
      %p222 = scmp.lt.s32.totalorder %s21, 1
      %s223 = scalar_select %p222, %s21, 1
      %s224 = smul.addr %s223, 36
      %s225 = smul.addr %s224, 8
      %s226 = scalar_lea.vmem %s0, %s225
      %p227 = pneg %p42
      %p228 = pneg %p39
      %p229 = pneg %p63
      %p230 = pneg %p60
      %p231 = pneg %p84
      %p232 = pneg %p81
      %p233 = pneg %p105
      %p234 = pneg %p102
      %p235 = pneg %p126
      %p236 = pneg %p123
      %p237 = pneg %p147
      %p238 = pneg %p144
      %p239 = pneg %p173
      %p240 = pneg %p170
      %p241 = scmp.lt.s32.totalorder %s21, 1
      %s242 = scalar_select %p241, %s21, 1
      %s243 = smul.addr %s242, 32
      %s244 = scalar_lea.vmem %s6, %s243
      %p245 = scmp.lt.s32.totalorder %s21, 1
      %s246 = scalar_select %p245, %s21, 1
      %s247 = smul.addr %s246, 36
      %s248 = smul.addr %s247, 8
      %s249 = scalar_lea.vmem %s0, %s248
      %p250 = scmp.lt.s32.totalorder %s21, 1
      %s251 = scalar_select %p250, %s21, 1
      %s252 = smul.addr %s251, 32
      %s253 = scalar_lea.vmem %s6, %s252
      %v254 = vlaneseq
      %v255 = vand.u32 %v254, 127
      %v256 = vadd.s32 %v255, 128
      %v257 = vadd.s32 %v255, 256
      %v258 = vadd.s32 %v255, 384
      %v259 = vadd.s32 %v255, 512
      %v260 = vadd.s32 %v255, 640
      %v261 = vadd.s32 %v255, 768
      %v262 = vadd.s32 %v255, 896
      %v263 = vadd.s32 %v255, 1024
      %vm264 = vcmp.ge.s32.totalorder %v255, 33
      %vm265 = vcmp.ge.s32.totalorder %v256, 33
      %vm266 = vcmp.ge.s32.totalorder %v257, 33
      %vm267 = vcmp.ge.s32.totalorder %v258, 33
      %vm268 = vcmp.ge.s32.totalorder %v259, 33
      %vm269 = vcmp.ge.s32.totalorder %v260, 33
      %vm270 = vcmp.ge.s32.totalorder %v261, 33
      %vm271 = vcmp.ge.s32.totalorder %v262, 33
      %vm272 = vcmp.ge.s32.totalorder %v263, 33
      %vm273 = vcmp.lt.s32.totalorder %v255, 1057
      %vm274 = vcmp.lt.s32.totalorder %v256, 1057
      %vm275 = vcmp.lt.s32.totalorder %v257, 1057
      %vm276 = vcmp.lt.s32.totalorder %v258, 1057
      %vm277 = vcmp.lt.s32.totalorder %v259, 1057
      %vm278 = vcmp.lt.s32.totalorder %v260, 1057
      %vm279 = vcmp.lt.s32.totalorder %v261, 1057
      %vm280 = vcmp.lt.s32.totalorder %v262, 1057
      %vm281 = vcmp.lt.s32.totalorder %v263, 1057
      %vm282 = vmand %vm264, %vm273
      %vm283 = vmand %vm265, %vm274
      %vm284 = vmand %vm266, %vm275
      %vm285 = vmand %vm267, %vm276
      %vm286 = vmand %vm268, %vm277
      %vm287 = vmand %vm269, %vm278
      %vm288 = vmand %vm270, %vm279
      %vm289 = vmand %vm271, %vm280
      %vm290 = vmand %vm272, %vm281
      %v291 = vsel %vm282, 1, 0
      %v292 = vsel %vm283, 1, 0
      %v293 = vsel %vm284, 1, 0
      %v294 = vsel %vm285, 1, 0
      %v295 = vsel %vm286, 1, 0
      %v296 = vsel %vm287, 1, 0
      %v297 = vsel %vm288, 1, 0
      %v298 = vsel %vm289, 1, 0
      %v299 = vsel %vm290, 1, 0
      %v300 = vcvt.s32.f32 %v291
      %v301 = vcvt.s32.f32 %v292
      %v302 = vcvt.s32.f32 %v293
      %v303 = vcvt.s32.f32 %v294
      %v304 = vcvt.s32.f32 %v295
      %v305 = vcvt.s32.f32 %v296
      %v306 = vcvt.s32.f32 %v297
      %v307 = vcvt.s32.f32 %v298
      %v308 = vcvt.s32.f32 %v299
      %v309 = vld [vmem:[%s1] sm:$0x1]
      %v310 = vld [vmem:[%s249] sm:$0xff]
      %v311 = vld [vmem:[%s249 + $0x8] sm:$0xff]
      %v312 = vld [vmem:[%s249 + $0x10] sm:$0xff]
      %v313 = vld [vmem:[%s249 + $0x18] sm:$0xff]
      %v314 = vld [vmem:[%s249 + $0x20] sm:$0xff]
      %v315 = vld [vmem:[%s249 + $0x28] sm:$0xff]
      %v316 = vld [vmem:[%s249 + $0x30] sm:$0xff]
      %v317 = vld [vmem:[%s249 + $0x38] sm:$0xff]
      %v318 = vld [vmem:[%s249 + $0x40] sm:$0xff]
      %v319 = vld [vmem:[%s249 + $0x48] sm:$0xff]
      %v320 = vld [vmem:[%s249 + $0x50] sm:$0xff]
      %v321 = vld [vmem:[%s249 + $0x58] sm:$0xff]
      %v322 = vld [vmem:[%s249 + $0x60] sm:$0xff]
      %v323 = vld [vmem:[%s249 + $0x68] sm:$0xff]
      %v324 = vld [vmem:[%s249 + $0x70] sm:$0xff]
      %v325 = vld [vmem:[%s249 + $0x78] sm:$0xff]
      %v326 = vld [vmem:[%s249 + $0x80] sm:$0xff]
      %v327 = vld [vmem:[%s249 + $0x88] sm:$0xff]
      %v328 = vld [vmem:[%s249 + $0x90] sm:$0xff]
      %v329 = vld [vmem:[%s249 + $0x98] sm:$0xff]
      %v330 = vld [vmem:[%s249 + $0xa0] sm:$0xff]
      %v331 = vld [vmem:[%s249 + $0xa8] sm:$0xff]
      %v332 = vld [vmem:[%s249 + $0xb0] sm:$0xff]
      %v333 = vld [vmem:[%s249 + $0xb8] sm:$0xff]
      %v334 = vld [vmem:[%s249 + $0xc0] sm:$0xff]
      %v335 = vld [vmem:[%s249 + $0xc8] sm:$0xff]
      %v336 = vld [vmem:[%s249 + $0xd0] sm:$0xff]
      %v337 = vld [vmem:[%s249 + $0xd8] sm:$0xff]
      %v338 = vld [vmem:[%s249 + $0xe0] sm:$0xff]
      %v339 = vld [vmem:[%s249 + $0xe8] sm:$0xff]
      %v340 = vld [vmem:[%s249 + $0xf0] sm:$0xff]
      %v341 = vld [vmem:[%s249 + $0xf8] sm:$0xff]
      %v342 = vld [vmem:[%s249 + $0x100] sm:$0xff]
      %v343 = vld [vmem:[%s249 + $0x108] sm:$0xff]
      %v344 = vld [vmem:[%s249 + $0x110] sm:$0xff]
      %v345 = vld [vmem:[%s249 + $0x118] sm:$0xff]
      %v346 = vld [vmem:[#allocation4] sm:$0x1]
      %348 = vset.pattern.permute.xlu0 0
      %349 = vperm.xlu0 %348, %v346
      %v350 = vpop.permute.xlu0 %349
      %v352 = vlaneseq
      %v353 = vshrl.u32 %v352, 7
      %v354 = vsub.s32 0, %v353
      %v355 = vrot.slane %v350, %v354
      %vm356 = vcmask 261120
      %v358 = vsel %vm356, %v309, 0
      %360 = vmatprep.subr.mxu0 0.0
      %361 = vmatpush1.msra.mxu0 0.0
      %362 = vmatprep.subr.mxu0 0.0
      %363 = vmatpush1.msra.mxu0 0.0
      %364 = vmatprep.subr.mxu0 0.0
      %365 = vmatpush1.msra.mxu0 0.0
      %366 = vmatprep.subr.mxu0 0.0
      %367 = vmatpush1.msra.mxu0 0.0
      %368 = vmatprep.subr.mxu0 0.0
      %369 = vmatpush1.msra.mxu0 0.0
      %370 = vmatprep.subr.mxu0 0.0
      %371 = vmatpush1.msra.mxu0 0.0
      %372 = vmatprep.subr.mxu0 0.0
      %373 = vmatpush1.msra.mxu0 0.0
      %374 = vmatprep.subr.mxu0 0.0
      %375 = vmatpush1.msra.mxu0 0.0
      %376 = vmatprep.subr.mxu0 0.0
      %377 = vmatpush1.msra.mxu0 0.0
      %378 = vmatprep.subr.mxu0 0.0
      %379 = vmatpush1.msra.mxu0 0.0
      %380 = vmatprep.subr.mxu0 0.0
      %381 = vmatpush1.msra.mxu0 0.0
      %382 = vmatprep.subr.mxu0 0.0
      %383 = vmatpush1.msra.mxu0 0.0
      %384 = vmatprep.subr.mxu0 %v338
      %385 = vmatpush1.msra.mxu0 %v337
      %386 = vmatprep.subr.mxu0 %v329
      %387 = vmatpush1.msra.mxu0 %v328
      %388 = vmatprep.subr.mxu0 %v320
      %389 = vmatpush1.msra.mxu0 %v319
      %390 = vmatprep.subr.mxu0 %v311
      %391 = vmatpush1.msra.mxu0 %v310
      %392 = vmatprep.subr.mxu0 0.0
      %393 = vmatpush2.msra.mxu0 0.0
      %394 = vmatprep.subr.mxu0 0.0
      %395 = vmatpush2.msra.mxu0 0.0
      %396 = vmatprep.subr.mxu0 0.0
      %397 = vmatpush2.msra.mxu0 0.0
      %398 = vmatprep.subr.mxu0 0.0
      %399 = vmatpush2.msra.mxu0 0.0
      %400 = vmatprep.subr.mxu0 0.0
      %401 = vmatpush2.msra.mxu0 0.0
      %402 = vmatprep.subr.mxu0 0.0
      %403 = vmatpush2.msra.mxu0 0.0
      %404 = vmatprep.subr.mxu0 0.0
      %405 = vmatpush2.msra.mxu0 0.0
      %406 = vmatprep.subr.mxu0 0.0
      %407 = vmatpush2.msra.mxu0 0.0
      %408 = vmatprep.subr.mxu0 0.0
      %409 = vmatpush2.msra.mxu0 0.0
      %410 = vmatprep.subr.mxu0 0.0
      %411 = vmatpush2.msra.mxu0 0.0
      %412 = vmatprep.subr.mxu0 0.0
      %413 = vmatpush2.msra.mxu0 0.0
      %414 = vmatprep.subr.mxu0 0.0
      %415 = vmatpush2.msra.mxu0 0.0
      %416 = vmatprep.subr.mxu0 0.0
      %417 = vmatpush2.msra.mxu0 0.0
      %418 = vmatprep.subr.mxu0 0.0
      %419 = vmatpush2.msra.mxu0 0.0
      %420 = vmatprep.subr.mxu0 0.0
      %421 = vmatpush2.msra.mxu0 0.0
      %422 = vmatprep.subr.mxu0 0.0
      %423 = vmatpush2.msra.mxu0 0.0
      %424 = vmatprep.mubr.f32.mxu0 0.0
      %425 = vmatmul.mubr.f32.gmra.mxu0 %v358
      %v426 = vpop.f32.mrf.mxu0
      %v427 = vadd.f32 %v355, %v426
      %v428 = vpop.f32.mrf.mxu0
      %v429 = vadd.f32 %v355, %v428
      %430 = vdwg.mxu0
      %431 = vmatprep.subr.mxu0 0.0
      %432 = vmatpush1.msra.mxu0 0.0
      %433 = vmatprep.subr.mxu0 0.0
      %434 = vmatpush1.msra.mxu0 0.0
      %435 = vmatprep.subr.mxu0 0.0
      %436 = vmatpush1.msra.mxu0 0.0
      %437 = vmatprep.subr.mxu0 0.0
      %438 = vmatpush1.msra.mxu0 0.0
      %439 = vmatprep.subr.mxu0 0.0
      %440 = vmatpush1.msra.mxu0 0.0
      %441 = vmatprep.subr.mxu0 0.0
      %442 = vmatpush1.msra.mxu0 0.0
      %443 = vmatprep.subr.mxu0 0.0
      %444 = vmatpush1.msra.mxu0 0.0
      %445 = vmatprep.subr.mxu0 0.0
      %446 = vmatpush1.msra.mxu0 0.0
      %447 = vmatprep.subr.mxu0 0.0
      %448 = vmatpush1.msra.mxu0 0.0
      %449 = vmatprep.subr.mxu0 0.0
      %450 = vmatpush1.msra.mxu0 0.0
      %451 = vmatprep.subr.mxu0 0.0
      %452 = vmatpush1.msra.mxu0 0.0
      %453 = vmatprep.subr.mxu0 0.0
      %454 = vmatpush1.msra.mxu0 0.0
      %455 = vmatprep.subr.mxu0 %v340
      %456 = vmatpush1.msra.mxu0 %v339
      %457 = vmatprep.subr.mxu0 %v331
      %458 = vmatpush1.msra.mxu0 %v330
      %459 = vmatprep.subr.mxu0 %v322
      %460 = vmatpush1.msra.mxu0 %v321
      %461 = vmatprep.subr.mxu0 %v313
      %462 = vmatpush1.msra.mxu0 %v312
      %463 = vmatprep.subr.mxu0 0.0
      %464 = vmatpush2.msra.mxu0 0.0
      %465 = vmatprep.subr.mxu0 0.0
      %466 = vmatpush2.msra.mxu0 0.0
      %467 = vmatprep.subr.mxu0 0.0
      %468 = vmatpush2.msra.mxu0 0.0
      %469 = vmatprep.subr.mxu0 0.0
      %470 = vmatpush2.msra.mxu0 0.0
      %471 = vmatprep.subr.mxu0 0.0
      %472 = vmatpush2.msra.mxu0 0.0
      %473 = vmatprep.subr.mxu0 0.0
      %474 = vmatpush2.msra.mxu0 0.0
      %475 = vmatprep.subr.mxu0 0.0
      %476 = vmatpush2.msra.mxu0 0.0
      %477 = vmatprep.subr.mxu0 0.0
      %478 = vmatpush2.msra.mxu0 0.0
      %479 = vmatprep.subr.mxu0 0.0
      %480 = vmatpush2.msra.mxu0 0.0
      %481 = vmatprep.subr.mxu0 0.0
      %482 = vmatpush2.msra.mxu0 0.0
      %483 = vmatprep.subr.mxu0 0.0
      %484 = vmatpush2.msra.mxu0 0.0
      %485 = vmatprep.subr.mxu0 0.0
      %486 = vmatpush2.msra.mxu0 0.0
      %487 = vmatprep.subr.mxu0 0.0
      %488 = vmatpush2.msra.mxu0 0.0
      %489 = vmatprep.subr.mxu0 0.0
      %490 = vmatpush2.msra.mxu0 0.0
      %491 = vmatprep.subr.mxu0 0.0
      %492 = vmatpush2.msra.mxu0 0.0
      %493 = vmatprep.subr.mxu0 0.0
      %494 = vmatpush2.msra.mxu0 0.0
      %495 = vmatprep.mubr.f32.mxu0 0.0
      %496 = vmatmul.mubr.f32.gmra.mxu0 %v358
      %v497 = vpop.f32.mrf.mxu0
      %v498 = vadd.f32 %v355, %v497
      %v499 = vpop.f32.mrf.mxu0
      %v500 = vadd.f32 %v355, %v499
      %501 = vdwg.mxu0
      %502 = vmatprep.subr.mxu0 0.0
      %503 = vmatpush1.msra.mxu0 0.0
      %504 = vmatprep.subr.mxu0 0.0
      %505 = vmatpush1.msra.mxu0 0.0
      %506 = vmatprep.subr.mxu0 0.0
      %507 = vmatpush1.msra.mxu0 0.0
      %508 = vmatprep.subr.mxu0 0.0
      %509 = vmatpush1.msra.mxu0 0.0
      %510 = vmatprep.subr.mxu0 0.0
      %511 = vmatpush1.msra.mxu0 0.0
      %512 = vmatprep.subr.mxu0 0.0
      %513 = vmatpush1.msra.mxu0 0.0
      %514 = vmatprep.subr.mxu0 0.0
      %515 = vmatpush1.msra.mxu0 0.0
      %516 = vmatprep.subr.mxu0 0.0
      %517 = vmatpush1.msra.mxu0 0.0
      %518 = vmatprep.subr.mxu0 0.0
      %519 = vmatpush1.msra.mxu0 0.0
      %520 = vmatprep.subr.mxu0 0.0
      %521 = vmatpush1.msra.mxu0 0.0
      %522 = vmatprep.subr.mxu0 0.0
      %523 = vmatpush1.msra.mxu0 0.0
      %524 = vmatprep.subr.mxu0 0.0
      %525 = vmatpush1.msra.mxu0 0.0
      %526 = vmatprep.subr.mxu0 %v342
      %527 = vmatpush1.msra.mxu0 %v341
      %528 = vmatprep.subr.mxu0 %v333
      %529 = vmatpush1.msra.mxu0 %v332
      %530 = vmatprep.subr.mxu0 %v324
      %531 = vmatpush1.msra.mxu0 %v323
      %532 = vmatprep.subr.mxu0 %v315
      %533 = vmatpush1.msra.mxu0 %v314
      %534 = vmatprep.subr.mxu0 0.0
      %535 = vmatpush2.msra.mxu0 0.0
      %536 = vmatprep.subr.mxu0 0.0
      %537 = vmatpush2.msra.mxu0 0.0
      %538 = vmatprep.subr.mxu0 0.0
      %539 = vmatpush2.msra.mxu0 0.0
      %540 = vmatprep.subr.mxu0 0.0
      %541 = vmatpush2.msra.mxu0 0.0
      %542 = vmatprep.subr.mxu0 0.0
      %543 = vmatpush2.msra.mxu0 0.0
      %544 = vmatprep.subr.mxu0 0.0
      %545 = vmatpush2.msra.mxu0 0.0
      %546 = vmatprep.subr.mxu0 0.0
      %547 = vmatpush2.msra.mxu0 0.0
      %548 = vmatprep.subr.mxu0 0.0
      %549 = vmatpush2.msra.mxu0 0.0
      %550 = vmatprep.subr.mxu0 0.0
      %551 = vmatpush2.msra.mxu0 0.0
      %552 = vmatprep.subr.mxu0 0.0
      %553 = vmatpush2.msra.mxu0 0.0
      %554 = vmatprep.subr.mxu0 0.0
      %555 = vmatpush2.msra.mxu0 0.0
      %556 = vmatprep.subr.mxu0 0.0
      %557 = vmatpush2.msra.mxu0 0.0
      %558 = vmatprep.subr.mxu0 0.0
      %559 = vmatpush2.msra.mxu0 0.0
      %560 = vmatprep.subr.mxu0 0.0
      %561 = vmatpush2.msra.mxu0 0.0
      %562 = vmatprep.subr.mxu0 0.0
      %563 = vmatpush2.msra.mxu0 0.0
      %564 = vmatprep.subr.mxu0 0.0
      %565 = vmatpush2.msra.mxu0 0.0
      %566 = vmatprep.mubr.f32.mxu0 0.0
      %567 = vmatmul.mubr.f32.gmra.mxu0 %v358
      %v568 = vpop.f32.mrf.mxu0
      %v569 = vadd.f32 %v355, %v568
      %v570 = vpop.f32.mrf.mxu0
      %v571 = vadd.f32 %v355, %v570
      %572 = vdwg.mxu0
      %573 = vmatprep.subr.mxu0 0.0
      %574 = vmatpush1.msra.mxu0 0.0
      %575 = vmatprep.subr.mxu0 0.0
      %576 = vmatpush1.msra.mxu0 0.0
      %577 = vmatprep.subr.mxu0 0.0
      %578 = vmatpush1.msra.mxu0 0.0
      %579 = vmatprep.subr.mxu0 0.0
      %580 = vmatpush1.msra.mxu0 0.0
      %581 = vmatprep.subr.mxu0 0.0
      %582 = vmatpush1.msra.mxu0 0.0
      %583 = vmatprep.subr.mxu0 0.0
      %584 = vmatpush1.msra.mxu0 0.0
      %585 = vmatprep.subr.mxu0 0.0
      %586 = vmatpush1.msra.mxu0 0.0
      %587 = vmatprep.subr.mxu0 0.0
      %588 = vmatpush1.msra.mxu0 0.0
      %589 = vmatprep.subr.mxu0 0.0
      %590 = vmatpush1.msra.mxu0 0.0
      %591 = vmatprep.subr.mxu0 0.0
      %592 = vmatpush1.msra.mxu0 0.0
      %593 = vmatprep.subr.mxu0 0.0
      %594 = vmatpush1.msra.mxu0 0.0
      %595 = vmatprep.subr.mxu0 0.0
      %596 = vmatpush1.msra.mxu0 0.0
      %597 = vmatprep.subr.mxu0 %v344
      %598 = vmatpush1.msra.mxu0 %v343
      %599 = vmatprep.subr.mxu0 %v335
      %600 = vmatpush1.msra.mxu0 %v334
      %601 = vmatprep.subr.mxu0 %v326
      %602 = vmatpush1.msra.mxu0 %v325
      %603 = vmatprep.subr.mxu0 %v317
      %604 = vmatpush1.msra.mxu0 %v316
      %605 = vmatprep.subr.mxu0 0.0
      %606 = vmatpush2.msra.mxu0 0.0
      %607 = vmatprep.subr.mxu0 0.0
      %608 = vmatpush2.msra.mxu0 0.0
      %609 = vmatprep.subr.mxu0 0.0
      %610 = vmatpush2.msra.mxu0 0.0
      %611 = vmatprep.subr.mxu0 0.0
      %612 = vmatpush2.msra.mxu0 0.0
      %613 = vmatprep.subr.mxu0 0.0
      %614 = vmatpush2.msra.mxu0 0.0
      %615 = vmatprep.subr.mxu0 0.0
      %616 = vmatpush2.msra.mxu0 0.0
      %617 = vmatprep.subr.mxu0 0.0
      %618 = vmatpush2.msra.mxu0 0.0
      %619 = vmatprep.subr.mxu0 0.0
      %620 = vmatpush2.msra.mxu0 0.0
      %621 = vmatprep.subr.mxu0 0.0
      %622 = vmatpush2.msra.mxu0 0.0
      %623 = vmatprep.subr.mxu0 0.0
      %624 = vmatpush2.msra.mxu0 0.0
      %625 = vmatprep.subr.mxu0 0.0
      %626 = vmatpush2.msra.mxu0 0.0
      %627 = vmatprep.subr.mxu0 0.0
      %628 = vmatpush2.msra.mxu0 0.0
      %629 = vmatprep.subr.mxu0 0.0
      %630 = vmatpush2.msra.mxu0 0.0
      %631 = vmatprep.subr.mxu0 0.0
      %632 = vmatpush2.msra.mxu0 0.0
      %633 = vmatprep.subr.mxu0 0.0
      %634 = vmatpush2.msra.mxu0 0.0
      %635 = vmatprep.subr.mxu0 0.0
      %636 = vmatpush2.msra.mxu0 0.0
      %637 = vmatprep.mubr.f32.mxu0 0.0
      %638 = vmatmul.mubr.f32.gmra.mxu0 %v358
      %v639 = vpop.f32.mrf.mxu0
      %v640 = vadd.f32 %v355, %v639
      %v641 = vpop.f32.mrf.mxu0
      %v642 = vadd.f32 %v355, %v641
      %643 = vdwg.mxu0
      %644 = vmatprep.subr.mxu0 0.0
      %645 = vmatpush1.msra.mxu0 0.0
      %646 = vmatprep.subr.mxu0 0.0
      %647 = vmatpush1.msra.mxu0 0.0
      %648 = vmatprep.subr.mxu0 0.0
      %649 = vmatpush1.msra.mxu0 0.0
      %650 = vmatprep.subr.mxu0 0.0
      %651 = vmatpush1.msra.mxu0 0.0
      %652 = vmatprep.subr.mxu0 0.0
      %653 = vmatpush1.msra.mxu0 0.0
      %654 = vmatprep.subr.mxu0 0.0
      %655 = vmatpush1.msra.mxu0 0.0
      %656 = vmatprep.subr.mxu0 0.0
      %657 = vmatpush1.msra.mxu0 0.0
      %658 = vmatprep.subr.mxu0 0.0
      %659 = vmatpush1.msra.mxu0 0.0
      %660 = vmatprep.subr.mxu0 0.0
      %661 = vmatpush1.msra.mxu0 0.0
      %662 = vmatprep.subr.mxu0 0.0
      %663 = vmatpush1.msra.mxu0 0.0
      %664 = vmatprep.subr.mxu0 0.0
      %665 = vmatpush1.msra.mxu0 0.0
      %666 = vmatprep.subr.mxu0 0.0
      %667 = vmatpush1.msra.mxu0 0.0
      %668 = vmatprep.subr.mxu0 0.0
      %669 = vmatpush1.msra.mxu0 %v345
      %670 = vmatprep.subr.mxu0 0.0
      %671 = vmatpush1.msra.mxu0 %v336
      %672 = vmatprep.subr.mxu0 0.0
      %673 = vmatpush1.msra.mxu0 %v327
      %674 = vmatprep.subr.mxu0 0.0
      %675 = vmatpush1.msra.mxu0 %v318
      %676 = vmatprep.subr.mxu0 0.0
      %677 = vmatpush2.msra.mxu0 0.0
      %678 = vmatprep.subr.mxu0 0.0
      %679 = vmatpush2.msra.mxu0 0.0
      %680 = vmatprep.subr.mxu0 0.0
      %681 = vmatpush2.msra.mxu0 0.0
      %682 = vmatprep.subr.mxu0 0.0
      %683 = vmatpush2.msra.mxu0 0.0
      %684 = vmatprep.subr.mxu0 0.0
      %685 = vmatpush2.msra.mxu0 0.0
      %686 = vmatprep.subr.mxu0 0.0
      %687 = vmatpush2.msra.mxu0 0.0
      %688 = vmatprep.subr.mxu0 0.0
      %689 = vmatpush2.msra.mxu0 0.0
      %690 = vmatprep.subr.mxu0 0.0
      %691 = vmatpush2.msra.mxu0 0.0
      %692 = vmatprep.subr.mxu0 0.0
      %693 = vmatpush2.msra.mxu0 0.0
      %694 = vmatprep.subr.mxu0 0.0
      %695 = vmatpush2.msra.mxu0 0.0
      %696 = vmatprep.subr.mxu0 0.0
      %697 = vmatpush2.msra.mxu0 0.0
      %698 = vmatprep.subr.mxu0 0.0
      %699 = vmatpush2.msra.mxu0 0.0
      %700 = vmatprep.subr.mxu0 0.0
      %701 = vmatpush2.msra.mxu0 0.0
      %702 = vmatprep.subr.mxu0 0.0
      %703 = vmatpush2.msra.mxu0 0.0
      %704 = vmatprep.subr.mxu0 0.0
      %705 = vmatpush2.msra.mxu0 0.0
      %706 = vmatprep.subr.mxu0 0.0
      %707 = vmatpush2.msra.mxu0 0.0
      %708 = vmatprep.mubr.f32.mxu0 0.0
      %709 = vmatmul.mubr.f32.gmra.mxu0 %v358
      %v710 = vpop.f32.mrf.mxu0
      %v711 = vadd.f32 %v355, %v710
      %v712 = vpop.f32.mrf.mxu0
      %713 = vdwg.mxu0
      %v714 = vtanh.pop %v427
      %v715 = vtanh.pop %v429
      %v716 = vtanh.pop %v498
      %v717 = vtanh.pop %v500
      %v718 = vtanh.pop %v569
      %v719 = vtanh.pop %v571
      %v720 = vtanh.pop %v640
      %v721 = vtanh.pop %v642
      %v722 = vtanh.pop %v711
      %v723 = vmul.f32 %v714, %v300
      %v724 = vmul.f32 %v715, %v301
      %v725 = vmul.f32 %v716, %v302
      %v726 = vmul.f32 %v717, %v303
      %v727 = vmul.f32 %v718, %v304
      %v728 = vmul.f32 %v719, %v305
      %v729 = vmul.f32 %v720, %v306
      %v730 = vmul.f32 %v721, %v307
      %v731 = vmul.f32 %v722, %v308
      %v741 = vcombine.low %v723, %v724
      %v742 = vcombine.low %v725, %v726
      %v743 = vcombine.low %v727, %v728
      %v744 = vcombine.low %v729, %v730
      %v746 = vunpack.c.l.s4 1966171168
      %v747 = vunpack.c.0.s8 %v746
      %v748 = vlaneseq
      %v749 = vshrl.u32 %v748, 7
      %v750 = vsub.s32 %v747, %v749
      %v751 = vrot.slane %v741, %v750
      %v753 = vunpack.c.l.s4 1966171168
      %v754 = vunpack.c.0.s8 %v753
      %v755 = vlaneseq
      %v756 = vshrl.u32 %v755, 7
      %v757 = vsub.s32 %v754, %v756
      %v758 = vrot.slane %v742, %v757
      %v760 = vunpack.c.l.s4 1966171168
      %v761 = vunpack.c.0.s8 %v760
      %v762 = vlaneseq
      %v763 = vshrl.u32 %v762, 7
      %v764 = vsub.s32 %v761, %v763
      %v765 = vrot.slane %v743, %v764
      %v767 = vunpack.c.l.s4 1966171168
      %v768 = vunpack.c.0.s8 %v767
      %v769 = vlaneseq
      %v770 = vshrl.u32 %v769, 7
      %v771 = vsub.s32 %v768, %v770
      %v772 = vrot.slane %v744, %v771
      %v773 = vcombine.low %v751, %v758
      %v774 = vcombine.low %v765, %v772
      %v776 = vunpack.c.l.s4 1966171168
      %v777 = vunpack.c.0.s8 %v776
      %v778 = vlaneseq
      %v779 = vshrl.u32 %v778, 7
      %v780 = vsub.s32 %v777, %v779
      %v781 = vrot.slane %v773, %v780
      %v783 = vunpack.c.l.s4 1966171168
      %v784 = vunpack.c.0.s8 %v783
      %v785 = vlaneseq
      %v786 = vshrl.u32 %v785, 7
      %v787 = vsub.s32 %v784, %v786
      %v788 = vrot.slane %v774, %v787
      %v789 = vcombine.low %v781, %v788
      %v791 = vunpack.c.l.s4 1966171168
      %v792 = vunpack.c.0.s8 %v791
      %v793 = vlaneseq
      %v794 = vshrl.u32 %v793, 7
      %v795 = vsub.s32 %v792, %v794
      %v796 = vrot.slane %v731, %v795
      %v798 = vunpack.c.l.s4 1966171168
      %v799 = vunpack.c.0.s8 %v798
      %v800 = vlaneseq
      %v801 = vshrl.u32 %v800, 7
      %v802 = vsub.s32 %v799, %v801
      %v803 = vrot.slane %v796, %v802
      %806 = vst [vmem:[#allocation2] sm:$0xff] %v789
      %v807 = vlaneseq
      %vm808 = vcmp.ge.s32.totalorder %v807, 0
      %vm809 = vcmp.lt.s32.totalorder %v807, 66
      %vm810 = vmand %vm808, %vm809
      %811 = vst.msk [vmem:[#allocation2 + $0x8] sm:$0x1] %vm810, %v803
      %v812 = vld [vmem:[#allocation5] sm:$0x1]
      %v813 = vld [vmem:[#allocation2] sm:$0xff]
      %v814 = vld [vmem:[#allocation2 + $0x8] sm:$0x1]
      %817 = vrot.lane.b32.xlu0 %v813, 95
      %v818 = vpop.permute.xlu0 %817
      %819 = vrot.lane.b32.xlu0 %v814, 95
      %v820 = vpop.permute.xlu0 %819
      %v821 = vrot.slane %v818, 1
      %v822 = vrot.slane %v820, 1
      %vm823 = vcmask 1046528
      %v824 = vsel %vm823, %v821, %v822
      %vm825 = vcmask 777216
      %v826 = vsel %vm825, %v818, %v824
      %828 = vst [vmem:[#allocation3] ss:$4 sm:$0xff] %v826
      %v829 = vld [vmem:[#allocation2] sm:$0xff]
      %v830 = vld [vmem:[#allocation2 + $0x8] sm:$0x1]
      %v831 = vld [vmem:[%s5] ss:$4 sm:$0xff]
      %833 = vrot.lane.b32.xlu0 %v831, 32
      %v834 = vpop.permute.xlu0 %833
      %v835 = vrot.slane %v834, 7
      %v836 = vsel %vm356, %v835, %v834
      %v839 = vmul.f32 %v829, %v836
      %v840 = vmul.f32 %v830, %v835
      %843 = vrot.lane.b32.xlu0 %v839, 96
      %v844 = vpop.permute.xlu0 %843
      %845 = vrot.lane.b32.xlu0 %v840, 96
      %v846 = vpop.permute.xlu0 %845
      %v847 = vrot.slane %v844, 1
      %v848 = vrot.slane %v846, 1
      %v849 = vsel %vm823, %v847, %v848
      %vm850 = vcmask 785408
      %v851 = vsel %vm850, %v844, %v849
      %s853 = scalar_lea.vmem [#allocation3], 1
      %854 = vst [vmem:[%s853] ss:$4 sm:$0xff] %v851
      %v855 = vld [vmem:[#allocation2] sm:$0xff]
      %v856 = vld [vmem:[#allocation2 + $0x8] sm:$0x1]
      %859 = vrot.lane.b32.xlu0 %v855, 127
      %v860 = vpop.permute.xlu0 %859
      %861 = vrot.lane.b32.xlu0 %v856, 127
      %v862 = vpop.permute.xlu0 %861
      %v863 = vrot.slane %v860, 1
      %v864 = vrot.slane %v862, 1
      %v865 = vsel %vm823, %v863, %v864
      %vm866 = vcmask 1039360
      %v867 = vsel %vm866, %v860, %v865
      %s869 = scalar_lea.vmem [#allocation3], 2
      %870 = vst [vmem:[%s869] ss:$4 sm:$0xff] %v867
      %v871 = vld [vmem:[#allocation2] sm:$0xff]
      %v872 = vld [vmem:[%s5] ss:$4 sm:$0xff]
      %v873 = vmul.f32 %v871, %v872
      %s874 = scalar_lea.vmem [#allocation3], 3
      %875 = vst [vmem:[%s874] ss:$4 sm:$0xff] %v873
      %v876 = vld [vmem:[%s3] sm:$0xf]
      %v877 = vld [vmem:[#allocation3] sm:$0xff]
      %v878 = vld [vmem:[#allocation3 + $0x8] sm:$0xff]
      %v879 = vld [vmem:[#allocation3 + $0x10] sm:$0xff]
      %v880 = vld [vmem:[#allocation3 + $0x18] sm:$0xff]
      %882 = vset.pattern.permute.xlu0 0
      %883 = vperm.xlu0 %882, %v876
      %v884 = vpop.permute.xlu0 %883
      %v890 = vcombine.high %v877, %v877
      %v891 = vcombine.high %v878, %v878
      %v892 = vcombine.high %v879, %v879
      %v893 = vcombine.high %v880, %v880
      %v898 = vmul.f32 %v884, %v877
      %v899 = vmul.f32 %v884, %v890
      %v900 = vmul.f32 %v884, %v878
      %v901 = vmul.f32 %v884, %v891
      %v902 = vmul.f32 %v884, %v879
      %v903 = vmul.f32 %v884, %v892
      %v904 = vmul.f32 %v884, %v880
      %v905 = vmul.f32 %v884, %v893
      %vm906 = vcmask 1043456
      %v907 = vsel %vm906, %v898, 0.0
      %v908 = vrot.slane %v907, 4
      %v909 = vadd.f32 %v907, %v908
      %v910 = vrot.slane %v909, 2
      %v911 = vadd.f32 %v909, %v910
      %v912 = vrot.slane %v911, 1
      %v913 = vadd.f32 %v911, %v912
      %v914 = vsel %vm906, %v899, 0.0
      %v915 = vrot.slane %v914, 4
      %v916 = vadd.f32 %v914, %v915
      %v917 = vrot.slane %v916, 2
      %v918 = vadd.f32 %v916, %v917
      %v919 = vrot.slane %v918, 1
      %v920 = vadd.f32 %v918, %v919
      %v921 = vsel %vm906, %v900, 0.0
      %v922 = vrot.slane %v921, 4
      %v923 = vadd.f32 %v921, %v922
      %v924 = vrot.slane %v923, 2
      %v925 = vadd.f32 %v923, %v924
      %v926 = vrot.slane %v925, 1
      %v927 = vadd.f32 %v925, %v926
      %v928 = vsel %vm906, %v901, 0.0
      %v929 = vrot.slane %v928, 4
      %v930 = vadd.f32 %v928, %v929
      %v931 = vrot.slane %v930, 2
      %v932 = vadd.f32 %v930, %v931
      %v933 = vrot.slane %v932, 1
      %v934 = vadd.f32 %v932, %v933
      %v935 = vsel %vm906, %v902, 0.0
      %v936 = vrot.slane %v935, 4
      %v937 = vadd.f32 %v935, %v936
      %v938 = vrot.slane %v937, 2
      %v939 = vadd.f32 %v937, %v938
      %v940 = vrot.slane %v939, 1
      %v941 = vadd.f32 %v939, %v940
      %v942 = vsel %vm906, %v903, 0.0
      %v943 = vrot.slane %v942, 4
      %v944 = vadd.f32 %v942, %v943
      %v945 = vrot.slane %v944, 2
      %v946 = vadd.f32 %v944, %v945
      %v947 = vrot.slane %v946, 1
      %v948 = vadd.f32 %v946, %v947
      %v949 = vsel %vm906, %v904, 0.0
      %v950 = vrot.slane %v949, 4
      %v951 = vadd.f32 %v949, %v950
      %v952 = vrot.slane %v951, 2
      %v953 = vadd.f32 %v951, %v952
      %v954 = vrot.slane %v953, 1
      %v955 = vadd.f32 %v953, %v954
      %v956 = vsel %vm906, %v905, 0.0
      %v957 = vrot.slane %v956, 4
      %v958 = vadd.f32 %v956, %v957
      %v959 = vrot.slane %v958, 2
      %v960 = vadd.f32 %v958, %v959
      %v961 = vrot.slane %v960, 1
      %v962 = vadd.f32 %v960, %v961
      %964 = vset.pattern.permute.xlu0 0
      %965 = vperm.xlu0 %964, %v812
      %v966 = vpop.permute.xlu0 %965
      %v968 = vlaneseq
      %v969 = vshrl.u32 %v968, 7
      %v970 = vsub.s32 0, %v969
      %v971 = vrot.slane %v966, %v970
      %v972 = vadd.f32 %v913, %v971
      %v973 = vadd.f32 %v920, %v971
      %v974 = vadd.f32 %v927, %v971
      %v975 = vadd.f32 %v934, %v971
      %v976 = vadd.f32 %v941, %v971
      %v977 = vadd.f32 %v948, %v971
      %v978 = vadd.f32 %v955, %v971
      %v979 = vadd.f32 %v962, %v971
      %v988 = vcombine.low %v972, %v973
      %v989 = vcombine.low %v974, %v975
      %v990 = vcombine.low %v976, %v977
      %v991 = vcombine.low %v978, %v979
      %v993 = vunpack.c.l.s4 1966171168
      %v994 = vunpack.c.0.s8 %v993
      %v995 = vlaneseq
      %v996 = vshrl.u32 %v995, 7
      %v997 = vsub.s32 %v994, %v996
      %v998 = vrot.slane %v988, %v997
      %v1000 = vunpack.c.l.s4 1966171168
      %v1001 = vunpack.c.0.s8 %v1000
      %v1002 = vlaneseq
      %v1003 = vshrl.u32 %v1002, 7
      %v1004 = vsub.s32 %v1001, %v1003
      %v1005 = vrot.slane %v989, %v1004
      %v1007 = vunpack.c.l.s4 1966171168
      %v1008 = vunpack.c.0.s8 %v1007
      %v1009 = vlaneseq
      %v1010 = vshrl.u32 %v1009, 7
      %v1011 = vsub.s32 %v1008, %v1010
      %v1012 = vrot.slane %v990, %v1011
      %v1014 = vunpack.c.l.s4 1966171168
      %v1015 = vunpack.c.0.s8 %v1014
      %v1016 = vlaneseq
      %v1017 = vshrl.u32 %v1016, 7
      %v1018 = vsub.s32 %v1015, %v1017
      %v1019 = vrot.slane %v991, %v1018
      %v1020 = vcombine.low %v998, %v1005
      %v1021 = vcombine.low %v1012, %v1019
      %v1023 = vunpack.c.l.s4 1966171168
      %v1024 = vunpack.c.0.s8 %v1023
      %v1025 = vlaneseq
      %v1026 = vshrl.u32 %v1025, 7
      %v1027 = vsub.s32 %v1024, %v1026
      %v1028 = vrot.slane %v1020, %v1027
      %v1030 = vunpack.c.l.s4 1966171168
      %v1031 = vunpack.c.0.s8 %v1030
      %v1032 = vlaneseq
      %v1033 = vshrl.u32 %v1032, 7
      %v1034 = vsub.s32 %v1031, %v1033
      %v1035 = vrot.slane %v1021, %v1034
      %v1036 = vcombine.low %v1028, %v1035
      %1038 = vst [vmem:[%s253] sm:$0xff] %v1036
      %v1039 = vld [vmem:[#allocation2] sm:$0xff]
      %v1040 = vld [vmem:[#allocation2 + $0x8] sm:$0x1]
      %s1041 = scalar_lea.vmem %s5, 2
      %v1042 = vld [vmem:[%s1041] ss:$4 sm:$0xff]
      %1044 = vrot.lane.b32.xlu0 %v1042, 34
      %v1045 = vpop.permute.xlu0 %1044
      %v1046 = vrot.slane %v1045, 7
      %vm1047 = vcmask 277504
      %v1048 = vsel %vm1047, %v1046, %v1045
      %v1051 = vmul.f32 %v1039, %v1048
      %v1052 = vmul.f32 %v1040, %v1046
      %1055 = vrot.lane.b32.xlu0 %v1051, 94
      %v1056 = vpop.permute.xlu0 %1055
      %1057 = vrot.lane.b32.xlu0 %v1052, 94
      %v1058 = vpop.permute.xlu0 %1057
      %v1059 = vrot.slane %v1056, 1
      %v1060 = vrot.slane %v1058, 1
      %v1061 = vsel %vm823, %v1059, %v1060
      %vm1062 = vcmask 769024
      %v1063 = vsel %vm1062, %v1056, %v1061
      %1065 = vst [vmem:[#allocation3] ss:$4 sm:$0xff] %v1063
      %v1066 = vld [vmem:[#allocation2] sm:$0xff]
      %v1067 = vld [vmem:[#allocation2 + $0x8] sm:$0x1]
      %1070 = vrot.lane.b32.xlu0 %v1066, 95
      %v1071 = vpop.permute.xlu0 %1070
      %1072 = vrot.lane.b32.xlu0 %v1067, 95
      %v1073 = vpop.permute.xlu0 %1072
      %v1074 = vrot.slane %v1071, 1
      %v1075 = vrot.slane %v1073, 1
      %v1076 = vsel %vm823, %v1074, %v1075
      %v1077 = vsel %vm825, %v1071, %v1076
      %1079 = vst [vmem:[%s853] ss:$4 sm:$0xff] %v1077
      %v1080 = vld [vmem:[#allocation2] sm:$0xff]
      %v1081 = vld [vmem:[#allocation2 + $0x8] sm:$0x1]
      %v1082 = vld [vmem:[%s1041] ss:$4 sm:$0xff]
      %1084 = vrot.lane.b32.xlu0 %v1082, 2
      %v1085 = vpop.permute.xlu0 %1084
      %v1086 = vrot.slane %v1085, 7
      %vm1087 = vcmask 15360
      %v1088 = vsel %vm1087, %v1086, %v1085
      %v1091 = vmul.f32 %v1080, %v1088
      %v1092 = vmul.f32 %v1081, %v1086
      %1095 = vrot.lane.b32.xlu0 %v1091, 126
      %v1096 = vpop.permute.xlu0 %1095
      %1097 = vrot.lane.b32.xlu0 %v1092, 126
      %v1098 = vpop.permute.xlu0 %1097
      %v1099 = vrot.slane %v1096, 1
      %v1100 = vrot.slane %v1098, 1
      %v1101 = vsel %vm823, %v1099, %v1100
      %vm1102 = vcmask 1031168
      %v1103 = vsel %vm1102, %v1096, %v1101
      %1105 = vst [vmem:[%s869] ss:$4 sm:$0xff] %v1103
      %v1106 = vld [vmem:[#allocation2] sm:$0xff]
      %v1107 = vld [vmem:[#allocation2 + $0x8] sm:$0x1]
      %1110 = vrot.lane.b32.xlu0 %v1106, 127
      %v1111 = vpop.permute.xlu0 %1110
      %1112 = vrot.lane.b32.xlu0 %v1107, 127
      %v1113 = vpop.permute.xlu0 %1112
      %v1114 = vrot.slane %v1111, 1
      %v1115 = vrot.slane %v1113, 1
      %v1116 = vsel %vm823, %v1114, %v1115
      %v1117 = vsel %vm866, %v1111, %v1116
      %1119 = vst [vmem:[%s874] ss:$4 sm:$0xff] %v1117
      %s1120 = scalar_lea.vmem %s3, 4
      %v1121 = vld [vmem:[%s1120] sm:$0xf]
      %v1122 = vld [vmem:[#allocation3] sm:$0xff]
      %v1123 = vld [vmem:[#allocation3 + $0x8] sm:$0xff]
      %v1124 = vld [vmem:[#allocation3 + $0x10] sm:$0xff]
      %v1125 = vld [vmem:[#allocation3 + $0x18] sm:$0xff]
      %1127 = vset.pattern.permute.xlu0 0
      %1128 = vperm.xlu0 %1127, %v1121
      %v1129 = vpop.permute.xlu0 %1128
      %v1135 = vcombine.high %v1122, %v1122
      %v1136 = vcombine.high %v1123, %v1123
      %v1137 = vcombine.high %v1124, %v1124
      %v1138 = vcombine.high %v1125, %v1125
      %v1143 = vmul.f32 %v1129, %v1122
      %v1144 = vmul.f32 %v1129, %v1135
      %v1145 = vmul.f32 %v1129, %v1123
      %v1146 = vmul.f32 %v1129, %v1136
      %v1147 = vmul.f32 %v1129, %v1124
      %v1148 = vmul.f32 %v1129, %v1137
      %v1149 = vmul.f32 %v1129, %v1125
      %v1150 = vmul.f32 %v1129, %v1138
      %v1151 = vsel %vm906, %v1143, 0.0
      %v1152 = vrot.slane %v1151, 4
      %v1153 = vadd.f32 %v1151, %v1152
      %v1154 = vrot.slane %v1153, 2
      %v1155 = vadd.f32 %v1153, %v1154
      %v1156 = vrot.slane %v1155, 1
      %v1157 = vadd.f32 %v1155, %v1156
      %v1158 = vsel %vm906, %v1144, 0.0
      %v1159 = vrot.slane %v1158, 4
      %v1160 = vadd.f32 %v1158, %v1159
      %v1161 = vrot.slane %v1160, 2
      %v1162 = vadd.f32 %v1160, %v1161
      %v1163 = vrot.slane %v1162, 1
      %v1164 = vadd.f32 %v1162, %v1163
      %v1165 = vsel %vm906, %v1145, 0.0
      %v1166 = vrot.slane %v1165, 4
      %v1167 = vadd.f32 %v1165, %v1166
      %v1168 = vrot.slane %v1167, 2
      %v1169 = vadd.f32 %v1167, %v1168
      %v1170 = vrot.slane %v1169, 1
      %v1171 = vadd.f32 %v1169, %v1170
      %v1172 = vsel %vm906, %v1146, 0.0
      %v1173 = vrot.slane %v1172, 4
      %v1174 = vadd.f32 %v1172, %v1173
      %v1175 = vrot.slane %v1174, 2
      %v1176 = vadd.f32 %v1174, %v1175
      %v1177 = vrot.slane %v1176, 1
      %v1178 = vadd.f32 %v1176, %v1177
      %v1179 = vsel %vm906, %v1147, 0.0
      %v1180 = vrot.slane %v1179, 4
      %v1181 = vadd.f32 %v1179, %v1180
      %v1182 = vrot.slane %v1181, 2
      %v1183 = vadd.f32 %v1181, %v1182
      %v1184 = vrot.slane %v1183, 1
      %v1185 = vadd.f32 %v1183, %v1184
      %v1186 = vsel %vm906, %v1148, 0.0
      %v1187 = vrot.slane %v1186, 4
      %v1188 = vadd.f32 %v1186, %v1187
      %v1189 = vrot.slane %v1188, 2
      %v1190 = vadd.f32 %v1188, %v1189
      %v1191 = vrot.slane %v1190, 1
      %v1192 = vadd.f32 %v1190, %v1191
      %v1193 = vsel %vm906, %v1149, 0.0
      %v1194 = vrot.slane %v1193, 4
      %v1195 = vadd.f32 %v1193, %v1194
      %v1196 = vrot.slane %v1195, 2
      %v1197 = vadd.f32 %v1195, %v1196
      %v1198 = vrot.slane %v1197, 1
      %v1199 = vadd.f32 %v1197, %v1198
      %v1200 = vsel %vm906, %v1150, 0.0
      %v1201 = vrot.slane %v1200, 4
      %v1202 = vadd.f32 %v1200, %v1201
      %v1203 = vrot.slane %v1202, 2
      %v1204 = vadd.f32 %v1202, %v1203
      %v1205 = vrot.slane %v1204, 1
      %v1206 = vadd.f32 %v1204, %v1205
      %v1207 = vadd.f32 %v1157, %v971
      %v1208 = vadd.f32 %v1164, %v971
      %v1209 = vadd.f32 %v1171, %v971
      %v1210 = vadd.f32 %v1178, %v971
      %v1211 = vadd.f32 %v1185, %v971
      %v1212 = vadd.f32 %v1192, %v971
      %v1213 = vadd.f32 %v1199, %v971
      %v1214 = vadd.f32 %v1206, %v971
      %v1223 = vcombine.low %v1207, %v1208
      %v1224 = vcombine.low %v1209, %v1210
      %v1225 = vcombine.low %v1211, %v1212
      %v1226 = vcombine.low %v1213, %v1214
      %v1228 = vunpack.c.l.s4 1966171168
      %v1229 = vunpack.c.0.s8 %v1228
      %v1230 = vlaneseq
      %v1231 = vshrl.u32 %v1230, 7
      %v1232 = vsub.s32 %v1229, %v1231
      %v1233 = vrot.slane %v1223, %v1232
      %v1235 = vunpack.c.l.s4 1966171168
      %v1236 = vunpack.c.0.s8 %v1235
      %v1237 = vlaneseq
      %v1238 = vshrl.u32 %v1237, 7
      %v1239 = vsub.s32 %v1236, %v1238
      %v1240 = vrot.slane %v1224, %v1239
      %v1242 = vunpack.c.l.s4 1966171168
      %v1243 = vunpack.c.0.s8 %v1242
      %v1244 = vlaneseq
      %v1245 = vshrl.u32 %v1244, 7
      %v1246 = vsub.s32 %v1243, %v1245
      %v1247 = vrot.slane %v1225, %v1246
      %v1249 = vunpack.c.l.s4 1966171168
      %v1250 = vunpack.c.0.s8 %v1249
      %v1251 = vlaneseq
      %v1252 = vshrl.u32 %v1251, 7
      %v1253 = vsub.s32 %v1250, %v1252
      %v1254 = vrot.slane %v1226, %v1253
      %v1255 = vcombine.low %v1233, %v1240
      %v1256 = vcombine.low %v1247, %v1254
      %v1258 = vunpack.c.l.s4 1966171168
      %v1259 = vunpack.c.0.s8 %v1258
      %v1260 = vlaneseq
      %v1261 = vshrl.u32 %v1260, 7
      %v1262 = vsub.s32 %v1259, %v1261
      %v1263 = vrot.slane %v1255, %v1262
      %v1265 = vunpack.c.l.s4 1966171168
      %v1266 = vunpack.c.0.s8 %v1265
      %v1267 = vlaneseq
      %v1268 = vshrl.u32 %v1267, 7
      %v1269 = vsub.s32 %v1266, %v1268
      %v1270 = vrot.slane %v1256, %v1269
      %v1271 = vcombine.low %v1263, %v1270
      %1273 = vst [vmem:[%s253 + $0x8] sm:$0xff] %v1271
      %v1274 = vld [vmem:[#allocation2] sm:$0xff]
      %v1275 = vld [vmem:[#allocation2 + $0x8] sm:$0x1]
      %1278 = vrot.lane.b32.xlu0 %v1274, 63
      %v1279 = vpop.permute.xlu0 %1278
      %1280 = vrot.lane.b32.xlu0 %v1275, 63
      %v1281 = vpop.permute.xlu0 %1280
      %v1282 = vrot.slane %v1279, 1
      %v1283 = vrot.slane %v1281, 1
      %v1284 = vsel %vm823, %v1282, %v1283
      %vm1285 = vcmask 515072
      %v1286 = vsel %vm1285, %v1279, %v1284
      %1288 = vst [vmem:[#allocation3] ss:$4 sm:$0xff] %v1286
      %v1289 = vld [vmem:[#allocation2] sm:$0xff]
      %v1290 = vld [vmem:[#allocation2 + $0x8] sm:$0x1]
      %v1291 = vld [vmem:[%s5] ss:$4 sm:$0xff]
      %1293 = vrot.lane.b32.xlu0 %v1291, 64
      %v1294 = vpop.permute.xlu0 %1293
      %v1295 = vrot.slane %v1294, 7
      %vm1296 = vcmask 523264
      %v1297 = vsel %vm1296, %v1295, %v1294
      %v1300 = vmul.f32 %v1289, %v1297
      %v1301 = vmul.f32 %v1290, %v1295
      %1304 = vrot.lane.b32.xlu0 %v1300, 64
      %v1305 = vpop.permute.xlu0 %1304
      %1306 = vrot.lane.b32.xlu0 %v1301, 64
      %v1307 = vpop.permute.xlu0 %1306
      %v1308 = vrot.slane %v1305, 1
      %v1309 = vrot.slane %v1307, 1
      %v1310 = vsel %vm823, %v1308, %v1309
      %v1311 = vsel %vm1296, %v1305, %v1310
      %1313 = vst [vmem:[%s853] ss:$4 sm:$0xff] %v1311
      %v1314 = vld [vmem:[#allocation2] sm:$0xff]
      %v1315 = vld [vmem:[#allocation2 + $0x8] sm:$0x1]
      %1318 = vrot.lane.b32.xlu0 %v1314, 95
      %v1319 = vpop.permute.xlu0 %1318
      %1320 = vrot.lane.b32.xlu0 %v1315, 95
      %v1321 = vpop.permute.xlu0 %1320
      %v1322 = vrot.slane %v1319, 1
      %v1323 = vrot.slane %v1321, 1
      %v1324 = vsel %vm823, %v1322, %v1323
      %v1325 = vsel %vm825, %v1319, %v1324
      %1327 = vst [vmem:[%s869] ss:$4 sm:$0xff] %v1325
      %v1328 = vld [vmem:[#allocation2] sm:$0xff]
      %v1329 = vld [vmem:[#allocation2 + $0x8] sm:$0x1]
      %v1330 = vld [vmem:[%s5] ss:$4 sm:$0xff]
      %1332 = vrot.lane.b32.xlu0 %v1330, 32
      %v1333 = vpop.permute.xlu0 %1332
      %v1334 = vrot.slane %v1333, 7
      %v1335 = vsel %vm356, %v1334, %v1333
      %v1338 = vmul.f32 %v1328, %v1335
      %v1339 = vmul.f32 %v1329, %v1334
      %1342 = vrot.lane.b32.xlu0 %v1338, 96
      %v1343 = vpop.permute.xlu0 %1342
      %1344 = vrot.lane.b32.xlu0 %v1339, 96
      %v1345 = vpop.permute.xlu0 %1344
      %v1346 = vrot.slane %v1343, 1
      %v1347 = vrot.slane %v1345, 1
      %v1348 = vsel %vm823, %v1346, %v1347
      %v1349 = vsel %vm850, %v1343, %v1348
      %1351 = vst [vmem:[%s874] ss:$4 sm:$0xff] %v1349
      %s1352 = scalar_lea.vmem %s3, 8
      %v1353 = vld [vmem:[%s1352] sm:$0xf]
      %v1354 = vld [vmem:[#allocation3] sm:$0xff]
      %v1355 = vld [vmem:[#allocation3 + $0x8] sm:$0xff]
      %v1356 = vld [vmem:[#allocation3 + $0x10] sm:$0xff]
      %v1357 = vld [vmem:[#allocation3 + $0x18] sm:$0xff]
      %1359 = vset.pattern.permute.xlu0 0
      %1360 = vperm.xlu0 %1359, %v1353
      %v1361 = vpop.permute.xlu0 %1360
      %v1367 = vcombine.high %v1354, %v1354
      %v1368 = vcombine.high %v1355, %v1355
      %v1369 = vcombine.high %v1356, %v1356
      %v1370 = vcombine.high %v1357, %v1357
      %v1375 = vmul.f32 %v1361, %v1354
      %v1376 = vmul.f32 %v1361, %v1367
      %v1377 = vmul.f32 %v1361, %v1355
      %v1378 = vmul.f32 %v1361, %v1368
      %v1379 = vmul.f32 %v1361, %v1356
      %v1380 = vmul.f32 %v1361, %v1369
      %v1381 = vmul.f32 %v1361, %v1357
      %v1382 = vmul.f32 %v1361, %v1370
      %v1383 = vsel %vm906, %v1375, 0.0
      %v1384 = vrot.slane %v1383, 4
      %v1385 = vadd.f32 %v1383, %v1384
      %v1386 = vrot.slane %v1385, 2
      %v1387 = vadd.f32 %v1385, %v1386
      %v1388 = vrot.slane %v1387, 1
      %v1389 = vadd.f32 %v1387, %v1388
      %v1390 = vsel %vm906, %v1376, 0.0
      %v1391 = vrot.slane %v1390, 4
      %v1392 = vadd.f32 %v1390, %v1391
      %v1393 = vrot.slane %v1392, 2
      %v1394 = vadd.f32 %v1392, %v1393
      %v1395 = vrot.slane %v1394, 1
      %v1396 = vadd.f32 %v1394, %v1395
      %v1397 = vsel %vm906, %v1377, 0.0
      %v1398 = vrot.slane %v1397, 4
      %v1399 = vadd.f32 %v1397, %v1398
      %v1400 = vrot.slane %v1399, 2
      %v1401 = vadd.f32 %v1399, %v1400
      %v1402 = vrot.slane %v1401, 1
      %v1403 = vadd.f32 %v1401, %v1402
      %v1404 = vsel %vm906, %v1378, 0.0
      %v1405 = vrot.slane %v1404, 4
      %v1406 = vadd.f32 %v1404, %v1405
      %v1407 = vrot.slane %v1406, 2
      %v1408 = vadd.f32 %v1406, %v1407
      %v1409 = vrot.slane %v1408, 1
      %v1410 = vadd.f32 %v1408, %v1409
      %v1411 = vsel %vm906, %v1379, 0.0
      %v1412 = vrot.slane %v1411, 4
      %v1413 = vadd.f32 %v1411, %v1412
      %v1414 = vrot.slane %v1413, 2
      %v1415 = vadd.f32 %v1413, %v1414
      %v1416 = vrot.slane %v1415, 1
      %v1417 = vadd.f32 %v1415, %v1416
      %v1418 = vsel %vm906, %v1380, 0.0
      %v1419 = vrot.slane %v1418, 4
      %v1420 = vadd.f32 %v1418, %v1419
      %v1421 = vrot.slane %v1420, 2
      %v1422 = vadd.f32 %v1420, %v1421
      %v1423 = vrot.slane %v1422, 1
      %v1424 = vadd.f32 %v1422, %v1423
      %v1425 = vsel %vm906, %v1381, 0.0
      %v1426 = vrot.slane %v1425, 4
      %v1427 = vadd.f32 %v1425, %v1426
      %v1428 = vrot.slane %v1427, 2
      %v1429 = vadd.f32 %v1427, %v1428
      %v1430 = vrot.slane %v1429, 1
      %v1431 = vadd.f32 %v1429, %v1430
      %v1432 = vsel %vm906, %v1382, 0.0
      %v1433 = vrot.slane %v1432, 4
      %v1434 = vadd.f32 %v1432, %v1433
      %v1435 = vrot.slane %v1434, 2
      %v1436 = vadd.f32 %v1434, %v1435
      %v1437 = vrot.slane %v1436, 1
      %v1438 = vadd.f32 %v1436, %v1437
      %v1439 = vadd.f32 %v1389, %v971
      %v1440 = vadd.f32 %v1396, %v971
      %v1441 = vadd.f32 %v1403, %v971
      %v1442 = vadd.f32 %v1410, %v971
      %v1443 = vadd.f32 %v1417, %v971
      %v1444 = vadd.f32 %v1424, %v971
      %v1445 = vadd.f32 %v1431, %v971
      %v1446 = vadd.f32 %v1438, %v971
      %v1455 = vcombine.low %v1439, %v1440
      %v1456 = vcombine.low %v1441, %v1442
      %v1457 = vcombine.low %v1443, %v1444
      %v1458 = vcombine.low %v1445, %v1446
      %v1460 = vunpack.c.l.s4 1966171168
      %v1461 = vunpack.c.0.s8 %v1460
      %v1462 = vlaneseq
      %v1463 = vshrl.u32 %v1462, 7
      %v1464 = vsub.s32 %v1461, %v1463
      %v1465 = vrot.slane %v1455, %v1464
      %v1467 = vunpack.c.l.s4 1966171168
      %v1468 = vunpack.c.0.s8 %v1467
      %v1469 = vlaneseq
      %v1470 = vshrl.u32 %v1469, 7
      %v1471 = vsub.s32 %v1468, %v1470
      %v1472 = vrot.slane %v1456, %v1471
      %v1474 = vunpack.c.l.s4 1966171168
      %v1475 = vunpack.c.0.s8 %v1474
      %v1476 = vlaneseq
      %v1477 = vshrl.u32 %v1476, 7
      %v1478 = vsub.s32 %v1475, %v1477
      %v1479 = vrot.slane %v1457, %v1478
      %v1481 = vunpack.c.l.s4 1966171168
      %v1482 = vunpack.c.0.s8 %v1481
      %v1483 = vlaneseq
      %v1484 = vshrl.u32 %v1483, 7
      %v1485 = vsub.s32 %v1482, %v1484
      %v1486 = vrot.slane %v1458, %v1485
      %v1487 = vcombine.low %v1465, %v1472
      %v1488 = vcombine.low %v1479, %v1486
      %v1490 = vunpack.c.l.s4 1966171168
      %v1491 = vunpack.c.0.s8 %v1490
      %v1492 = vlaneseq
      %v1493 = vshrl.u32 %v1492, 7
      %v1494 = vsub.s32 %v1491, %v1493
      %v1495 = vrot.slane %v1487, %v1494
      %v1497 = vunpack.c.l.s4 1966171168
      %v1498 = vunpack.c.0.s8 %v1497
      %v1499 = vlaneseq
      %v1500 = vshrl.u32 %v1499, 7
      %v1501 = vsub.s32 %v1498, %v1500
      %v1502 = vrot.slane %v1488, %v1501
      %v1503 = vcombine.low %v1495, %v1502
      %1505 = vst [vmem:[%s253 + $0x10] sm:$0xff] %v1503
      %v1506 = vld [vmem:[#allocation2] sm:$0xff]
      %v1507 = vld [vmem:[#allocation2 + $0x8] sm:$0x1]
      %v1508 = vld [vmem:[%s1041] ss:$4 sm:$0xff]
      %1510 = vrot.lane.b32.xlu0 %v1508, 66
      %v1511 = vpop.permute.xlu0 %1510
      %v1512 = vrot.slane %v1511, 7
      %vm1513 = vcmask 539648
      %v1514 = vsel %vm1513, %v1512, %v1511
      %v1517 = vmul.f32 %v1506, %v1514
      %v1518 = vmul.f32 %v1507, %v1512
      %1521 = vrot.lane.b32.xlu0 %v1517, 62
      %v1522 = vpop.permute.xlu0 %1521
      %1523 = vrot.lane.b32.xlu0 %v1518, 62
      %v1524 = vpop.permute.xlu0 %1523
      %v1525 = vrot.slane %v1522, 1
      %v1526 = vrot.slane %v1524, 1
      %v1527 = vsel %vm823, %v1525, %v1526
      %vm1528 = vcmask 506880
      %v1529 = vsel %vm1528, %v1522, %v1527
      %1531 = vst [vmem:[#allocation3] ss:$4 sm:$0xff] %v1529
      %v1532 = vld [vmem:[#allocation2] sm:$0xff]
      %v1533 = vld [vmem:[#allocation2 + $0x8] sm:$0x1]
      %1536 = vrot.lane.b32.xlu0 %v1532, 63
      %v1537 = vpop.permute.xlu0 %1536
      %1538 = vrot.lane.b32.xlu0 %v1533, 63
      %v1539 = vpop.permute.xlu0 %1538
      %v1540 = vrot.slane %v1537, 1
      %v1541 = vrot.slane %v1539, 1
      %v1542 = vsel %vm823, %v1540, %v1541
      %v1543 = vsel %vm1285, %v1537, %v1542
      %1545 = vst [vmem:[%s853] ss:$4 sm:$0xff] %v1543
      %v1546 = vld [vmem:[#allocation2] sm:$0xff]
      %v1547 = vld [vmem:[#allocation2 + $0x8] sm:$0x1]
      %v1548 = vld [vmem:[%s1041] ss:$4 sm:$0xff]
      %1550 = vrot.lane.b32.xlu0 %v1548, 34
      %v1551 = vpop.permute.xlu0 %1550
      %v1552 = vrot.slane %v1551, 7
      %v1553 = vsel %vm1047, %v1552, %v1551
      %v1556 = vmul.f32 %v1546, %v1553
      %v1557 = vmul.f32 %v1547, %v1552
      %1560 = vrot.lane.b32.xlu0 %v1556, 94
      %v1561 = vpop.permute.xlu0 %1560
      %1562 = vrot.lane.b32.xlu0 %v1557, 94
      %v1563 = vpop.permute.xlu0 %1562
      %v1564 = vrot.slane %v1561, 1
      %v1565 = vrot.slane %v1563, 1
      %v1566 = vsel %vm823, %v1564, %v1565
      %v1567 = vsel %vm1062, %v1561, %v1566
      %1569 = vst [vmem:[%s869] ss:$4 sm:$0xff] %v1567
      %v1570 = vld [vmem:[#allocation2] sm:$0xff]
      %v1571 = vld [vmem:[#allocation2 + $0x8] sm:$0x1]
      %1574 = vrot.lane.b32.xlu0 %v1570, 95
      %v1575 = vpop.permute.xlu0 %1574
      %1576 = vrot.lane.b32.xlu0 %v1571, 95
      %v1577 = vpop.permute.xlu0 %1576
      %v1578 = vrot.slane %v1575, 1
      %v1579 = vrot.slane %v1577, 1
      %v1580 = vsel %vm823, %v1578, %v1579
      %v1581 = vsel %vm825, %v1575, %v1580
      %1583 = vst [vmem:[%s874] ss:$4 sm:$0xff] %v1581
      %s1584 = scalar_lea.vmem %s3, 12
      %v1585 = vld [vmem:[%s1584] sm:$0xf]
      %v1586 = vld [vmem:[#allocation3] sm:$0xff]
      %v1587 = vld [vmem:[#allocation3 + $0x8] sm:$0xff]
      %v1588 = vld [vmem:[#allocation3 + $0x10] sm:$0xff]
      %v1589 = vld [vmem:[#allocation3 + $0x18] sm:$0xff]
      %1591 = vset.pattern.permute.xlu0 0
      %1592 = vperm.xlu0 %1591, %v1585
      %v1593 = vpop.permute.xlu0 %1592
      %v1599 = vcombine.high %v1586, %v1586
      %v1600 = vcombine.high %v1587, %v1587
      %v1601 = vcombine.high %v1588, %v1588
      %v1602 = vcombine.high %v1589, %v1589
      %v1607 = vmul.f32 %v1593, %v1586
      %v1608 = vmul.f32 %v1593, %v1599
      %v1609 = vmul.f32 %v1593, %v1587
      %v1610 = vmul.f32 %v1593, %v1600
      %v1611 = vmul.f32 %v1593, %v1588
      %v1612 = vmul.f32 %v1593, %v1601
      %v1613 = vmul.f32 %v1593, %v1589
      %v1614 = vmul.f32 %v1593, %v1602
      %v1615 = vsel %vm906, %v1607, 0.0
      %v1616 = vrot.slane %v1615, 4
      %v1617 = vadd.f32 %v1615, %v1616
      %v1618 = vrot.slane %v1617, 2
      %v1619 = vadd.f32 %v1617, %v1618
      %v1620 = vrot.slane %v1619, 1
      %v1621 = vadd.f32 %v1619, %v1620
      %v1622 = vsel %vm906, %v1608, 0.0
      %v1623 = vrot.slane %v1622, 4
      %v1624 = vadd.f32 %v1622, %v1623
      %v1625 = vrot.slane %v1624, 2
      %v1626 = vadd.f32 %v1624, %v1625
      %v1627 = vrot.slane %v1626, 1
      %v1628 = vadd.f32 %v1626, %v1627
      %v1629 = vsel %vm906, %v1609, 0.0
      %v1630 = vrot.slane %v1629, 4
      %v1631 = vadd.f32 %v1629, %v1630
      %v1632 = vrot.slane %v1631, 2
      %v1633 = vadd.f32 %v1631, %v1632
      %v1634 = vrot.slane %v1633, 1
      %v1635 = vadd.f32 %v1633, %v1634
      %v1636 = vsel %vm906, %v1610, 0.0
      %v1637 = vrot.slane %v1636, 4
      %v1638 = vadd.f32 %v1636, %v1637
      %v1639 = vrot.slane %v1638, 2
      %v1640 = vadd.f32 %v1638, %v1639
      %v1641 = vrot.slane %v1640, 1
      %v1642 = vadd.f32 %v1640, %v1641
      %v1643 = vsel %vm906, %v1611, 0.0
      %v1644 = vrot.slane %v1643, 4
      %v1645 = vadd.f32 %v1643, %v1644
      %v1646 = vrot.slane %v1645, 2
      %v1647 = vadd.f32 %v1645, %v1646
      %v1648 = vrot.slane %v1647, 1
      %v1649 = vadd.f32 %v1647, %v1648
      %v1650 = vsel %vm906, %v1612, 0.0
      %v1651 = vrot.slane %v1650, 4
      %v1652 = vadd.f32 %v1650, %v1651
      %v1653 = vrot.slane %v1652, 2
      %v1654 = vadd.f32 %v1652, %v1653
      %v1655 = vrot.slane %v1654, 1
      %v1656 = vadd.f32 %v1654, %v1655
      %v1657 = vsel %vm906, %v1613, 0.0
      %v1658 = vrot.slane %v1657, 4
      %v1659 = vadd.f32 %v1657, %v1658
      %v1660 = vrot.slane %v1659, 2
      %v1661 = vadd.f32 %v1659, %v1660
      %v1662 = vrot.slane %v1661, 1
      %v1663 = vadd.f32 %v1661, %v1662
      %v1664 = vsel %vm906, %v1614, 0.0
      %v1665 = vrot.slane %v1664, 4
      %v1666 = vadd.f32 %v1664, %v1665
      %v1667 = vrot.slane %v1666, 2
      %v1668 = vadd.f32 %v1666, %v1667
      %v1669 = vrot.slane %v1668, 1
      %v1670 = vadd.f32 %v1668, %v1669
      %v1671 = vadd.f32 %v1621, %v971
      %v1672 = vadd.f32 %v1628, %v971
      %v1673 = vadd.f32 %v1635, %v971
      %v1674 = vadd.f32 %v1642, %v971
      %v1675 = vadd.f32 %v1649, %v971
      %v1676 = vadd.f32 %v1656, %v971
      %v1677 = vadd.f32 %v1663, %v971
      %v1678 = vadd.f32 %v1670, %v971
      %v1687 = vcombine.low %v1671, %v1672
      %v1688 = vcombine.low %v1673, %v1674
      %v1689 = vcombine.low %v1675, %v1676
      %v1690 = vcombine.low %v1677, %v1678
      %v1692 = vunpack.c.l.s4 1966171168
      %v1693 = vunpack.c.0.s8 %v1692
      %v1694 = vlaneseq
      %v1695 = vshrl.u32 %v1694, 7
      %v1696 = vsub.s32 %v1693, %v1695
      %v1697 = vrot.slane %v1687, %v1696
      %v1699 = vunpack.c.l.s4 1966171168
      %v1700 = vunpack.c.0.s8 %v1699
      %v1701 = vlaneseq
      %v1702 = vshrl.u32 %v1701, 7
      %v1703 = vsub.s32 %v1700, %v1702
      %v1704 = vrot.slane %v1688, %v1703
      %v1706 = vunpack.c.l.s4 1966171168
      %v1707 = vunpack.c.0.s8 %v1706
      %v1708 = vlaneseq
      %v1709 = vshrl.u32 %v1708, 7
      %v1710 = vsub.s32 %v1707, %v1709
      %v1711 = vrot.slane %v1689, %v1710
      %v1713 = vunpack.c.l.s4 1966171168
      %v1714 = vunpack.c.0.s8 %v1713
      %v1715 = vlaneseq
      %v1716 = vshrl.u32 %v1715, 7
      %v1717 = vsub.s32 %v1714, %v1716
      %v1718 = vrot.slane %v1690, %v1717
      %v1719 = vcombine.low %v1697, %v1704
      %v1720 = vcombine.low %v1711, %v1718
      %v1722 = vunpack.c.l.s4 1966171168
      %v1723 = vunpack.c.0.s8 %v1722
      %v1724 = vlaneseq
      %v1725 = vshrl.u32 %v1724, 7
      %v1726 = vsub.s32 %v1723, %v1725
      %v1727 = vrot.slane %v1719, %v1726
      %v1729 = vunpack.c.l.s4 1966171168
      %v1730 = vunpack.c.0.s8 %v1729
      %v1731 = vlaneseq
      %v1732 = vshrl.u32 %v1731, 7
      %v1733 = vsub.s32 %v1730, %v1732
      %v1734 = vrot.slane %v1720, %v1733
      %v1735 = vcombine.low %v1727, %v1734
      %1737 = vst [vmem:[%s253 + $0x18] sm:$0xff] %v1735
      %p1738 = scmp.lt.s32.totalorder %s21, 1
      %s1739 = scalar_select %p1738, %s21, 1
      %s1740 = smul.addr %s1739, 32
      %s1741 = scalar_lea.vmem %s6, %s1740
      // Predicated region
      $region45: #{_lambda_.3} parent=43 // pred_check
        %p1742 = pneg %p170
      $region46: #{_lambda_.3} parent=43 // pred_check_branch
        %1744 = sbr.rel (%p1742) target = $region48
      $region47: #{_lambda_.3} parent=43 // pred_region
        _
      $region48: #{_lambda_.3} parent=43 // pred_fallthru
        _
    $region44: #{_lambda_.3} parent=5 // pred_fallthru
      _
    %p1745 = scmp.le.s32.totalorder 2, %s16
    // Predicated region
    $region49: #{_lambda_.3} parent=5 // pred_check
      %p1746 = pneg %p1745
    $region50: #{_lambda_.3} parent=5 // pred_check_branch
      %1748 = sbr.rel (%p1746) target = $region52
    $region51: #{_lambda_.3} parent=5 // pred_region
      %s1749 = ssub.s32 %s16, 2
      // Predicated region
      $region53: #{_lambda_.3} parent=51 // pred_check
        %p1750 = pneg %p176
      $region54: #{_lambda_.3} parent=51 // pred_check_branch
        %1752 = sbr.rel (%p1750) target = $region56
      $region55: #{_lambda_.3} parent=51 // pred_region
        %p1753 = scmp.lt.s32.totalorder %s22, 1
        %s1754 = scalar_select %p1753, %s22, 1
        %s1755 = smul.addr %s1754, 32
        %s1756 = scalar_lea.vmem %s6, %s1755
      $region56: #{_lambda_.3} parent=51 // pred_fallthru
        _
    $region52: #{_lambda_.3} parent=5 // pred_fallthru
      _
  $region6: #{_lambda_.3} parent=0 // loop_footer
    %s20 = sadd.s32 1, %s16
  $region7: #{_lambda_.3} parent=0 // loop_footer_branch
    %15 = sbr.rel target = $region3
  $region8: #{_lambda_.3} parent=0 // loop_exit
    _

// kernel: _lambda_.2
$region0: #{_lambda_.2}
  #allocation0 [shape = 'u32[]', space=smem, size = 0x4, offset = 0x4, fixed_abs, tag = 'smem constant byte address 0x4 - core index']
  #allocation1 [shape = 'u32[144,128]{1,0:T(1,128)}', space=vmem, size = 0x12000, scoped, tag = 'internal scratch']
  #allocation2 [shape = 'f32[32,290]{1,0:T(8,128)}', space=vmem, size = 0xc000, scoped, tag = 'scratch operand']
  #allocation3 [shape = 'f32[128,256]{1,0:T(8,128)}', space=vmem, size = 0x20000, scoped, tag = 'scratch operand']
  %s0 = inlined_call_operand.vmem [shape: f32[2,4,290], index: 0, kind: input, shape index: {}]
  %s1 = inlined_call_operand.vmem [shape: f32[32,4], index: 1, kind: input, shape index: {}]
  %s2 = inlined_call_operand.vmem [shape: f32[32,1], index: 2, kind: input, shape index: {}]
  %s3 = inlined_call_operand.vmem [shape: f32[4,32,128], index: 3, kind: input, shape index: {}]
  %s4 = inlined_call_operand.vmem [shape: f32[32,1], index: 4, kind: input, shape index: {}]
  %s5 = inlined_call_operand.hbm [shape: f32[3,256], index: 5, kind: input, shape index: {}]
  %s6 = inlined_call_operand.vmem [shape: f32[2,32,1024], index: 6, kind: output, shape index: {}]
  %s7 = sld [smem:[#allocation0]]
  $region61: #{_lambda_.2} parent=0
    _
  %s9 = ssub.s32 1, %s7
  %s10 = scalar_select 0, %s9, %s7
  $region1: #{_lambda_.2} parent=0
    #allocation4 [shape = 'u8[4096]{0}', space=vmem, size = 0x1000, scoped, tag = 'input window, operand 5, single buffered']
    #allocation5 [shape = 's32[2]{0}', space=sflag, size = 0x8, scoped, tag = 'scoped memory for _lambda_.2']
    %11 = vsyncpa [#allocation5], 0
    loop: start=0, step=1, limit=4
    $region2: #{_lambda_.2} parent=1 // loop_pre_header
      _
    $region3: #{_lambda_.2} parent=1 // loop_header
      %s13 = sphi 0, %s17
      %p14 = scmp.ge.s32.totalorder %s13, 4
      %s23 = sphi 0, %s25
      %s26 = sphi 0, %s23
      %s27 = sphi 0, %s26
      %s43 = sphi 0, %s27
      %s47 = sphi 0, %s47
      %s49 = sphi 0, %s47
      %s50 = sphi 0, %s49
      %s64 = sphi 0, %s50
      %s68 = sphi 0, %s68
      %s70 = sphi 0, %s68
      %s71 = sphi 0, %s70
      %s85 = sphi 0, %s71
      %s89 = sphi 0, %s89
      %s91 = sphi 0, %s89
      %s92 = sphi 0, %s91
      %s106 = sphi 0, %s92
      %s110 = sphi 0, %s110
      %s112 = sphi 0, %s110
      %s113 = sphi 0, %s112
      %s127 = sphi 0, %s113
      %s131 = sphi 0, %s131
      %s133 = sphi 0, %s131
      %s134 = sphi 0, %s133
      %s148 = sphi 0, %s134
      %s154 = sphi 0, %s156
      %s157 = sphi 0, %s154
      %s158 = sphi 0, %s157
      %s174 = sphi 0, %s158
    $region4: #{_lambda_.2} parent=1 // loop_header_branch
      %16 = sbr.rel (%p14) target = $region8
    $region5: #{_lambda_.2} parent=1 // loop_body
      %s18 = ssub.s32 %s13, 1
      %s19 = ssub.s32 %s13, 2
      %s20 = sadd.s32 %s13, 1
      %s21 = ssub.s32 %s13, %s20
      %p22 = scmp.eq.s32.totalorder %s21, 0
      %s24 = sadd.s32 %s23, 1
      %s25 = scalar_select %p22, %s23, %s24
      %p28 = pneg %p22
      %p29 = scmp.eq.s32.totalorder %s13, 1
      %p30 = por %p28, %p29
      %p31 = scmp.ne.s32.totalorder %s23, %s26
      %p32 = scmp.eq.s32.totalorder %s13, 0
      %p33 = por %p31, %p32
      %p34 = scmp.ne.s32.totalorder %s23, %s26
      %p35 = scmp.eq.s32.totalorder %s18, 1
      %p36 = por %p34, %p35
      %p37 = scmp.ne.s32.totalorder %s26, %s27
      %p38 = scmp.eq.s32.totalorder %s18, 0
      %p39 = por %p37, %p38
      %p40 = scmp.ne.s32.totalorder %s26, %s27
      %p41 = scmp.eq.s32.totalorder %s19, 1
      %p42 = por %p40, %p41
      %p44 = scmp.ne.s32.totalorder %s27, %s43
      %p45 = scmp.eq.s32.totalorder %s19, 0
      %p46 = por %p44, %p45
      %s48 = sadd.s32 %s47, 1
      %p51 = scmp.eq.s32.totalorder %s13, 1
      %p52 = scmp.ne.s32.totalorder %s47, %s49
      %p53 = scmp.eq.s32.totalorder %s13, 0
      %p54 = por %p52, %p53
      %p55 = scmp.ne.s32.totalorder %s47, %s49
      %p56 = scmp.eq.s32.totalorder %s18, 1
      %p57 = por %p55, %p56
      %p58 = scmp.ne.s32.totalorder %s49, %s50
      %p59 = scmp.eq.s32.totalorder %s18, 0
      %p60 = por %p58, %p59
      %p61 = scmp.ne.s32.totalorder %s49, %s50
      %p62 = scmp.eq.s32.totalorder %s19, 1
      %p63 = por %p61, %p62
      %p65 = scmp.ne.s32.totalorder %s50, %s64
      %p66 = scmp.eq.s32.totalorder %s19, 0
      %p67 = por %p65, %p66
      %s69 = sadd.s32 %s68, 1
      %p72 = scmp.eq.s32.totalorder %s13, 1
      %p73 = scmp.ne.s32.totalorder %s68, %s70
      %p74 = scmp.eq.s32.totalorder %s13, 0
      %p75 = por %p73, %p74
      %p76 = scmp.ne.s32.totalorder %s68, %s70
      %p77 = scmp.eq.s32.totalorder %s18, 1
      %p78 = por %p76, %p77
      %p79 = scmp.ne.s32.totalorder %s70, %s71
      %p80 = scmp.eq.s32.totalorder %s18, 0
      %p81 = por %p79, %p80
      %p82 = scmp.ne.s32.totalorder %s70, %s71
      %p83 = scmp.eq.s32.totalorder %s19, 1
      %p84 = por %p82, %p83
      %p86 = scmp.ne.s32.totalorder %s71, %s85
      %p87 = scmp.eq.s32.totalorder %s19, 0
      %p88 = por %p86, %p87
      %s90 = sadd.s32 %s89, 1
      %p93 = scmp.eq.s32.totalorder %s13, 1
      %p94 = scmp.ne.s32.totalorder %s89, %s91
      %p95 = scmp.eq.s32.totalorder %s13, 0
      %p96 = por %p94, %p95
      %p97 = scmp.ne.s32.totalorder %s89, %s91
      %p98 = scmp.eq.s32.totalorder %s18, 1
      %p99 = por %p97, %p98
      %p100 = scmp.ne.s32.totalorder %s91, %s92
      %p101 = scmp.eq.s32.totalorder %s18, 0
      %p102 = por %p100, %p101
      %p103 = scmp.ne.s32.totalorder %s91, %s92
      %p104 = scmp.eq.s32.totalorder %s19, 1
      %p105 = por %p103, %p104
      %p107 = scmp.ne.s32.totalorder %s92, %s106
      %p108 = scmp.eq.s32.totalorder %s19, 0
      %p109 = por %p107, %p108
      %s111 = sadd.s32 %s110, 1
      %p114 = scmp.eq.s32.totalorder %s13, 1
      %p115 = scmp.ne.s32.totalorder %s110, %s112
      %p116 = scmp.eq.s32.totalorder %s13, 0
      %p117 = por %p115, %p116
      %p118 = scmp.ne.s32.totalorder %s110, %s112
      %p119 = scmp.eq.s32.totalorder %s18, 1
      %p120 = por %p118, %p119
      %p121 = scmp.ne.s32.totalorder %s112, %s113
      %p122 = scmp.eq.s32.totalorder %s18, 0
      %p123 = por %p121, %p122
      %p124 = scmp.ne.s32.totalorder %s112, %s113
      %p125 = scmp.eq.s32.totalorder %s19, 1
      %p126 = por %p124, %p125
      %p128 = scmp.ne.s32.totalorder %s113, %s127
      %p129 = scmp.eq.s32.totalorder %s19, 0
      %p130 = por %p128, %p129
      %s132 = sadd.s32 %s131, 1
      %p135 = scmp.eq.s32.totalorder %s13, 1
      %p136 = scmp.ne.s32.totalorder %s131, %s133
      %p137 = scmp.eq.s32.totalorder %s13, 0
      %p138 = por %p136, %p137
      %p139 = scmp.ne.s32.totalorder %s131, %s133
      %p140 = scmp.eq.s32.totalorder %s18, 1
      %p141 = por %p139, %p140
      %p142 = scmp.ne.s32.totalorder %s133, %s134
      %p143 = scmp.eq.s32.totalorder %s18, 0
      %p144 = por %p142, %p143
      %p145 = scmp.ne.s32.totalorder %s133, %s134
      %p146 = scmp.eq.s32.totalorder %s19, 1
      %p147 = por %p145, %p146
      %p149 = scmp.ne.s32.totalorder %s134, %s148
      %p150 = scmp.eq.s32.totalorder %s19, 0
      %p151 = por %p149, %p150
      %s152 = ssub.s32 %s13, %s20
      %p153 = scmp.eq.s32.totalorder %s152, 0
      %s155 = sadd.s32 %s154, 1
      %s156 = scalar_select %p153, %s154, %s155
      %p159 = pneg %p153
      %p160 = scmp.eq.s32.totalorder %s13, 1
      %p161 = por %p159, %p160
      %p162 = scmp.ne.s32.totalorder %s154, %s157
      %p163 = scmp.eq.s32.totalorder %s13, 0
      %p164 = por %p162, %p163
      %p165 = scmp.ne.s32.totalorder %s154, %s157
      %p166 = scmp.eq.s32.totalorder %s18, 1
      %p167 = por %p165, %p166
      %p168 = scmp.ne.s32.totalorder %s157, %s158
      %p169 = scmp.eq.s32.totalorder %s18, 0
      %p170 = por %p168, %p169
      %p171 = scmp.ne.s32.totalorder %s157, %s158
      %p172 = scmp.eq.s32.totalorder %s19, 1
      %p173 = por %p171, %p172
      %p175 = scmp.ne.s32.totalorder %s158, %s174
      %p176 = scmp.eq.s32.totalorder %s19, 0
      %p177 = por %p175, %p176
      %p178 = scmp.le.s32.totalorder 1, %s13
      %p179 = scmp.lt.s32.totalorder %s13, 3
      %p180 = pnand %p178, %p179
      %p181 = pneg %p180
      // Predicated region
      $region9: #{_lambda_.2} parent=5 // pred_check
        _
      $region10: #{_lambda_.2} parent=5 // pred_check_branch
        %183 = sbr.rel (%p180) target = $region12
      $region11: #{_lambda_.2} parent=5 // pred_region
        %s184 = ssub.s32 %s13, 1
        // Predicated region
        $region13: #{_lambda_.2} parent=11 // pred_check
          %p185 = pneg %p60
        $region14: #{_lambda_.2} parent=11 // pred_check_branch
          %187 = sbr.rel (%p185) target = $region16
        $region15: #{_lambda_.2} parent=11 // pred_region
          _
        $region16: #{_lambda_.2} parent=11 // pred_fallthru
          _
        // Predicated region
        $region17: #{_lambda_.2} parent=11 // pred_check
          %p188 = pneg %p81
        $region18: #{_lambda_.2} parent=11 // pred_check_branch
          %190 = sbr.rel (%p188) target = $region20
        $region19: #{_lambda_.2} parent=11 // pred_region
          _
        $region20: #{_lambda_.2} parent=11 // pred_fallthru
          _
        // Predicated region
        $region21: #{_lambda_.2} parent=11 // pred_check
          %p191 = pneg %p102
        $region22: #{_lambda_.2} parent=11 // pred_check_branch
          %193 = sbr.rel (%p191) target = $region24
        $region23: #{_lambda_.2} parent=11 // pred_region
          _
        $region24: #{_lambda_.2} parent=11 // pred_fallthru
          _
        // Predicated region
        $region25: #{_lambda_.2} parent=11 // pred_check
          %p194 = pneg %p123
        $region26: #{_lambda_.2} parent=11 // pred_check_branch
          %196 = sbr.rel (%p194) target = $region28
        $region27: #{_lambda_.2} parent=11 // pred_region
          _
        $region28: #{_lambda_.2} parent=11 // pred_fallthru
          _
        // Predicated region
        $region29: #{_lambda_.2} parent=11 // pred_check
          %p197 = pneg %p144
        $region30: #{_lambda_.2} parent=11 // pred_check_branch
          %199 = sbr.rel (%p197) target = $region32
        $region31: #{_lambda_.2} parent=11 // pred_region
          %s201 = ssub.s32 128, 128
          %202 = vsyncadd [#allocation5], %s201
          %s204 = sshll.u32 [#allocation4], 4
          %s205 = int_to_ptr.vmem [resolvable:$true] %s204
          %207 = dma.hbm_to_vmem [thread:$0]  %s5, 128, %s205, [#allocation5]
        $region32: #{_lambda_.2} parent=11 // pred_fallthru
          _
      $region12: #{_lambda_.2} parent=5 // pred_fallthru
        _
      %p208 = scmp.lt.s32.totalorder %s13, 2
      // Predicated region
      $region33: #{_lambda_.2} parent=5 // pred_check
        %p209 = pneg %p208
      $region34: #{_lambda_.2} parent=5 // pred_check_branch
        %211 = sbr.rel (%p209) target = $region36
      $region35: #{_lambda_.2} parent=5 // pred_region
        // Predicated region
        $region37: #{_lambda_.2} parent=35 // pred_check
          %p212 = pneg %p33
        $region38: #{_lambda_.2} parent=35 // pred_check_branch
          %214 = sbr.rel (%p212) target = $region40
        $region39: #{_lambda_.2} parent=35 // pred_region
          %p215 = scmp.lt.s32.totalorder %s13, 1
          %s216 = scalar_select %p215, %s13, 1
          %s217 = smul.addr %s216, 3
          %s218 = smul.addr %s217, 4
          %s219 = scalar_lea.vmem %s0, %s218
        $region40: #{_lambda_.2} parent=35 // pred_fallthru
          _
      $region36: #{_lambda_.2} parent=5 // pred_fallthru
        _
      %p220 = scmp.le.s32.totalorder 1, %s13
      %p221 = scmp.lt.s32.totalorder %s13, 3
      %p222 = pnand %p220, %p221
      %p223 = pneg %p222
      // Predicated region
      $region41: #{_lambda_.2} parent=5 // pred_check
        _
      $region42: #{_lambda_.2} parent=5 // pred_check_branch
        %225 = sbr.rel (%p222) target = $region44
      $region43: #{_lambda_.2} parent=5 // pred_region
        %s226 = ssub.s32 %s13, 1
        // Predicated region
        $region45: #{_lambda_.2} parent=43 // pred_check
          %p227 = pneg %p144
        $region46: #{_lambda_.2} parent=43 // pred_check_branch
          %229 = sbr.rel (%p227) target = $region48
        $region47: #{_lambda_.2} parent=43 // pred_region
          %230 = dma.done [#allocation5], 128
        $region48: #{_lambda_.2} parent=43 // pred_fallthru
          _
        %p231 = scmp.lt.s32.totalorder %s18, 1
        %s232 = scalar_select %p231, %s18, 1
        %s233 = smul.addr %s232, 3
        %s234 = smul.addr %s233, 4
        %s235 = scalar_lea.vmem %s0, %s234
        %p236 = pneg %p39
        %p237 = pneg %p36
        %p238 = pneg %p60
        %p239 = pneg %p57
        %p240 = pneg %p81
        %p241 = pneg %p78
        %p242 = pneg %p102
        %p243 = pneg %p99
        %p244 = pneg %p123
        %p245 = pneg %p120
        %p246 = pneg %p144
        %p247 = pneg %p141
        %p248 = pneg %p170
        %p249 = pneg %p167
        %p250 = scmp.lt.s32.totalorder %s18, 1
        %s251 = scalar_select %p250, %s18, 1
        %s252 = smul.addr %s251, 32
        %s253 = smul.addr %s252, 8
        %s254 = scalar_lea.vmem %s6, %s253
        %p255 = scmp.lt.s32.totalorder %s18, 1
        %s256 = scalar_select %p255, %s18, 1
        %s257 = smul.addr %s256, 3
        %s258 = smul.addr %s257, 4
        %s259 = scalar_lea.vmem %s0, %s258
        %p260 = scmp.lt.s32.totalorder %s18, 1
        %s261 = scalar_select %p260, %s18, 1
        %s262 = smul.addr %s261, 32
        %s263 = smul.addr %s262, 8
        %s264 = scalar_lea.vmem %s6, %s263
        %v265 = vlaneseq
        %v266 = vand.u32 %v265, 127
        %v267 = vadd.s32 %v266, 128
        %v268 = vadd.s32 %v266, 256
        %vm269 = vcmp.ge.s32.totalorder %v266, 17
        %vm270 = vcmp.ge.s32.totalorder %v267, 17
        %vm271 = vcmp.ge.s32.totalorder %v268, 17
        %vm272 = vcmp.lt.s32.totalorder %v266, 273
        %vm273 = vcmp.lt.s32.totalorder %v267, 273
        %vm274 = vcmp.lt.s32.totalorder %v268, 273
        %vm275 = vmand %vm269, %vm272
        %vm276 = vmand %vm270, %vm273
        %vm277 = vmand %vm271, %vm274
        %v278 = vsel %vm275, 1, 0
        %v279 = vsel %vm276, 1, 0
        %v280 = vsel %vm277, 1, 0
        %v281 = vcvt.s32.f32 %v278
        %v282 = vcvt.s32.f32 %v279
        %v283 = vcvt.s32.f32 %v280
        %v284 = vld [vmem:[%s1] sm:$0xff]
        %v285 = vld [vmem:[%s1 + $0x8] sm:$0xff]
        %v286 = vld [vmem:[%s1 + $0x10] sm:$0xff]
        %v287 = vld [vmem:[%s1 + $0x18] sm:$0xff]
        %v288 = vld [vmem:[%s259] sm:$0xff]
        %v289 = vld [vmem:[%s259 + $0x8] sm:$0xf]
        %v290 = vld [vmem:[%s2] sm:$0xff]
        %v291 = vld [vmem:[%s2 + $0x8] sm:$0xff]
        %v292 = vld [vmem:[%s2 + $0x10] sm:$0xff]
        %v293 = vld [vmem:[%s2 + $0x18] sm:$0xff]
        %295 = vset.pattern.permute.xlu0 0
        %296 = vperm.xlu0 %295, %v290
        %v297 = vpop.permute.xlu0 %296
        %300 = vset.pattern.permute.xlu0 0
        %301 = vperm.xlu0 %300, %v291
        %v302 = vpop.permute.xlu0 %301
        %305 = vset.pattern.permute.xlu0 0
        %306 = vperm.xlu0 %305, %v292
        %v307 = vpop.permute.xlu0 %306
        %310 = vset.pattern.permute.xlu0 0
        %311 = vperm.xlu0 %310, %v293
        %v312 = vpop.permute.xlu0 %311
        %v316 = vcombine.high %v288, %v288
        %vm317 = vcmask 31744
        %v319 = vsel %vm317, %v284, 0
        %v322 = vsel %vm317, %v285, 0
        %v325 = vsel %vm317, %v286, 0
        %v328 = vsel %vm317, %v287, 0
        %vm330 = vcmask 1043456
        %v331 = vsel %vm330, %v288, 0
        %v333 = vsel %vm330, %v316, 0
        %v335 = vsel %vm330, %v289, 0
        %337 = vmatprep.subr.mxu0 0.0
        %338 = vmatpush1.msra.mxu0 0.0
        %339 = vmatprep.subr.mxu0 0.0
        %340 = vmatpush1.msra.mxu0 0.0
        %341 = vmatprep.subr.mxu0 0.0
        %342 = vmatpush1.msra.mxu0 0.0
        %343 = vmatprep.subr.mxu0 0.0
        %344 = vmatpush1.msra.mxu0 0.0
        %345 = vmatprep.subr.mxu0 0.0
        %346 = vmatpush1.msra.mxu0 0.0
        %347 = vmatprep.subr.mxu0 0.0
        %348 = vmatpush1.msra.mxu0 0.0
        %349 = vmatprep.subr.mxu0 0.0
        %350 = vmatpush1.msra.mxu0 0.0
        %351 = vmatprep.subr.mxu0 0.0
        %352 = vmatpush1.msra.mxu0 0.0
        %353 = vmatprep.subr.mxu0 0.0
        %354 = vmatpush1.msra.mxu0 0.0
        %355 = vmatprep.subr.mxu0 0.0
        %356 = vmatpush1.msra.mxu0 0.0
        %357 = vmatprep.subr.mxu0 0.0
        %358 = vmatpush1.msra.mxu0 0.0
        %359 = vmatprep.subr.mxu0 0.0
        %360 = vmatpush1.msra.mxu0 0.0
        %361 = vmatprep.subr.mxu0 0.0
        %362 = vmatpush1.msra.mxu0 0.0
        %363 = vmatprep.subr.mxu0 0.0
        %364 = vmatpush1.msra.mxu0 0.0
        %365 = vmatprep.subr.mxu0 0.0
        %366 = vmatpush1.msra.mxu0 0.0
        %367 = vmatprep.subr.mxu0 %v333
        %368 = vmatpush1.msra.mxu0 %v331
        %369 = vmatprep.subr.mxu0 0.0
        %370 = vmatpush2.msra.mxu0 0.0
        %371 = vmatprep.subr.mxu0 0.0
        %372 = vmatpush2.msra.mxu0 0.0
        %373 = vmatprep.subr.mxu0 0.0
        %374 = vmatpush2.msra.mxu0 0.0
        %375 = vmatprep.subr.mxu0 0.0
        %376 = vmatpush2.msra.mxu0 0.0
        %377 = vmatprep.subr.mxu0 0.0
        %378 = vmatpush2.msra.mxu0 0.0
        %379 = vmatprep.subr.mxu0 0.0
        %380 = vmatpush2.msra.mxu0 0.0
        %381 = vmatprep.subr.mxu0 0.0
        %382 = vmatpush2.msra.mxu0 0.0
        %383 = vmatprep.subr.mxu0 0.0
        %384 = vmatpush2.msra.mxu0 0.0
        %385 = vmatprep.subr.mxu0 0.0
        %386 = vmatpush2.msra.mxu0 0.0
        %387 = vmatprep.subr.mxu0 0.0
        %388 = vmatpush2.msra.mxu0 0.0
        %389 = vmatprep.subr.mxu0 0.0
        %390 = vmatpush2.msra.mxu0 0.0
        %391 = vmatprep.subr.mxu0 0.0
        %392 = vmatpush2.msra.mxu0 0.0
        %393 = vmatprep.subr.mxu0 0.0
        %394 = vmatpush2.msra.mxu0 0.0
        %395 = vmatprep.subr.mxu0 0.0
        %396 = vmatpush2.msra.mxu0 0.0
        %397 = vmatprep.subr.mxu0 0.0
        %398 = vmatpush2.msra.mxu0 0.0
        %399 = vmatprep.subr.mxu0 0.0
        %400 = vmatpush2.msra.mxu0 0.0
        %401 = vmatprep.mubr.f32.mxu0 0.0
        %402 = vmatmul.mubr.f32.gmra.mxu0 %v319
        %v403 = vpop.f32.mrf.mxu0
        %v404 = vadd.f32 %v297, %v403
        %v405 = vpop.f32.mrf.mxu0
        %v406 = vadd.f32 %v297, %v405
        %407 = vmatprep.mubr.f32.mxu0 0.0
        %408 = vmatmul.mubr.f32.gmra.mxu0 %v322
        %v409 = vpop.f32.mrf.mxu0
        %v410 = vadd.f32 %v302, %v409
        %v411 = vpop.f32.mrf.mxu0
        %v412 = vadd.f32 %v302, %v411
        %413 = vmatprep.mubr.f32.mxu0 0.0
        %414 = vmatmul.mubr.f32.gmra.mxu0 %v325
        %v415 = vpop.f32.mrf.mxu0
        %v416 = vadd.f32 %v307, %v415
        %v417 = vpop.f32.mrf.mxu0
        %v418 = vadd.f32 %v307, %v417
        %419 = vmatprep.mubr.f32.mxu0 0.0
        %420 = vmatmul.mubr.f32.gmra.mxu0 %v328
        %v421 = vpop.f32.mrf.mxu0
        %v422 = vadd.f32 %v312, %v421
        %v423 = vpop.f32.mrf.mxu0
        %v424 = vadd.f32 %v312, %v423
        %425 = vdwg.mxu0
        %426 = vmatprep.subr.mxu0 0.0
        %427 = vmatpush1.msra.mxu0 0.0
        %428 = vmatprep.subr.mxu0 0.0
        %429 = vmatpush1.msra.mxu0 0.0
        %430 = vmatprep.subr.mxu0 0.0
        %431 = vmatpush1.msra.mxu0 0.0
        %432 = vmatprep.subr.mxu0 0.0
        %433 = vmatpush1.msra.mxu0 0.0
        %434 = vmatprep.subr.mxu0 0.0
        %435 = vmatpush1.msra.mxu0 0.0
        %436 = vmatprep.subr.mxu0 0.0
        %437 = vmatpush1.msra.mxu0 0.0
        %438 = vmatprep.subr.mxu0 0.0
        %439 = vmatpush1.msra.mxu0 0.0
        %440 = vmatprep.subr.mxu0 0.0
        %441 = vmatpush1.msra.mxu0 0.0
        %442 = vmatprep.subr.mxu0 0.0
        %443 = vmatpush1.msra.mxu0 0.0
        %444 = vmatprep.subr.mxu0 0.0
        %445 = vmatpush1.msra.mxu0 0.0
        %446 = vmatprep.subr.mxu0 0.0
        %447 = vmatpush1.msra.mxu0 0.0
        %448 = vmatprep.subr.mxu0 0.0
        %449 = vmatpush1.msra.mxu0 0.0
        %450 = vmatprep.subr.mxu0 0.0
        %451 = vmatpush1.msra.mxu0 0.0
        %452 = vmatprep.subr.mxu0 0.0
        %453 = vmatpush1.msra.mxu0 0.0
        %454 = vmatprep.subr.mxu0 0.0
        %455 = vmatpush1.msra.mxu0 0.0
        %456 = vmatprep.subr.mxu0 0.0
        %457 = vmatpush1.msra.mxu0 %v335
        %458 = vmatprep.subr.mxu0 0.0
        %459 = vmatpush2.msra.mxu0 0.0
        %460 = vmatprep.subr.mxu0 0.0
        %461 = vmatpush2.msra.mxu0 0.0
        %462 = vmatprep.subr.mxu0 0.0
        %463 = vmatpush2.msra.mxu0 0.0
        %464 = vmatprep.subr.mxu0 0.0
        %465 = vmatpush2.msra.mxu0 0.0
        %466 = vmatprep.subr.mxu0 0.0
        %467 = vmatpush2.msra.mxu0 0.0
        %468 = vmatprep.subr.mxu0 0.0
        %469 = vmatpush2.msra.mxu0 0.0
        %470 = vmatprep.subr.mxu0 0.0
        %471 = vmatpush2.msra.mxu0 0.0
        %472 = vmatprep.subr.mxu0 0.0
        %473 = vmatpush2.msra.mxu0 0.0
        %474 = vmatprep.subr.mxu0 0.0
        %475 = vmatpush2.msra.mxu0 0.0
        %476 = vmatprep.subr.mxu0 0.0
        %477 = vmatpush2.msra.mxu0 0.0
        %478 = vmatprep.subr.mxu0 0.0
        %479 = vmatpush2.msra.mxu0 0.0
        %480 = vmatprep.subr.mxu0 0.0
        %481 = vmatpush2.msra.mxu0 0.0
        %482 = vmatprep.subr.mxu0 0.0
        %483 = vmatpush2.msra.mxu0 0.0
        %484 = vmatprep.subr.mxu0 0.0
        %485 = vmatpush2.msra.mxu0 0.0
        %486 = vmatprep.subr.mxu0 0.0
        %487 = vmatpush2.msra.mxu0 0.0
        %488 = vmatprep.subr.mxu0 0.0
        %489 = vmatpush2.msra.mxu0 0.0
        %490 = vmatprep.mubr.f32.mxu0 0.0
        %491 = vmatmul.mubr.f32.gmra.mxu0 %v319
        %v492 = vpop.f32.mrf.mxu0
        %v493 = vadd.f32 %v297, %v492
        %v494 = vpop.f32.mrf.mxu0
        %495 = vmatprep.mubr.f32.mxu0 0.0
        %496 = vmatmul.mubr.f32.gmra.mxu0 %v322
        %v497 = vpop.f32.mrf.mxu0
        %v498 = vadd.f32 %v302, %v497
        %v499 = vpop.f32.mrf.mxu0
        %500 = vmatprep.mubr.f32.mxu0 0.0
        %501 = vmatmul.mubr.f32.gmra.mxu0 %v325
        %v502 = vpop.f32.mrf.mxu0
        %v503 = vadd.f32 %v307, %v502
        %v504 = vpop.f32.mrf.mxu0
        %505 = vmatprep.mubr.f32.mxu0 0.0
        %506 = vmatmul.mubr.f32.gmra.mxu0 %v328
        %v507 = vpop.f32.mrf.mxu0
        %v508 = vadd.f32 %v312, %v507
        %v509 = vpop.f32.mrf.mxu0
        %510 = vdwg.mxu0
        %v511 = vtanh.pop %v404
        %v512 = vtanh.pop %v406
        %v513 = vtanh.pop %v493
        %v514 = vtanh.pop %v410
        %v515 = vtanh.pop %v412
        %v516 = vtanh.pop %v498
        %v517 = vtanh.pop %v416
        %v518 = vtanh.pop %v418
        %v519 = vtanh.pop %v503
        %v520 = vtanh.pop %v422
        %v521 = vtanh.pop %v424
        %v522 = vtanh.pop %v508
        %v523 = vmul.f32 %v511, %v281
        %v524 = vmul.f32 %v512, %v282
        %v525 = vmul.f32 %v513, %v283
        %v526 = vmul.f32 %v514, %v281
        %v527 = vmul.f32 %v515, %v282
        %v528 = vmul.f32 %v516, %v283
        %v529 = vmul.f32 %v517, %v281
        %v530 = vmul.f32 %v518, %v282
        %v531 = vmul.f32 %v519, %v283
        %v532 = vmul.f32 %v520, %v281
        %v533 = vmul.f32 %v521, %v282
        %v534 = vmul.f32 %v522, %v283
        %535 = vst [vmem:[#allocation2] sm:$0xff] %v523
        %536 = vst [vmem:[#allocation2 + $0x8] sm:$0xff] %v524
        %vm537 = vcmask 277504
        %538 = vst.msk [vmem:[#allocation2 + $0x10] sm:$0xff] %vm537, %v525
        %539 = vst [vmem:[#allocation2 + $0x18] sm:$0xff] %v526
        %540 = vst [vmem:[#allocation2 + $0x20] sm:$0xff] %v527
        %541 = vst.msk [vmem:[#allocation2 + $0x28] sm:$0xff] %vm537, %v528
        %542 = vst [vmem:[#allocation2 + $0x30] sm:$0xff] %v529
        %543 = vst [vmem:[#allocation2 + $0x38] sm:$0xff] %v530
        %544 = vst.msk [vmem:[#allocation2 + $0x40] sm:$0xff] %vm537, %v531
        %545 = vst [vmem:[#allocation2 + $0x48] sm:$0xff] %v532
        %546 = vst [vmem:[#allocation2 + $0x50] sm:$0xff] %v533
        %547 = vst.msk [vmem:[#allocation2 + $0x58] sm:$0xff] %vm537, %v534
        %v548 = vld [vmem:[%s4] sm:$0xff]
        %v549 = vld [vmem:[%s4 + $0x8] sm:$0xff]
        %v550 = vld [vmem:[%s4 + $0x10] sm:$0xff]
        %v551 = vld [vmem:[%s4 + $0x18] sm:$0xff]
        %v552 = vld [vmem:[#allocation2] sm:$0xff]
        %v553 = vld [vmem:[#allocation2 + $0x8] sm:$0xff]
        %v554 = vld [vmem:[#allocation2 + $0x10] sm:$0xff]
        %v555 = vld [vmem:[#allocation2 + $0x18] sm:$0xff]
        %v556 = vld [vmem:[#allocation2 + $0x20] sm:$0xff]
        %v557 = vld [vmem:[#allocation2 + $0x28] sm:$0xff]
        %v558 = vld [vmem:[#allocation2 + $0x30] sm:$0xff]
        %v559 = vld [vmem:[#allocation2 + $0x38] sm:$0xff]
        %v560 = vld [vmem:[#allocation2 + $0x40] sm:$0xff]
        %v561 = vld [vmem:[#allocation2 + $0x48] sm:$0xff]
        %v562 = vld [vmem:[#allocation2 + $0x50] sm:$0xff]
        %v563 = vld [vmem:[#allocation2 + $0x58] sm:$0xff]
        %576 = vrot.lane.b32.xlu0 %v552, 111
        %v577 = vpop.permute.xlu0 %576
        %578 = vrot.lane.b32.xlu0 %v553, 111
        %v579 = vpop.permute.xlu0 %578
        %580 = vrot.lane.b32.xlu0 %v554, 111
        %v581 = vpop.permute.xlu0 %580
        %582 = vrot.lane.b32.xlu0 %v555, 111
        %v583 = vpop.permute.xlu0 %582
        %584 = vrot.lane.b32.xlu0 %v556, 111
        %v585 = vpop.permute.xlu0 %584
        %586 = vrot.lane.b32.xlu0 %v557, 111
        %v587 = vpop.permute.xlu0 %586
        %588 = vrot.lane.b32.xlu0 %v558, 111
        %v589 = vpop.permute.xlu0 %588
        %590 = vrot.lane.b32.xlu0 %v559, 111
        %v591 = vpop.permute.xlu0 %590
        %592 = vrot.lane.b32.xlu0 %v560, 111
        %v593 = vpop.permute.xlu0 %592
        %594 = vrot.lane.b32.xlu0 %v561, 111
        %v595 = vpop.permute.xlu0 %594
        %596 = vrot.lane.b32.xlu0 %v562, 111
        %v597 = vpop.permute.xlu0 %596
        %598 = vrot.lane.b32.xlu0 %v563, 111
        %v599 = vpop.permute.xlu0 %598
        %vm600 = vcmask 908288
        %v601 = vsel %vm600, %v577, %v579
        %v602 = vsel %vm600, %v579, %v581
        %v603 = vsel %vm600, %v583, %v585
        %v604 = vsel %vm600, %v585, %v587
        %v605 = vsel %vm600, %v589, %v591
        %v606 = vsel %vm600, %v591, %v593
        %v607 = vsel %vm600, %v595, %v597
        %v608 = vsel %vm600, %v597, %v599
        %617 = vst [vmem:[#allocation3] sm:$0xff] %v601
        %618 = vst [vmem:[#allocation3 + $0x8] sm:$0xff] %v602
        %619 = vst [vmem:[#allocation3 + $0x10] sm:$0xff] %v603
        %620 = vst [vmem:[#allocation3 + $0x18] sm:$0xff] %v604
        %621 = vst [vmem:[#allocation3 + $0x20] sm:$0xff] %v605
        %622 = vst [vmem:[#allocation3 + $0x28] sm:$0xff] %v606
        %623 = vst [vmem:[#allocation3 + $0x30] sm:$0xff] %v607
        %624 = vst [vmem:[#allocation3 + $0x38] sm:$0xff] %v608
        %v625 = vld [vmem:[#allocation2] sm:$0xff]
        %v626 = vld [vmem:[#allocation2 + $0x8] sm:$0xff]
        %v627 = vld [vmem:[#allocation2 + $0x10] sm:$0xff]
        %v628 = vld [vmem:[#allocation2 + $0x18] sm:$0xff]
        %v629 = vld [vmem:[#allocation2 + $0x20] sm:$0xff]
        %v630 = vld [vmem:[#allocation2 + $0x28] sm:$0xff]
        %v631 = vld [vmem:[#allocation2 + $0x30] sm:$0xff]
        %v632 = vld [vmem:[#allocation2 + $0x38] sm:$0xff]
        %v633 = vld [vmem:[#allocation2 + $0x40] sm:$0xff]
        %v634 = vld [vmem:[#allocation2 + $0x48] sm:$0xff]
        %v635 = vld [vmem:[#allocation2 + $0x50] sm:$0xff]
        %v636 = vld [vmem:[#allocation2 + $0x58] sm:$0xff]
        %v637 = vld [vmem:[#allocation4] ss:$4 sm:$0x3]
        %v639 = vlaneseq
        %v640 = vshrl.u32 %v639, 7
        %v641 = vsub.s32 0, %v640
        %v642 = vrot.slane %v637, %v641
        %v643 = vlaneseq
        %v644 = vshrl.u32 %v643, 7
        %v645 = vsub.s32 1, %v644
        %v646 = vrot.slane %v637, %v645
        %647 = vrot.lane.b32.xlu0 %v642, 16
        %v648 = vpop.permute.xlu0 %647
        %649 = vrot.lane.b32.xlu0 %v646, 16
        %v650 = vpop.permute.xlu0 %649
        %vm651 = vcmask 130048
        %v652 = vsel %vm651, %v648, %v650
        %v656 = vmul.f32 %v625, %v648
        %v657 = vmul.f32 %v626, %v652
        %v658 = vmul.f32 %v627, %v650
        %v659 = vmul.f32 %v628, %v648
        %v660 = vmul.f32 %v629, %v652
        %v661 = vmul.f32 %v630, %v650
        %v662 = vmul.f32 %v631, %v648
        %v663 = vmul.f32 %v632, %v652
        %v664 = vmul.f32 %v633, %v650
        %v665 = vmul.f32 %v634, %v648
        %v666 = vmul.f32 %v635, %v652
        %v667 = vmul.f32 %v636, %v650
        %680 = vrot.lane.b32.xlu0 %v656, 112
        %v681 = vpop.permute.xlu0 %680
        %682 = vrot.lane.b32.xlu0 %v657, 112
        %v683 = vpop.permute.xlu0 %682
        %684 = vrot.lane.b32.xlu0 %v658, 112
        %v685 = vpop.permute.xlu0 %684
        %686 = vrot.lane.b32.xlu0 %v659, 112
        %v687 = vpop.permute.xlu0 %686
        %688 = vrot.lane.b32.xlu0 %v660, 112
        %v689 = vpop.permute.xlu0 %688
        %690 = vrot.lane.b32.xlu0 %v661, 112
        %v691 = vpop.permute.xlu0 %690
        %692 = vrot.lane.b32.xlu0 %v662, 112
        %v693 = vpop.permute.xlu0 %692
        %694 = vrot.lane.b32.xlu0 %v663, 112
        %v695 = vpop.permute.xlu0 %694
        %696 = vrot.lane.b32.xlu0 %v664, 112
        %v697 = vpop.permute.xlu0 %696
        %698 = vrot.lane.b32.xlu0 %v665, 112
        %v699 = vpop.permute.xlu0 %698
        %700 = vrot.lane.b32.xlu0 %v666, 112
        %v701 = vpop.permute.xlu0 %700
        %702 = vrot.lane.b32.xlu0 %v667, 112
        %v703 = vpop.permute.xlu0 %702
        %vm704 = vcmask 916480
        %v705 = vsel %vm704, %v681, %v683
        %v706 = vsel %vm704, %v683, %v685
        %v707 = vsel %vm704, %v687, %v689
        %v708 = vsel %vm704, %v689, %v691
        %v709 = vsel %vm704, %v693, %v695
        %v710 = vsel %vm704, %v695, %v697
        %v711 = vsel %vm704, %v699, %v701
        %v712 = vsel %vm704, %v701, %v703
        %721 = vst [vmem:[#allocation3 + $0x40] sm:$0xff] %v705
        %722 = vst [vmem:[#allocation3 + $0x48] sm:$0xff] %v706
        %723 = vst [vmem:[#allocation3 + $0x50] sm:$0xff] %v707
        %724 = vst [vmem:[#allocation3 + $0x58] sm:$0xff] %v708
        %725 = vst [vmem:[#allocation3 + $0x60] sm:$0xff] %v709
        %726 = vst [vmem:[#allocation3 + $0x68] sm:$0xff] %v710
        %727 = vst [vmem:[#allocation3 + $0x70] sm:$0xff] %v711
        %728 = vst [vmem:[#allocation3 + $0x78] sm:$0xff] %v712
        %v729 = vld [vmem:[#allocation2] sm:$0xff]
        %v730 = vld [vmem:[#allocation2 + $0x8] sm:$0xff]
        %v731 = vld [vmem:[#allocation2 + $0x10] sm:$0xff]
        %v732 = vld [vmem:[#allocation2 + $0x18] sm:$0xff]
        %v733 = vld [vmem:[#allocation2 + $0x20] sm:$0xff]
        %v734 = vld [vmem:[#allocation2 + $0x28] sm:$0xff]
        %v735 = vld [vmem:[#allocation2 + $0x30] sm:$0xff]
        %v736 = vld [vmem:[#allocation2 + $0x38] sm:$0xff]
        %v737 = vld [vmem:[#allocation2 + $0x40] sm:$0xff]
        %v738 = vld [vmem:[#allocation2 + $0x48] sm:$0xff]
        %v739 = vld [vmem:[#allocation2 + $0x50] sm:$0xff]
        %v740 = vld [vmem:[#allocation2 + $0x58] sm:$0xff]
        %753 = vrot.lane.b32.xlu0 %v729, 127
        %v754 = vpop.permute.xlu0 %753
        %755 = vrot.lane.b32.xlu0 %v730, 127
        %v756 = vpop.permute.xlu0 %755
        %757 = vrot.lane.b32.xlu0 %v731, 127
        %v758 = vpop.permute.xlu0 %757
        %759 = vrot.lane.b32.xlu0 %v732, 127
        %v760 = vpop.permute.xlu0 %759
        %761 = vrot.lane.b32.xlu0 %v733, 127
        %v762 = vpop.permute.xlu0 %761
        %763 = vrot.lane.b32.xlu0 %v734, 127
        %v764 = vpop.permute.xlu0 %763
        %765 = vrot.lane.b32.xlu0 %v735, 127
        %v766 = vpop.permute.xlu0 %765
        %767 = vrot.lane.b32.xlu0 %v736, 127
        %v768 = vpop.permute.xlu0 %767
        %769 = vrot.lane.b32.xlu0 %v737, 127
        %v770 = vpop.permute.xlu0 %769
        %771 = vrot.lane.b32.xlu0 %v738, 127
        %v772 = vpop.permute.xlu0 %771
        %773 = vrot.lane.b32.xlu0 %v739, 127
        %v774 = vpop.permute.xlu0 %773
        %775 = vrot.lane.b32.xlu0 %v740, 127
        %v776 = vpop.permute.xlu0 %775
        %vm777 = vcmask 1039360
        %v778 = vsel %vm777, %v754, %v756
        %v779 = vsel %vm777, %v756, %v758
        %v780 = vsel %vm777, %v760, %v762
        %v781 = vsel %vm777, %v762, %v764
        %v782 = vsel %vm777, %v766, %v768
        %v783 = vsel %vm777, %v768, %v770
        %v784 = vsel %vm777, %v772, %v774
        %v785 = vsel %vm777, %v774, %v776
        %794 = vst [vmem:[#allocation3 + $0x80] sm:$0xff] %v778
        %795 = vst [vmem:[#allocation3 + $0x88] sm:$0xff] %v779
        %796 = vst [vmem:[#allocation3 + $0x90] sm:$0xff] %v780
        %797 = vst [vmem:[#allocation3 + $0x98] sm:$0xff] %v781
        %798 = vst [vmem:[#allocation3 + $0xa0] sm:$0xff] %v782
        %799 = vst [vmem:[#allocation3 + $0xa8] sm:$0xff] %v783
        %800 = vst [vmem:[#allocation3 + $0xb0] sm:$0xff] %v784
        %801 = vst [vmem:[#allocation3 + $0xb8] sm:$0xff] %v785
        %v802 = vld [vmem:[#allocation2] sm:$0xff]
        %v803 = vld [vmem:[#allocation2 + $0x8] sm:$0xff]
        %v804 = vld [vmem:[#allocation2 + $0x18] sm:$0xff]
        %v805 = vld [vmem:[#allocation2 + $0x20] sm:$0xff]
        %v806 = vld [vmem:[#allocation2 + $0x30] sm:$0xff]
        %v807 = vld [vmem:[#allocation2 + $0x38] sm:$0xff]
        %v808 = vld [vmem:[#allocation2 + $0x48] sm:$0xff]
        %v809 = vld [vmem:[#allocation2 + $0x50] sm:$0xff]
        %v810 = vld [vmem:[#allocation4] ss:$4 sm:$0x3]
        %v812 = vlaneseq
        %v813 = vshrl.u32 %v812, 7
        %v814 = vsub.s32 0, %v813
        %v815 = vrot.slane %v810, %v814
        %v816 = vlaneseq
        %v817 = vshrl.u32 %v816, 7
        %v818 = vsub.s32 1, %v817
        %v819 = vrot.slane %v810, %v818
        %v822 = vmul.f32 %v802, %v815
        %v823 = vmul.f32 %v803, %v819
        %v824 = vmul.f32 %v804, %v815
        %v825 = vmul.f32 %v805, %v819
        %v826 = vmul.f32 %v806, %v815
        %v827 = vmul.f32 %v807, %v819
        %v828 = vmul.f32 %v808, %v815
        %v829 = vmul.f32 %v809, %v819
        %830 = vst [vmem:[#allocation3 + $0xc0] sm:$0xff] %v822
        %831 = vst [vmem:[#allocation3 + $0xc8] sm:$0xff] %v823
        %832 = vst [vmem:[#allocation3 + $0xd0] sm:$0xff] %v824
        %833 = vst [vmem:[#allocation3 + $0xd8] sm:$0xff] %v825
        %834 = vst [vmem:[#allocation3 + $0xe0] sm:$0xff] %v826
        %835 = vst [vmem:[#allocation3 + $0xe8] sm:$0xff] %v827
        %836 = vst [vmem:[#allocation3 + $0xf0] sm:$0xff] %v828
        %837 = vst [vmem:[#allocation3 + $0xf8] sm:$0xff] %v829
        %v838 = vld [vmem:[%s3] sm:$0xff]
        %v839 = vld [vmem:[%s3 + $0x8] sm:$0xff]
        %v840 = vld [vmem:[%s3 + $0x10] sm:$0xff]
        %v841 = vld [vmem:[%s3 + $0x18] sm:$0xff]
        %v842 = vld [vmem:[#allocation3] sm:$0xff]
        %v843 = vld [vmem:[#allocation3 + $0x8] sm:$0xff]
        %v844 = vld [vmem:[#allocation3 + $0x10] sm:$0xff]
        %v845 = vld [vmem:[#allocation3 + $0x18] sm:$0xff]
        %v846 = vld [vmem:[#allocation3 + $0x20] sm:$0xff]
        %v847 = vld [vmem:[#allocation3 + $0x28] sm:$0xff]
        %v848 = vld [vmem:[#allocation3 + $0x30] sm:$0xff]
        %v849 = vld [vmem:[#allocation3 + $0x38] sm:$0xff]
        %v850 = vld [vmem:[#allocation3 + $0x40] sm:$0xff]
        %v851 = vld [vmem:[#allocation3 + $0x48] sm:$0xff]
        %v852 = vld [vmem:[#allocation3 + $0x50] sm:$0xff]
        %v853 = vld [vmem:[#allocation3 + $0x58] sm:$0xff]
        %v854 = vld [vmem:[#allocation3 + $0x60] sm:$0xff]
        %v855 = vld [vmem:[#allocation3 + $0x68] sm:$0xff]
        %v856 = vld [vmem:[#allocation3 + $0x70] sm:$0xff]
        %v857 = vld [vmem:[#allocation3 + $0x78] sm:$0xff]
        %v858 = vld [vmem:[#allocation3 + $0x80] sm:$0xff]
        %v859 = vld [vmem:[#allocation3 + $0x88] sm:$0xff]
        %v860 = vld [vmem:[#allocation3 + $0x90] sm:$0xff]
        %v861 = vld [vmem:[#allocation3 + $0x98] sm:$0xff]
        %v862 = vld [vmem:[#allocation3 + $0xa0] sm:$0xff]
        %v863 = vld [vmem:[#allocation3 + $0xa8] sm:$0xff]
        %v864 = vld [vmem:[#allocation3 + $0xb0] sm:$0xff]
        %v865 = vld [vmem:[#allocation3 + $0xb8] sm:$0xff]
        %v866 = vld [vmem:[#allocation3 + $0xc0] sm:$0xff]
        %v867 = vld [vmem:[#allocation3 + $0xc8] sm:$0xff]
        %v868 = vld [vmem:[#allocation3 + $0xd0] sm:$0xff]
        %v869 = vld [vmem:[#allocation3 + $0xd8] sm:$0xff]
        %v870 = vld [vmem:[#allocation3 + $0xe0] sm:$0xff]
        %v871 = vld [vmem:[#allocation3 + $0xe8] sm:$0xff]
        %v872 = vld [vmem:[#allocation3 + $0xf0] sm:$0xff]
        %v873 = vld [vmem:[#allocation3 + $0xf8] sm:$0xff]
        %875 = vset.pattern.permute.xlu0 0
        %876 = vperm.xlu0 %875, %v548
        %v877 = vpop.permute.xlu0 %876
        %880 = vset.pattern.permute.xlu0 0
        %881 = vperm.xlu0 %880, %v549
        %v882 = vpop.permute.xlu0 %881
        %885 = vset.pattern.permute.xlu0 0
        %886 = vperm.xlu0 %885, %v550
        %v887 = vpop.permute.xlu0 %886
        %890 = vset.pattern.permute.xlu0 0
        %891 = vperm.xlu0 %890, %v551
        %v892 = vpop.permute.xlu0 %891
        %894 = vmatprep.subr.mxu0 %v873
        %895 = vmatpush1.msra.mxu0 %v872
        %896 = vmatprep.subr.mxu0 %v871
        %897 = vmatpush1.msra.mxu0 %v870
        %898 = vmatprep.subr.mxu0 %v869
        %899 = vmatpush1.msra.mxu0 %v868
        %900 = vmatprep.subr.mxu0 %v867
        %901 = vmatpush1.msra.mxu0 %v866
        %902 = vmatprep.subr.mxu0 %v865
        %903 = vmatpush1.msra.mxu0 %v864
        %904 = vmatprep.subr.mxu0 %v863
        %905 = vmatpush1.msra.mxu0 %v862
        %906 = vmatprep.subr.mxu0 %v861
        %907 = vmatpush1.msra.mxu0 %v860
        %908 = vmatprep.subr.mxu0 %v859
        %909 = vmatpush1.msra.mxu0 %v858
        %910 = vmatprep.subr.mxu0 %v857
        %911 = vmatpush1.msra.mxu0 %v856
        %912 = vmatprep.subr.mxu0 %v855
        %913 = vmatpush1.msra.mxu0 %v854
        %914 = vmatprep.subr.mxu0 %v853
        %915 = vmatpush1.msra.mxu0 %v852
        %916 = vmatprep.subr.mxu0 %v851
        %917 = vmatpush1.msra.mxu0 %v850
        %918 = vmatprep.subr.mxu0 %v849
        %919 = vmatpush1.msra.mxu0 %v848
        %920 = vmatprep.subr.mxu0 %v847
        %921 = vmatpush1.msra.mxu0 %v846
        %922 = vmatprep.subr.mxu0 %v845
        %923 = vmatpush1.msra.mxu0 %v844
        %924 = vmatprep.subr.mxu0 %v843
        %925 = vmatpush1.msra.mxu0 %v842
        %926 = vmatprep.subr.mxu0 0.0
        %927 = vmatpush2.msra.mxu0 0.0
        %928 = vmatprep.subr.mxu0 0.0
        %929 = vmatpush2.msra.mxu0 0.0
        %930 = vmatprep.subr.mxu0 0.0
        %931 = vmatpush2.msra.mxu0 0.0
        %932 = vmatprep.subr.mxu0 0.0
        %933 = vmatpush2.msra.mxu0 0.0
        %934 = vmatprep.subr.mxu0 0.0
        %935 = vmatpush2.msra.mxu0 0.0
        %936 = vmatprep.subr.mxu0 0.0
        %937 = vmatpush2.msra.mxu0 0.0
        %938 = vmatprep.subr.mxu0 0.0
        %939 = vmatpush2.msra.mxu0 0.0
        %940 = vmatprep.subr.mxu0 0.0
        %941 = vmatpush2.msra.mxu0 0.0
        %942 = vmatprep.subr.mxu0 0.0
        %943 = vmatpush2.msra.mxu0 0.0
        %944 = vmatprep.subr.mxu0 0.0
        %945 = vmatpush2.msra.mxu0 0.0
        %946 = vmatprep.subr.mxu0 0.0
        %947 = vmatpush2.msra.mxu0 0.0
        %948 = vmatprep.subr.mxu0 0.0
        %949 = vmatpush2.msra.mxu0 0.0
        %950 = vmatprep.subr.mxu0 0.0
        %951 = vmatpush2.msra.mxu0 0.0
        %952 = vmatprep.subr.mxu0 0.0
        %953 = vmatpush2.msra.mxu0 0.0
        %954 = vmatprep.subr.mxu0 0.0
        %955 = vmatpush2.msra.mxu0 0.0
        %956 = vmatprep.subr.mxu0 0.0
        %957 = vmatpush2.msra.mxu0 0.0
        %958 = vmatprep.mubr.f32.mxu0 0.0
        %959 = vmatmul.mubr.f32.gmra.mxu0 %v838
        %v960 = vpop.f32.mrf.mxu0
        %v961 = vadd.f32 %v877, %v960
        %v962 = vpop.f32.mrf.mxu0
        %v963 = vadd.f32 %v877, %v962
        %964 = vmatprep.mubr.f32.mxu0 0.0
        %965 = vmatmul.mubr.f32.gmra.mxu0 %v839
        %v966 = vpop.f32.mrf.mxu0
        %v967 = vadd.f32 %v882, %v966
        %v968 = vpop.f32.mrf.mxu0
        %v969 = vadd.f32 %v882, %v968
        %970 = vmatprep.mubr.f32.mxu0 0.0
        %971 = vmatmul.mubr.f32.gmra.mxu0 %v840
        %v972 = vpop.f32.mrf.mxu0
        %v973 = vadd.f32 %v887, %v972
        %v974 = vpop.f32.mrf.mxu0
        %v975 = vadd.f32 %v887, %v974
        %976 = vmatprep.mubr.f32.mxu0 0.0
        %977 = vmatmul.mubr.f32.gmra.mxu0 %v841
        %v978 = vpop.f32.mrf.mxu0
        %v979 = vadd.f32 %v892, %v978
        %v980 = vpop.f32.mrf.mxu0
        %v981 = vadd.f32 %v892, %v980
        %982 = vdwg.mxu0
        %983 = vst [vmem:[%s264] sm:$0xff] %v961
        %984 = vst [vmem:[%s264 + $0x8] sm:$0xff] %v963
        %985 = vst [vmem:[%s264 + $0x40] sm:$0xff] %v967
        %986 = vst [vmem:[%s264 + $0x48] sm:$0xff] %v969
        %987 = vst [vmem:[%s264 + $0x80] sm:$0xff] %v973
        %988 = vst [vmem:[%s264 + $0x88] sm:$0xff] %v975
        %989 = vst [vmem:[%s264 + $0xc0] sm:$0xff] %v979
        %990 = vst [vmem:[%s264 + $0xc8] sm:$0xff] %v981
        %v991 = vld [vmem:[#allocation2] sm:$0xff]
        %v992 = vld [vmem:[#allocation2 + $0x8] sm:$0xff]
        %v993 = vld [vmem:[#allocation2 + $0x10] sm:$0xff]
        %v994 = vld [vmem:[#allocation2 + $0x18] sm:$0xff]
        %v995 = vld [vmem:[#allocation2 + $0x20] sm:$0xff]
        %v996 = vld [vmem:[#allocation2 + $0x28] sm:$0xff]
        %v997 = vld [vmem:[#allocation2 + $0x30] sm:$0xff]
        %v998 = vld [vmem:[#allocation2 + $0x38] sm:$0xff]
        %v999 = vld [vmem:[#allocation2 + $0x40] sm:$0xff]
        %v1000 = vld [vmem:[#allocation2 + $0x48] sm:$0xff]
        %v1001 = vld [vmem:[#allocation2 + $0x50] sm:$0xff]
        %v1002 = vld [vmem:[#allocation2 + $0x58] sm:$0xff]
        %s1003 = scalar_lea.vmem [#allocation4], 2
        %v1004 = vld [vmem:[%s1003] ss:$4 sm:$0x3]
        %v1006 = vlaneseq
        %v1007 = vshrl.u32 %v1006, 7
        %v1008 = vsub.s32 0, %v1007
        %v1009 = vrot.slane %v1004, %v1008
        %v1010 = vlaneseq
        %v1011 = vshrl.u32 %v1010, 7
        %v1012 = vsub.s32 1, %v1011
        %v1013 = vrot.slane %v1004, %v1012
        %1014 = vrot.lane.b32.xlu0 %v1009, 18
        %v1015 = vpop.permute.xlu0 %1014
        %1016 = vrot.lane.b32.xlu0 %v1013, 18
        %v1017 = vpop.permute.xlu0 %1016
        %vm1018 = vcmask 146432
        %v1019 = vsel %vm1018, %v1015, %v1017
        %v1023 = vmul.f32 %v991, %v1015
        %v1024 = vmul.f32 %v992, %v1019
        %v1025 = vmul.f32 %v993, %v1017
        %v1026 = vmul.f32 %v994, %v1015
        %v1027 = vmul.f32 %v995, %v1019
        %v1028 = vmul.f32 %v996, %v1017
        %v1029 = vmul.f32 %v997, %v1015
        %v1030 = vmul.f32 %v998, %v1019
        %v1031 = vmul.f32 %v999, %v1017
        %v1032 = vmul.f32 %v1000, %v1015
        %v1033 = vmul.f32 %v1001, %v1019
        %v1034 = vmul.f32 %v1002, %v1017
        %1047 = vrot.lane.b32.xlu0 %v1023, 110
        %v1048 = vpop.permute.xlu0 %1047
        %1049 = vrot.lane.b32.xlu0 %v1024, 110
        %v1050 = vpop.permute.xlu0 %1049
        %1051 = vrot.lane.b32.xlu0 %v1025, 110
        %v1052 = vpop.permute.xlu0 %1051
        %1053 = vrot.lane.b32.xlu0 %v1026, 110
        %v1054 = vpop.permute.xlu0 %1053
        %1055 = vrot.lane.b32.xlu0 %v1027, 110
        %v1056 = vpop.permute.xlu0 %1055
        %1057 = vrot.lane.b32.xlu0 %v1028, 110
        %v1058 = vpop.permute.xlu0 %1057
        %1059 = vrot.lane.b32.xlu0 %v1029, 110
        %v1060 = vpop.permute.xlu0 %1059
        %1061 = vrot.lane.b32.xlu0 %v1030, 110
        %v1062 = vpop.permute.xlu0 %1061
        %1063 = vrot.lane.b32.xlu0 %v1031, 110
        %v1064 = vpop.permute.xlu0 %1063
        %1065 = vrot.lane.b32.xlu0 %v1032, 110
        %v1066 = vpop.permute.xlu0 %1065
        %1067 = vrot.lane.b32.xlu0 %v1033, 110
        %v1068 = vpop.permute.xlu0 %1067
        %1069 = vrot.lane.b32.xlu0 %v1034, 110
        %v1070 = vpop.permute.xlu0 %1069
        %vm1071 = vcmask 900096
        %v1072 = vsel %vm1071, %v1048, %v1050
        %v1073 = vsel %vm1071, %v1050, %v1052
        %v1074 = vsel %vm1071, %v1054, %v1056
        %v1075 = vsel %vm1071, %v1056, %v1058
        %v1076 = vsel %vm1071, %v1060, %v1062
        %v1077 = vsel %vm1071, %v1062, %v1064
        %v1078 = vsel %vm1071, %v1066, %v1068
        %v1079 = vsel %vm1071, %v1068, %v1070
        %1088 = vst [vmem:[#allocation3] sm:$0xff] %v1072
        %1089 = vst [vmem:[#allocation3 + $0x8] sm:$0xff] %v1073
        %1090 = vst [vmem:[#allocation3 + $0x10] sm:$0xff] %v1074
        %1091 = vst [vmem:[#allocation3 + $0x18] sm:$0xff] %v1075
        %1092 = vst [vmem:[#allocation3 + $0x20] sm:$0xff] %v1076
        %1093 = vst [vmem:[#allocation3 + $0x28] sm:$0xff] %v1077
        %1094 = vst [vmem:[#allocation3 + $0x30] sm:$0xff] %v1078
        %1095 = vst [vmem:[#allocation3 + $0x38] sm:$0xff] %v1079
        %v1096 = vld [vmem:[#allocation2] sm:$0xff]
        %v1097 = vld [vmem:[#allocation2 + $0x8] sm:$0xff]
        %v1098 = vld [vmem:[#allocation2 + $0x10] sm:$0xff]
        %v1099 = vld [vmem:[#allocation2 + $0x18] sm:$0xff]
        %v1100 = vld [vmem:[#allocation2 + $0x20] sm:$0xff]
        %v1101 = vld [vmem:[#allocation2 + $0x28] sm:$0xff]
        %v1102 = vld [vmem:[#allocation2 + $0x30] sm:$0xff]
        %v1103 = vld [vmem:[#allocation2 + $0x38] sm:$0xff]
        %v1104 = vld [vmem:[#allocation2 + $0x40] sm:$0xff]
        %v1105 = vld [vmem:[#allocation2 + $0x48] sm:$0xff]
        %v1106 = vld [vmem:[#allocation2 + $0x50] sm:$0xff]
        %v1107 = vld [vmem:[#allocation2 + $0x58] sm:$0xff]
        %1120 = vrot.lane.b32.xlu0 %v1096, 111
        %v1121 = vpop.permute.xlu0 %1120
        %1122 = vrot.lane.b32.xlu0 %v1097, 111
        %v1123 = vpop.permute.xlu0 %1122
        %1124 = vrot.lane.b32.xlu0 %v1098, 111
        %v1125 = vpop.permute.xlu0 %1124
        %1126 = vrot.lane.b32.xlu0 %v1099, 111
        %v1127 = vpop.permute.xlu0 %1126
        %1128 = vrot.lane.b32.xlu0 %v1100, 111
        %v1129 = vpop.permute.xlu0 %1128
        %1130 = vrot.lane.b32.xlu0 %v1101, 111
        %v1131 = vpop.permute.xlu0 %1130
        %1132 = vrot.lane.b32.xlu0 %v1102, 111
        %v1133 = vpop.permute.xlu0 %1132
        %1134 = vrot.lane.b32.xlu0 %v1103, 111
        %v1135 = vpop.permute.xlu0 %1134
        %1136 = vrot.lane.b32.xlu0 %v1104, 111
        %v1137 = vpop.permute.xlu0 %1136
        %1138 = vrot.lane.b32.xlu0 %v1105, 111
        %v1139 = vpop.permute.xlu0 %1138
        %1140 = vrot.lane.b32.xlu0 %v1106, 111
        %v1141 = vpop.permute.xlu0 %1140
        %1142 = vrot.lane.b32.xlu0 %v1107, 111
        %v1143 = vpop.permute.xlu0 %1142
        %v1144 = vsel %vm600, %v1121, %v1123
        %v1145 = vsel %vm600, %v1123, %v1125
        %v1146 = vsel %vm600, %v1127, %v1129
        %v1147 = vsel %vm600, %v1129, %v1131
        %v1148 = vsel %vm600, %v1133, %v1135
        %v1149 = vsel %vm600, %v1135, %v1137
        %v1150 = vsel %vm600, %v1139, %v1141
        %v1151 = vsel %vm600, %v1141, %v1143
        %1160 = vst [vmem:[#allocation3 + $0x40] sm:$0xff] %v1144
        %1161 = vst [vmem:[#allocation3 + $0x48] sm:$0xff] %v1145
        %1162 = vst [vmem:[#allocation3 + $0x50] sm:$0xff] %v1146
        %1163 = vst [vmem:[#allocation3 + $0x58] sm:$0xff] %v1147
        %1164 = vst [vmem:[#allocation3 + $0x60] sm:$0xff] %v1148
        %1165 = vst [vmem:[#allocation3 + $0x68] sm:$0xff] %v1149
        %1166 = vst [vmem:[#allocation3 + $0x70] sm:$0xff] %v1150
        %1167 = vst [vmem:[#allocation3 + $0x78] sm:$0xff] %v1151
        %v1168 = vld [vmem:[#allocation2] sm:$0xff]
        %v1169 = vld [vmem:[#allocation2 + $0x8] sm:$0xff]
        %v1170 = vld [vmem:[#allocation2 + $0x10] sm:$0xff]
        %v1171 = vld [vmem:[#allocation2 + $0x18] sm:$0xff]
        %v1172 = vld [vmem:[#allocation2 + $0x20] sm:$0xff]
        %v1173 = vld [vmem:[#allocation2 + $0x28] sm:$0xff]
        %v1174 = vld [vmem:[#allocation2 + $0x30] sm:$0xff]
        %v1175 = vld [vmem:[#allocation2 + $0x38] sm:$0xff]
        %v1176 = vld [vmem:[#allocation2 + $0x40] sm:$0xff]
        %v1177 = vld [vmem:[#allocation2 + $0x48] sm:$0xff]
        %v1178 = vld [vmem:[#allocation2 + $0x50] sm:$0xff]
        %v1179 = vld [vmem:[#allocation2 + $0x58] sm:$0xff]
        %v1180 = vld [vmem:[%s1003] ss:$4 sm:$0x3]
        %v1182 = vlaneseq
        %v1183 = vshrl.u32 %v1182, 7
        %v1184 = vsub.s32 0, %v1183
        %v1185 = vrot.slane %v1180, %v1184
        %v1186 = vlaneseq
        %v1187 = vshrl.u32 %v1186, 7
        %v1188 = vsub.s32 1, %v1187
        %v1189 = vrot.slane %v1180, %v1188
        %1190 = vrot.lane.b32.xlu0 %v1185, 2
        %v1191 = vpop.permute.xlu0 %1190
        %1192 = vrot.lane.b32.xlu0 %v1189, 2
        %v1193 = vpop.permute.xlu0 %1192
        %vm1194 = vcmask 15360
        %v1195 = vsel %vm1194, %v1191, %v1193
        %v1199 = vmul.f32 %v1168, %v1191
        %v1200 = vmul.f32 %v1169, %v1195
        %v1201 = vmul.f32 %v1170, %v1193
        %v1202 = vmul.f32 %v1171, %v1191
        %v1203 = vmul.f32 %v1172, %v1195
        %v1204 = vmul.f32 %v1173, %v1193
        %v1205 = vmul.f32 %v1174, %v1191
        %v1206 = vmul.f32 %v1175, %v1195
        %v1207 = vmul.f32 %v1176, %v1193
        %v1208 = vmul.f32 %v1177, %v1191
        %v1209 = vmul.f32 %v1178, %v1195
        %v1210 = vmul.f32 %v1179, %v1193
        %1223 = vrot.lane.b32.xlu0 %v1199, 126
        %v1224 = vpop.permute.xlu0 %1223
        %1225 = vrot.lane.b32.xlu0 %v1200, 126
        %v1226 = vpop.permute.xlu0 %1225
        %1227 = vrot.lane.b32.xlu0 %v1201, 126
        %v1228 = vpop.permute.xlu0 %1227
        %1229 = vrot.lane.b32.xlu0 %v1202, 126
        %v1230 = vpop.permute.xlu0 %1229
        %1231 = vrot.lane.b32.xlu0 %v1203, 126
        %v1232 = vpop.permute.xlu0 %1231
        %1233 = vrot.lane.b32.xlu0 %v1204, 126
        %v1234 = vpop.permute.xlu0 %1233
        %1235 = vrot.lane.b32.xlu0 %v1205, 126
        %v1236 = vpop.permute.xlu0 %1235
        %1237 = vrot.lane.b32.xlu0 %v1206, 126
        %v1238 = vpop.permute.xlu0 %1237
        %1239 = vrot.lane.b32.xlu0 %v1207, 126
        %v1240 = vpop.permute.xlu0 %1239
        %1241 = vrot.lane.b32.xlu0 %v1208, 126
        %v1242 = vpop.permute.xlu0 %1241
        %1243 = vrot.lane.b32.xlu0 %v1209, 126
        %v1244 = vpop.permute.xlu0 %1243
        %1245 = vrot.lane.b32.xlu0 %v1210, 126
        %v1246 = vpop.permute.xlu0 %1245
        %vm1247 = vcmask 1031168
        %v1248 = vsel %vm1247, %v1224, %v1226
        %v1249 = vsel %vm1247, %v1226, %v1228
        %v1250 = vsel %vm1247, %v1230, %v1232
        %v1251 = vsel %vm1247, %v1232, %v1234
        %v1252 = vsel %vm1247, %v1236, %v1238
        %v1253 = vsel %vm1247, %v1238, %v1240
        %v1254 = vsel %vm1247, %v1242, %v1244
        %v1255 = vsel %vm1247, %v1244, %v1246
        %1264 = vst [vmem:[#allocation3 + $0x80] sm:$0xff] %v1248
        %1265 = vst [vmem:[#allocation3 + $0x88] sm:$0xff] %v1249
        %1266 = vst [vmem:[#allocation3 + $0x90] sm:$0xff] %v1250
        %1267 = vst [vmem:[#allocation3 + $0x98] sm:$0xff] %v1251
        %1268 = vst [vmem:[#allocation3 + $0xa0] sm:$0xff] %v1252
        %1269 = vst [vmem:[#allocation3 + $0xa8] sm:$0xff] %v1253
        %1270 = vst [vmem:[#allocation3 + $0xb0] sm:$0xff] %v1254
        %1271 = vst [vmem:[#allocation3 + $0xb8] sm:$0xff] %v1255
        %v1272 = vld [vmem:[#allocation2] sm:$0xff]
        %v1273 = vld [vmem:[#allocation2 + $0x8] sm:$0xff]
        %v1274 = vld [vmem:[#allocation2 + $0x10] sm:$0xff]
        %v1275 = vld [vmem:[#allocation2 + $0x18] sm:$0xff]
        %v1276 = vld [vmem:[#allocation2 + $0x20] sm:$0xff]
        %v1277 = vld [vmem:[#allocation2 + $0x28] sm:$0xff]
        %v1278 = vld [vmem:[#allocation2 + $0x30] sm:$0xff]
        %v1279 = vld [vmem:[#allocation2 + $0x38] sm:$0xff]
        %v1280 = vld [vmem:[#allocation2 + $0x40] sm:$0xff]
        %v1281 = vld [vmem:[#allocation2 + $0x48] sm:$0xff]
        %v1282 = vld [vmem:[#allocation2 + $0x50] sm:$0xff]
        %v1283 = vld [vmem:[#allocation2 + $0x58] sm:$0xff]
        %1296 = vrot.lane.b32.xlu0 %v1272, 127
        %v1297 = vpop.permute.xlu0 %1296
        %1298 = vrot.lane.b32.xlu0 %v1273, 127
        %v1299 = vpop.permute.xlu0 %1298
        %1300 = vrot.lane.b32.xlu0 %v1274, 127
        %v1301 = vpop.permute.xlu0 %1300
        %1302 = vrot.lane.b32.xlu0 %v1275, 127
        %v1303 = vpop.permute.xlu0 %1302
        %1304 = vrot.lane.b32.xlu0 %v1276, 127
        %v1305 = vpop.permute.xlu0 %1304
        %1306 = vrot.lane.b32.xlu0 %v1277, 127
        %v1307 = vpop.permute.xlu0 %1306
        %1308 = vrot.lane.b32.xlu0 %v1278, 127
        %v1309 = vpop.permute.xlu0 %1308
        %1310 = vrot.lane.b32.xlu0 %v1279, 127
        %v1311 = vpop.permute.xlu0 %1310
        %1312 = vrot.lane.b32.xlu0 %v1280, 127
        %v1313 = vpop.permute.xlu0 %1312
        %1314 = vrot.lane.b32.xlu0 %v1281, 127
        %v1315 = vpop.permute.xlu0 %1314
        %1316 = vrot.lane.b32.xlu0 %v1282, 127
        %v1317 = vpop.permute.xlu0 %1316
        %1318 = vrot.lane.b32.xlu0 %v1283, 127
        %v1319 = vpop.permute.xlu0 %1318
        %v1320 = vsel %vm777, %v1297, %v1299
        %v1321 = vsel %vm777, %v1299, %v1301
        %v1322 = vsel %vm777, %v1303, %v1305
        %v1323 = vsel %vm777, %v1305, %v1307
        %v1324 = vsel %vm777, %v1309, %v1311
        %v1325 = vsel %vm777, %v1311, %v1313
        %v1326 = vsel %vm777, %v1315, %v1317
        %v1327 = vsel %vm777, %v1317, %v1319
        %1336 = vst [vmem:[#allocation3 + $0xc0] sm:$0xff] %v1320
        %1337 = vst [vmem:[#allocation3 + $0xc8] sm:$0xff] %v1321
        %1338 = vst [vmem:[#allocation3 + $0xd0] sm:$0xff] %v1322
        %1339 = vst [vmem:[#allocation3 + $0xd8] sm:$0xff] %v1323
        %1340 = vst [vmem:[#allocation3 + $0xe0] sm:$0xff] %v1324
        %1341 = vst [vmem:[#allocation3 + $0xe8] sm:$0xff] %v1325
        %1342 = vst [vmem:[#allocation3 + $0xf0] sm:$0xff] %v1326
        %1343 = vst [vmem:[#allocation3 + $0xf8] sm:$0xff] %v1327
        %s1344 = scalar_lea.vmem %s3, 32
        %v1345 = vld [vmem:[%s1344] sm:$0xff]
        %v1346 = vld [vmem:[%s1344 + $0x8] sm:$0xff]
        %v1347 = vld [vmem:[%s1344 + $0x10] sm:$0xff]
        %v1348 = vld [vmem:[%s1344 + $0x18] sm:$0xff]
        %v1349 = vld [vmem:[#allocation3] sm:$0xff]
        %v1350 = vld [vmem:[#allocation3 + $0x8] sm:$0xff]
        %v1351 = vld [vmem:[#allocation3 + $0x10] sm:$0xff]
        %v1352 = vld [vmem:[#allocation3 + $0x18] sm:$0xff]
        %v1353 = vld [vmem:[#allocation3 + $0x20] sm:$0xff]
        %v1354 = vld [vmem:[#allocation3 + $0x28] sm:$0xff]
        %v1355 = vld [vmem:[#allocation3 + $0x30] sm:$0xff]
        %v1356 = vld [vmem:[#allocation3 + $0x38] sm:$0xff]
        %v1357 = vld [vmem:[#allocation3 + $0x40] sm:$0xff]
        %v1358 = vld [vmem:[#allocation3 + $0x48] sm:$0xff]
        %v1359 = vld [vmem:[#allocation3 + $0x50] sm:$0xff]
        %v1360 = vld [vmem:[#allocation3 + $0x58] sm:$0xff]
        %v1361 = vld [vmem:[#allocation3 + $0x60] sm:$0xff]
        %v1362 = vld [vmem:[#allocation3 + $0x68] sm:$0xff]
        %v1363 = vld [vmem:[#allocation3 + $0x70] sm:$0xff]
        %v1364 = vld [vmem:[#allocation3 + $0x78] sm:$0xff]
        %v1365 = vld [vmem:[#allocation3 + $0x80] sm:$0xff]
        %v1366 = vld [vmem:[#allocation3 + $0x88] sm:$0xff]
        %v1367 = vld [vmem:[#allocation3 + $0x90] sm:$0xff]
        %v1368 = vld [vmem:[#allocation3 + $0x98] sm:$0xff]
        %v1369 = vld [vmem:[#allocation3 + $0xa0] sm:$0xff]
        %v1370 = vld [vmem:[#allocation3 + $0xa8] sm:$0xff]
        %v1371 = vld [vmem:[#allocation3 + $0xb0] sm:$0xff]
        %v1372 = vld [vmem:[#allocation3 + $0xb8] sm:$0xff]
        %v1373 = vld [vmem:[#allocation3 + $0xc0] sm:$0xff]
        %v1374 = vld [vmem:[#allocation3 + $0xc8] sm:$0xff]
        %v1375 = vld [vmem:[#allocation3 + $0xd0] sm:$0xff]
        %v1376 = vld [vmem:[#allocation3 + $0xd8] sm:$0xff]
        %v1377 = vld [vmem:[#allocation3 + $0xe0] sm:$0xff]
        %v1378 = vld [vmem:[#allocation3 + $0xe8] sm:$0xff]
        %v1379 = vld [vmem:[#allocation3 + $0xf0] sm:$0xff]
        %v1380 = vld [vmem:[#allocation3 + $0xf8] sm:$0xff]
        %1381 = vmatprep.subr.mxu0 %v1380
        %1382 = vmatpush1.msra.mxu0 %v1379
        %1383 = vmatprep.subr.mxu0 %v1378
        %1384 = vmatpush1.msra.mxu0 %v1377
        %1385 = vmatprep.subr.mxu0 %v1376
        %1386 = vmatpush1.msra.mxu0 %v1375
        %1387 = vmatprep.subr.mxu0 %v1374
        %1388 = vmatpush1.msra.mxu0 %v1373
        %1389 = vmatprep.subr.mxu0 %v1372
        %1390 = vmatpush1.msra.mxu0 %v1371
        %1391 = vmatprep.subr.mxu0 %v1370
        %1392 = vmatpush1.msra.mxu0 %v1369
        %1393 = vmatprep.subr.mxu0 %v1368
        %1394 = vmatpush1.msra.mxu0 %v1367
        %1395 = vmatprep.subr.mxu0 %v1366
        %1396 = vmatpush1.msra.mxu0 %v1365
        %1397 = vmatprep.subr.mxu0 %v1364
        %1398 = vmatpush1.msra.mxu0 %v1363
        %1399 = vmatprep.subr.mxu0 %v1362
        %1400 = vmatpush1.msra.mxu0 %v1361
        %1401 = vmatprep.subr.mxu0 %v1360
        %1402 = vmatpush1.msra.mxu0 %v1359
        %1403 = vmatprep.subr.mxu0 %v1358
        %1404 = vmatpush1.msra.mxu0 %v1357
        %1405 = vmatprep.subr.mxu0 %v1356
        %1406 = vmatpush1.msra.mxu0 %v1355
        %1407 = vmatprep.subr.mxu0 %v1354
        %1408 = vmatpush1.msra.mxu0 %v1353
        %1409 = vmatprep.subr.mxu0 %v1352
        %1410 = vmatpush1.msra.mxu0 %v1351
        %1411 = vmatprep.subr.mxu0 %v1350
        %1412 = vmatpush1.msra.mxu0 %v1349
        %1413 = vmatprep.subr.mxu0 0.0
        %1414 = vmatpush2.msra.mxu0 0.0
        %1415 = vmatprep.subr.mxu0 0.0
        %1416 = vmatpush2.msra.mxu0 0.0
        %1417 = vmatprep.subr.mxu0 0.0
        %1418 = vmatpush2.msra.mxu0 0.0
        %1419 = vmatprep.subr.mxu0 0.0
        %1420 = vmatpush2.msra.mxu0 0.0
        %1421 = vmatprep.subr.mxu0 0.0
        %1422 = vmatpush2.msra.mxu0 0.0
        %1423 = vmatprep.subr.mxu0 0.0
        %1424 = vmatpush2.msra.mxu0 0.0
        %1425 = vmatprep.subr.mxu0 0.0
        %1426 = vmatpush2.msra.mxu0 0.0
        %1427 = vmatprep.subr.mxu0 0.0
        %1428 = vmatpush2.msra.mxu0 0.0
        %1429 = vmatprep.subr.mxu0 0.0
        %1430 = vmatpush2.msra.mxu0 0.0
        %1431 = vmatprep.subr.mxu0 0.0
        %1432 = vmatpush2.msra.mxu0 0.0
        %1433 = vmatprep.subr.mxu0 0.0
        %1434 = vmatpush2.msra.mxu0 0.0
        %1435 = vmatprep.subr.mxu0 0.0
        %1436 = vmatpush2.msra.mxu0 0.0
        %1437 = vmatprep.subr.mxu0 0.0
        %1438 = vmatpush2.msra.mxu0 0.0
        %1439 = vmatprep.subr.mxu0 0.0
        %1440 = vmatpush2.msra.mxu0 0.0
        %1441 = vmatprep.subr.mxu0 0.0
        %1442 = vmatpush2.msra.mxu0 0.0
        %1443 = vmatprep.subr.mxu0 0.0
        %1444 = vmatpush2.msra.mxu0 0.0
        %1445 = vmatprep.mubr.f32.mxu0 0.0
        %1446 = vmatmul.mubr.f32.gmra.mxu0 %v1345
        %v1447 = vpop.f32.mrf.mxu0
        %v1448 = vadd.f32 %v877, %v1447
        %v1449 = vpop.f32.mrf.mxu0
        %v1450 = vadd.f32 %v877, %v1449
        %1451 = vmatprep.mubr.f32.mxu0 0.0
        %1452 = vmatmul.mubr.f32.gmra.mxu0 %v1346
        %v1453 = vpop.f32.mrf.mxu0
        %v1454 = vadd.f32 %v882, %v1453
        %v1455 = vpop.f32.mrf.mxu0
        %v1456 = vadd.f32 %v882, %v1455
        %1457 = vmatprep.mubr.f32.mxu0 0.0
        %1458 = vmatmul.mubr.f32.gmra.mxu0 %v1347
        %v1459 = vpop.f32.mrf.mxu0
        %v1460 = vadd.f32 %v887, %v1459
        %v1461 = vpop.f32.mrf.mxu0
        %v1462 = vadd.f32 %v887, %v1461
        %1463 = vmatprep.mubr.f32.mxu0 0.0
        %1464 = vmatmul.mubr.f32.gmra.mxu0 %v1348
        %v1465 = vpop.f32.mrf.mxu0
        %v1466 = vadd.f32 %v892, %v1465
        %v1467 = vpop.f32.mrf.mxu0
        %v1468 = vadd.f32 %v892, %v1467
        %1469 = vdwg.mxu0
        %1470 = vst [vmem:[%s264 + $0x10] sm:$0xff] %v1448
        %1471 = vst [vmem:[%s264 + $0x18] sm:$0xff] %v1450
        %1472 = vst [vmem:[%s264 + $0x50] sm:$0xff] %v1454
        %1473 = vst [vmem:[%s264 + $0x58] sm:$0xff] %v1456
        %1474 = vst [vmem:[%s264 + $0x90] sm:$0xff] %v1460
        %1475 = vst [vmem:[%s264 + $0x98] sm:$0xff] %v1462
        %1476 = vst [vmem:[%s264 + $0xd0] sm:$0xff] %v1466
        %1477 = vst [vmem:[%s264 + $0xd8] sm:$0xff] %v1468
        %v1478 = vld [vmem:[#allocation2] sm:$0xff]
        %v1479 = vld [vmem:[#allocation2 + $0x8] sm:$0xff]
        %v1480 = vld [vmem:[#allocation2 + $0x10] sm:$0xff]
        %v1481 = vld [vmem:[#allocation2 + $0x18] sm:$0xff]
        %v1482 = vld [vmem:[#allocation2 + $0x20] sm:$0xff]
        %v1483 = vld [vmem:[#allocation2 + $0x28] sm:$0xff]
        %v1484 = vld [vmem:[#allocation2 + $0x30] sm:$0xff]
        %v1485 = vld [vmem:[#allocation2 + $0x38] sm:$0xff]
        %v1486 = vld [vmem:[#allocation2 + $0x40] sm:$0xff]
        %v1487 = vld [vmem:[#allocation2 + $0x48] sm:$0xff]
        %v1488 = vld [vmem:[#allocation2 + $0x50] sm:$0xff]
        %v1489 = vld [vmem:[#allocation2 + $0x58] sm:$0xff]
        %1502 = vrot.lane.b32.xlu0 %v1478, 95
        %v1503 = vpop.permute.xlu0 %1502
        %1504 = vrot.lane.b32.xlu0 %v1479, 95
        %v1505 = vpop.permute.xlu0 %1504
        %1506 = vrot.lane.b32.xlu0 %v1480, 95
        %v1507 = vpop.permute.xlu0 %1506
        %1508 = vrot.lane.b32.xlu0 %v1481, 95
        %v1509 = vpop.permute.xlu0 %1508
        %1510 = vrot.lane.b32.xlu0 %v1482, 95
        %v1511 = vpop.permute.xlu0 %1510
        %1512 = vrot.lane.b32.xlu0 %v1483, 95
        %v1513 = vpop.permute.xlu0 %1512
        %1514 = vrot.lane.b32.xlu0 %v1484, 95
        %v1515 = vpop.permute.xlu0 %1514
        %1516 = vrot.lane.b32.xlu0 %v1485, 95
        %v1517 = vpop.permute.xlu0 %1516
        %1518 = vrot.lane.b32.xlu0 %v1486, 95
        %v1519 = vpop.permute.xlu0 %1518
        %1520 = vrot.lane.b32.xlu0 %v1487, 95
        %v1521 = vpop.permute.xlu0 %1520
        %1522 = vrot.lane.b32.xlu0 %v1488, 95
        %v1523 = vpop.permute.xlu0 %1522
        %1524 = vrot.lane.b32.xlu0 %v1489, 95
        %v1525 = vpop.permute.xlu0 %1524
        %vm1526 = vcmask 777216
        %v1527 = vsel %vm1526, %v1503, %v1505
        %v1528 = vsel %vm1526, %v1505, %v1507
        %v1529 = vsel %vm1526, %v1509, %v1511
        %v1530 = vsel %vm1526, %v1511, %v1513
        %v1531 = vsel %vm1526, %v1515, %v1517
        %v1532 = vsel %vm1526, %v1517, %v1519
        %v1533 = vsel %vm1526, %v1521, %v1523
        %v1534 = vsel %vm1526, %v1523, %v1525
        %1543 = vst [vmem:[#allocation3] sm:$0xff] %v1527
        %1544 = vst [vmem:[#allocation3 + $0x8] sm:$0xff] %v1528
        %1545 = vst [vmem:[#allocation3 + $0x10] sm:$0xff] %v1529
        %1546 = vst [vmem:[#allocation3 + $0x18] sm:$0xff] %v1530
        %1547 = vst [vmem:[#allocation3 + $0x20] sm:$0xff] %v1531
        %1548 = vst [vmem:[#allocation3 + $0x28] sm:$0xff] %v1532
        %1549 = vst [vmem:[#allocation3 + $0x30] sm:$0xff] %v1533
        %1550 = vst [vmem:[#allocation3 + $0x38] sm:$0xff] %v1534
        %v1551 = vld [vmem:[#allocation2] sm:$0xff]
        %v1552 = vld [vmem:[#allocation2 + $0x8] sm:$0xff]
        %v1553 = vld [vmem:[#allocation2 + $0x10] sm:$0xff]
        %v1554 = vld [vmem:[#allocation2 + $0x18] sm:$0xff]
        %v1555 = vld [vmem:[#allocation2 + $0x20] sm:$0xff]
        %v1556 = vld [vmem:[#allocation2 + $0x28] sm:$0xff]
        %v1557 = vld [vmem:[#allocation2 + $0x30] sm:$0xff]
        %v1558 = vld [vmem:[#allocation2 + $0x38] sm:$0xff]
        %v1559 = vld [vmem:[#allocation2 + $0x40] sm:$0xff]
        %v1560 = vld [vmem:[#allocation2 + $0x48] sm:$0xff]
        %v1561 = vld [vmem:[#allocation2 + $0x50] sm:$0xff]
        %v1562 = vld [vmem:[#allocation2 + $0x58] sm:$0xff]
        %v1563 = vld [vmem:[#allocation4] ss:$4 sm:$0x3]
        %v1565 = vlaneseq
        %v1566 = vshrl.u32 %v1565, 7
        %v1567 = vsub.s32 0, %v1566
        %v1568 = vrot.slane %v1563, %v1567
        %v1569 = vlaneseq
        %v1570 = vshrl.u32 %v1569, 7
        %v1571 = vsub.s32 1, %v1570
        %v1572 = vrot.slane %v1563, %v1571
        %1573 = vrot.lane.b32.xlu0 %v1568, 32
        %v1574 = vpop.permute.xlu0 %1573
        %1575 = vrot.lane.b32.xlu0 %v1572, 32
        %v1576 = vpop.permute.xlu0 %1575
        %vm1577 = vcmask 261120
        %v1578 = vsel %vm1577, %v1574, %v1576
        %v1582 = vmul.f32 %v1551, %v1574
        %v1583 = vmul.f32 %v1552, %v1578
        %v1584 = vmul.f32 %v1553, %v1576
        %v1585 = vmul.f32 %v1554, %v1574
        %v1586 = vmul.f32 %v1555, %v1578
        %v1587 = vmul.f32 %v1556, %v1576
        %v1588 = vmul.f32 %v1557, %v1574
        %v1589 = vmul.f32 %v1558, %v1578
        %v1590 = vmul.f32 %v1559, %v1576
        %v1591 = vmul.f32 %v1560, %v1574
        %v1592 = vmul.f32 %v1561, %v1578
        %v1593 = vmul.f32 %v1562, %v1576
        %1606 = vrot.lane.b32.xlu0 %v1582, 96
        %v1607 = vpop.permute.xlu0 %1606
        %1608 = vrot.lane.b32.xlu0 %v1583, 96
        %v1609 = vpop.permute.xlu0 %1608
        %1610 = vrot.lane.b32.xlu0 %v1584, 96
        %v1611 = vpop.permute.xlu0 %1610
        %1612 = vrot.lane.b32.xlu0 %v1585, 96
        %v1613 = vpop.permute.xlu0 %1612
        %1614 = vrot.lane.b32.xlu0 %v1586, 96
        %v1615 = vpop.permute.xlu0 %1614
        %1616 = vrot.lane.b32.xlu0 %v1587, 96
        %v1617 = vpop.permute.xlu0 %1616
        %1618 = vrot.lane.b32.xlu0 %v1588, 96
        %v1619 = vpop.permute.xlu0 %1618
        %1620 = vrot.lane.b32.xlu0 %v1589, 96
        %v1621 = vpop.permute.xlu0 %1620
        %1622 = vrot.lane.b32.xlu0 %v1590, 96
        %v1623 = vpop.permute.xlu0 %1622
        %1624 = vrot.lane.b32.xlu0 %v1591, 96
        %v1625 = vpop.permute.xlu0 %1624
        %1626 = vrot.lane.b32.xlu0 %v1592, 96
        %v1627 = vpop.permute.xlu0 %1626
        %1628 = vrot.lane.b32.xlu0 %v1593, 96
        %v1629 = vpop.permute.xlu0 %1628
        %vm1630 = vcmask 785408
        %v1631 = vsel %vm1630, %v1607, %v1609
        %v1632 = vsel %vm1630, %v1609, %v1611
        %v1633 = vsel %vm1630, %v1613, %v1615
        %v1634 = vsel %vm1630, %v1615, %v1617
        %v1635 = vsel %vm1630, %v1619, %v1621
        %v1636 = vsel %vm1630, %v1621, %v1623
        %v1637 = vsel %vm1630, %v1625, %v1627
        %v1638 = vsel %vm1630, %v1627, %v1629
        %1647 = vst [vmem:[#allocation3 + $0x40] sm:$0xff] %v1631
        %1648 = vst [vmem:[#allocation3 + $0x48] sm:$0xff] %v1632
        %1649 = vst [vmem:[#allocation3 + $0x50] sm:$0xff] %v1633
        %1650 = vst [vmem:[#allocation3 + $0x58] sm:$0xff] %v1634
        %1651 = vst [vmem:[#allocation3 + $0x60] sm:$0xff] %v1635
        %1652 = vst [vmem:[#allocation3 + $0x68] sm:$0xff] %v1636
        %1653 = vst [vmem:[#allocation3 + $0x70] sm:$0xff] %v1637
        %1654 = vst [vmem:[#allocation3 + $0x78] sm:$0xff] %v1638
        %v1655 = vld [vmem:[#allocation2] sm:$0xff]
        %v1656 = vld [vmem:[#allocation2 + $0x8] sm:$0xff]
        %v1657 = vld [vmem:[#allocation2 + $0x10] sm:$0xff]
        %v1658 = vld [vmem:[#allocation2 + $0x18] sm:$0xff]
        %v1659 = vld [vmem:[#allocation2 + $0x20] sm:$0xff]
        %v1660 = vld [vmem:[#allocation2 + $0x28] sm:$0xff]
        %v1661 = vld [vmem:[#allocation2 + $0x30] sm:$0xff]
        %v1662 = vld [vmem:[#allocation2 + $0x38] sm:$0xff]
        %v1663 = vld [vmem:[#allocation2 + $0x40] sm:$0xff]
        %v1664 = vld [vmem:[#allocation2 + $0x48] sm:$0xff]
        %v1665 = vld [vmem:[#allocation2 + $0x50] sm:$0xff]
        %v1666 = vld [vmem:[#allocation2 + $0x58] sm:$0xff]
        %1679 = vrot.lane.b32.xlu0 %v1655, 111
        %v1680 = vpop.permute.xlu0 %1679
        %1681 = vrot.lane.b32.xlu0 %v1656, 111
        %v1682 = vpop.permute.xlu0 %1681
        %1683 = vrot.lane.b32.xlu0 %v1657, 111
        %v1684 = vpop.permute.xlu0 %1683
        %1685 = vrot.lane.b32.xlu0 %v1658, 111
        %v1686 = vpop.permute.xlu0 %1685
        %1687 = vrot.lane.b32.xlu0 %v1659, 111
        %v1688 = vpop.permute.xlu0 %1687
        %1689 = vrot.lane.b32.xlu0 %v1660, 111
        %v1690 = vpop.permute.xlu0 %1689
        %1691 = vrot.lane.b32.xlu0 %v1661, 111
        %v1692 = vpop.permute.xlu0 %1691
        %1693 = vrot.lane.b32.xlu0 %v1662, 111
        %v1694 = vpop.permute.xlu0 %1693
        %1695 = vrot.lane.b32.xlu0 %v1663, 111
        %v1696 = vpop.permute.xlu0 %1695
        %1697 = vrot.lane.b32.xlu0 %v1664, 111
        %v1698 = vpop.permute.xlu0 %1697
        %1699 = vrot.lane.b32.xlu0 %v1665, 111
        %v1700 = vpop.permute.xlu0 %1699
        %1701 = vrot.lane.b32.xlu0 %v1666, 111
        %v1702 = vpop.permute.xlu0 %1701
        %v1703 = vsel %vm600, %v1680, %v1682
        %v1704 = vsel %vm600, %v1682, %v1684
        %v1705 = vsel %vm600, %v1686, %v1688
        %v1706 = vsel %vm600, %v1688, %v1690
        %v1707 = vsel %vm600, %v1692, %v1694
        %v1708 = vsel %vm600, %v1694, %v1696
        %v1709 = vsel %vm600, %v1698, %v1700
        %v1710 = vsel %vm600, %v1700, %v1702
        %1719 = vst [vmem:[#allocation3 + $0x80] sm:$0xff] %v1703
        %1720 = vst [vmem:[#allocation3 + $0x88] sm:$0xff] %v1704
        %1721 = vst [vmem:[#allocation3 + $0x90] sm:$0xff] %v1705
        %1722 = vst [vmem:[#allocation3 + $0x98] sm:$0xff] %v1706
        %1723 = vst [vmem:[#allocation3 + $0xa0] sm:$0xff] %v1707
        %1724 = vst [vmem:[#allocation3 + $0xa8] sm:$0xff] %v1708
        %1725 = vst [vmem:[#allocation3 + $0xb0] sm:$0xff] %v1709
        %1726 = vst [vmem:[#allocation3 + $0xb8] sm:$0xff] %v1710
        %v1727 = vld [vmem:[#allocation2] sm:$0xff]
        %v1728 = vld [vmem:[#allocation2 + $0x8] sm:$0xff]
        %v1729 = vld [vmem:[#allocation2 + $0x10] sm:$0xff]
        %v1730 = vld [vmem:[#allocation2 + $0x18] sm:$0xff]
        %v1731 = vld [vmem:[#allocation2 + $0x20] sm:$0xff]
        %v1732 = vld [vmem:[#allocation2 + $0x28] sm:$0xff]
        %v1733 = vld [vmem:[#allocation2 + $0x30] sm:$0xff]
        %v1734 = vld [vmem:[#allocation2 + $0x38] sm:$0xff]
        %v1735 = vld [vmem:[#allocation2 + $0x40] sm:$0xff]
        %v1736 = vld [vmem:[#allocation2 + $0x48] sm:$0xff]
        %v1737 = vld [vmem:[#allocation2 + $0x50] sm:$0xff]
        %v1738 = vld [vmem:[#allocation2 + $0x58] sm:$0xff]
        %v1739 = vld [vmem:[#allocation4] ss:$4 sm:$0x3]
        %v1741 = vlaneseq
        %v1742 = vshrl.u32 %v1741, 7
        %v1743 = vsub.s32 0, %v1742
        %v1744 = vrot.slane %v1739, %v1743
        %v1745 = vlaneseq
        %v1746 = vshrl.u32 %v1745, 7
        %v1747 = vsub.s32 1, %v1746
        %v1748 = vrot.slane %v1739, %v1747
        %1749 = vrot.lane.b32.xlu0 %v1744, 16
        %v1750 = vpop.permute.xlu0 %1749
        %1751 = vrot.lane.b32.xlu0 %v1748, 16
        %v1752 = vpop.permute.xlu0 %1751
        %v1753 = vsel %vm651, %v1750, %v1752
        %v1757 = vmul.f32 %v1727, %v1750
        %v1758 = vmul.f32 %v1728, %v1753
        %v1759 = vmul.f32 %v1729, %v1752
        %v1760 = vmul.f32 %v1730, %v1750
        %v1761 = vmul.f32 %v1731, %v1753
        %v1762 = vmul.f32 %v1732, %v1752
        %v1763 = vmul.f32 %v1733, %v1750
        %v1764 = vmul.f32 %v1734, %v1753
        %v1765 = vmul.f32 %v1735, %v1752
        %v1766 = vmul.f32 %v1736, %v1750
        %v1767 = vmul.f32 %v1737, %v1753
        %v1768 = vmul.f32 %v1738, %v1752
        %1781 = vrot.lane.b32.xlu0 %v1757, 112
        %v1782 = vpop.permute.xlu0 %1781
        %1783 = vrot.lane.b32.xlu0 %v1758, 112
        %v1784 = vpop.permute.xlu0 %1783
        %1785 = vrot.lane.b32.xlu0 %v1759, 112
        %v1786 = vpop.permute.xlu0 %1785
        %1787 = vrot.lane.b32.xlu0 %v1760, 112
        %v1788 = vpop.permute.xlu0 %1787
        %1789 = vrot.lane.b32.xlu0 %v1761, 112
        %v1790 = vpop.permute.xlu0 %1789
        %1791 = vrot.lane.b32.xlu0 %v1762, 112
        %v1792 = vpop.permute.xlu0 %1791
        %1793 = vrot.lane.b32.xlu0 %v1763, 112
        %v1794 = vpop.permute.xlu0 %1793
        %1795 = vrot.lane.b32.xlu0 %v1764, 112
        %v1796 = vpop.permute.xlu0 %1795
        %1797 = vrot.lane.b32.xlu0 %v1765, 112
        %v1798 = vpop.permute.xlu0 %1797
        %1799 = vrot.lane.b32.xlu0 %v1766, 112
        %v1800 = vpop.permute.xlu0 %1799
        %1801 = vrot.lane.b32.xlu0 %v1767, 112
        %v1802 = vpop.permute.xlu0 %1801
        %1803 = vrot.lane.b32.xlu0 %v1768, 112
        %v1804 = vpop.permute.xlu0 %1803
        %v1805 = vsel %vm704, %v1782, %v1784
        %v1806 = vsel %vm704, %v1784, %v1786
        %v1807 = vsel %vm704, %v1788, %v1790
        %v1808 = vsel %vm704, %v1790, %v1792
        %v1809 = vsel %vm704, %v1794, %v1796
        %v1810 = vsel %vm704, %v1796, %v1798
        %v1811 = vsel %vm704, %v1800, %v1802
        %v1812 = vsel %vm704, %v1802, %v1804
        %1821 = vst [vmem:[#allocation3 + $0xc0] sm:$0xff] %v1805
        %1822 = vst [vmem:[#allocation3 + $0xc8] sm:$0xff] %v1806
        %1823 = vst [vmem:[#allocation3 + $0xd0] sm:$0xff] %v1807
        %1824 = vst [vmem:[#allocation3 + $0xd8] sm:$0xff] %v1808
        %1825 = vst [vmem:[#allocation3 + $0xe0] sm:$0xff] %v1809
        %1826 = vst [vmem:[#allocation3 + $0xe8] sm:$0xff] %v1810
        %1827 = vst [vmem:[#allocation3 + $0xf0] sm:$0xff] %v1811
        %1828 = vst [vmem:[#allocation3 + $0xf8] sm:$0xff] %v1812
        %s1829 = scalar_lea.vmem %s3, 64
        %v1830 = vld [vmem:[%s1829] sm:$0xff]
        %v1831 = vld [vmem:[%s1829 + $0x8] sm:$0xff]
        %v1832 = vld [vmem:[%s1829 + $0x10] sm:$0xff]
        %v1833 = vld [vmem:[%s1829 + $0x18] sm:$0xff]
        %v1834 = vld [vmem:[#allocation3] sm:$0xff]
        %v1835 = vld [vmem:[#allocation3 + $0x8] sm:$0xff]
        %v1836 = vld [vmem:[#allocation3 + $0x10] sm:$0xff]
        %v1837 = vld [vmem:[#allocation3 + $0x18] sm:$0xff]
        %v1838 = vld [vmem:[#allocation3 + $0x20] sm:$0xff]
        %v1839 = vld [vmem:[#allocation3 + $0x28] sm:$0xff]
        %v1840 = vld [vmem:[#allocation3 + $0x30] sm:$0xff]
        %v1841 = vld [vmem:[#allocation3 + $0x38] sm:$0xff]
        %v1842 = vld [vmem:[#allocation3 + $0x40] sm:$0xff]
        %v1843 = vld [vmem:[#allocation3 + $0x48] sm:$0xff]
        %v1844 = vld [vmem:[#allocation3 + $0x50] sm:$0xff]
        %v1845 = vld [vmem:[#allocation3 + $0x58] sm:$0xff]
        %v1846 = vld [vmem:[#allocation3 + $0x60] sm:$0xff]
        %v1847 = vld [vmem:[#allocation3 + $0x68] sm:$0xff]
        %v1848 = vld [vmem:[#allocation3 + $0x70] sm:$0xff]
        %v1849 = vld [vmem:[#allocation3 + $0x78] sm:$0xff]
        %v1850 = vld [vmem:[#allocation3 + $0x80] sm:$0xff]
        %v1851 = vld [vmem:[#allocation3 + $0x88] sm:$0xff]
        %v1852 = vld [vmem:[#allocation3 + $0x90] sm:$0xff]
        %v1853 = vld [vmem:[#allocation3 + $0x98] sm:$0xff]
        %v1854 = vld [vmem:[#allocation3 + $0xa0] sm:$0xff]
        %v1855 = vld [vmem:[#allocation3 + $0xa8] sm:$0xff]
        %v1856 = vld [vmem:[#allocation3 + $0xb0] sm:$0xff]
        %v1857 = vld [vmem:[#allocation3 + $0xb8] sm:$0xff]
        %v1858 = vld [vmem:[#allocation3 + $0xc0] sm:$0xff]
        %v1859 = vld [vmem:[#allocation3 + $0xc8] sm:$0xff]
        %v1860 = vld [vmem:[#allocation3 + $0xd0] sm:$0xff]
        %v1861 = vld [vmem:[#allocation3 + $0xd8] sm:$0xff]
        %v1862 = vld [vmem:[#allocation3 + $0xe0] sm:$0xff]
        %v1863 = vld [vmem:[#allocation3 + $0xe8] sm:$0xff]
        %v1864 = vld [vmem:[#allocation3 + $0xf0] sm:$0xff]
        %v1865 = vld [vmem:[#allocation3 + $0xf8] sm:$0xff]
        %1866 = vmatprep.subr.mxu0 %v1865
        %1867 = vmatpush1.msra.mxu0 %v1864
        %1868 = vmatprep.subr.mxu0 %v1863
        %1869 = vmatpush1.msra.mxu0 %v1862
        %1870 = vmatprep.subr.mxu0 %v1861
        %1871 = vmatpush1.msra.mxu0 %v1860
        %1872 = vmatprep.subr.mxu0 %v1859
        %1873 = vmatpush1.msra.mxu0 %v1858
        %1874 = vmatprep.subr.mxu0 %v1857
        %1875 = vmatpush1.msra.mxu0 %v1856
        %1876 = vmatprep.subr.mxu0 %v1855
        %1877 = vmatpush1.msra.mxu0 %v1854
        %1878 = vmatprep.subr.mxu0 %v1853
        %1879 = vmatpush1.msra.mxu0 %v1852
        %1880 = vmatprep.subr.mxu0 %v1851
        %1881 = vmatpush1.msra.mxu0 %v1850
        %1882 = vmatprep.subr.mxu0 %v1849
        %1883 = vmatpush1.msra.mxu0 %v1848
        %1884 = vmatprep.subr.mxu0 %v1847
        %1885 = vmatpush1.msra.mxu0 %v1846
        %1886 = vmatprep.subr.mxu0 %v1845
        %1887 = vmatpush1.msra.mxu0 %v1844
        %1888 = vmatprep.subr.mxu0 %v1843
        %1889 = vmatpush1.msra.mxu0 %v1842
        %1890 = vmatprep.subr.mxu0 %v1841
        %1891 = vmatpush1.msra.mxu0 %v1840
        %1892 = vmatprep.subr.mxu0 %v1839
        %1893 = vmatpush1.msra.mxu0 %v1838
        %1894 = vmatprep.subr.mxu0 %v1837
        %1895 = vmatpush1.msra.mxu0 %v1836
        %1896 = vmatprep.subr.mxu0 %v1835
        %1897 = vmatpush1.msra.mxu0 %v1834
        %1898 = vmatprep.subr.mxu0 0.0
        %1899 = vmatpush2.msra.mxu0 0.0
        %1900 = vmatprep.subr.mxu0 0.0
        %1901 = vmatpush2.msra.mxu0 0.0
        %1902 = vmatprep.subr.mxu0 0.0
        %1903 = vmatpush2.msra.mxu0 0.0
        %1904 = vmatprep.subr.mxu0 0.0
        %1905 = vmatpush2.msra.mxu0 0.0
        %1906 = vmatprep.subr.mxu0 0.0
        %1907 = vmatpush2.msra.mxu0 0.0
        %1908 = vmatprep.subr.mxu0 0.0
        %1909 = vmatpush2.msra.mxu0 0.0
        %1910 = vmatprep.subr.mxu0 0.0
        %1911 = vmatpush2.msra.mxu0 0.0
        %1912 = vmatprep.subr.mxu0 0.0
        %1913 = vmatpush2.msra.mxu0 0.0
        %1914 = vmatprep.subr.mxu0 0.0
        %1915 = vmatpush2.msra.mxu0 0.0
        %1916 = vmatprep.subr.mxu0 0.0
        %1917 = vmatpush2.msra.mxu0 0.0
        %1918 = vmatprep.subr.mxu0 0.0
        %1919 = vmatpush2.msra.mxu0 0.0
        %1920 = vmatprep.subr.mxu0 0.0
        %1921 = vmatpush2.msra.mxu0 0.0
        %1922 = vmatprep.subr.mxu0 0.0
        %1923 = vmatpush2.msra.mxu0 0.0
        %1924 = vmatprep.subr.mxu0 0.0
        %1925 = vmatpush2.msra.mxu0 0.0
        %1926 = vmatprep.subr.mxu0 0.0
        %1927 = vmatpush2.msra.mxu0 0.0
        %1928 = vmatprep.subr.mxu0 0.0
        %1929 = vmatpush2.msra.mxu0 0.0
        %1930 = vmatprep.mubr.f32.mxu0 0.0
        %1931 = vmatmul.mubr.f32.gmra.mxu0 %v1830
        %v1932 = vpop.f32.mrf.mxu0
        %v1933 = vadd.f32 %v877, %v1932
        %v1934 = vpop.f32.mrf.mxu0
        %v1935 = vadd.f32 %v877, %v1934
        %1936 = vmatprep.mubr.f32.mxu0 0.0
        %1937 = vmatmul.mubr.f32.gmra.mxu0 %v1831
        %v1938 = vpop.f32.mrf.mxu0
        %v1939 = vadd.f32 %v882, %v1938
        %v1940 = vpop.f32.mrf.mxu0
        %v1941 = vadd.f32 %v882, %v1940
        %1942 = vmatprep.mubr.f32.mxu0 0.0
        %1943 = vmatmul.mubr.f32.gmra.mxu0 %v1832
        %v1944 = vpop.f32.mrf.mxu0
        %v1945 = vadd.f32 %v887, %v1944
        %v1946 = vpop.f32.mrf.mxu0
        %v1947 = vadd.f32 %v887, %v1946
        %1948 = vmatprep.mubr.f32.mxu0 0.0
        %1949 = vmatmul.mubr.f32.gmra.mxu0 %v1833
        %v1950 = vpop.f32.mrf.mxu0
        %v1951 = vadd.f32 %v892, %v1950
        %v1952 = vpop.f32.mrf.mxu0
        %v1953 = vadd.f32 %v892, %v1952
        %1954 = vdwg.mxu0
        %1955 = vst [vmem:[%s264 + $0x20] sm:$0xff] %v1933
        %1956 = vst [vmem:[%s264 + $0x28] sm:$0xff] %v1935
        %1957 = vst [vmem:[%s264 + $0x60] sm:$0xff] %v1939
        %1958 = vst [vmem:[%s264 + $0x68] sm:$0xff] %v1941
        %1959 = vst [vmem:[%s264 + $0xa0] sm:$0xff] %v1945
        %1960 = vst [vmem:[%s264 + $0xa8] sm:$0xff] %v1947
        %1961 = vst [vmem:[%s264 + $0xe0] sm:$0xff] %v1951
        %1962 = vst [vmem:[%s264 + $0xe8] sm:$0xff] %v1953
        %v1963 = vld [vmem:[#allocation2] sm:$0xff]
        %v1964 = vld [vmem:[#allocation2 + $0x8] sm:$0xff]
        %v1965 = vld [vmem:[#allocation2 + $0x10] sm:$0xff]
        %v1966 = vld [vmem:[#allocation2 + $0x18] sm:$0xff]
        %v1967 = vld [vmem:[#allocation2 + $0x20] sm:$0xff]
        %v1968 = vld [vmem:[#allocation2 + $0x28] sm:$0xff]
        %v1969 = vld [vmem:[#allocation2 + $0x30] sm:$0xff]
        %v1970 = vld [vmem:[#allocation2 + $0x38] sm:$0xff]
        %v1971 = vld [vmem:[#allocation2 + $0x40] sm:$0xff]
        %v1972 = vld [vmem:[#allocation2 + $0x48] sm:$0xff]
        %v1973 = vld [vmem:[#allocation2 + $0x50] sm:$0xff]
        %v1974 = vld [vmem:[#allocation2 + $0x58] sm:$0xff]
        %v1975 = vld [vmem:[%s1003] ss:$4 sm:$0x3]
        %v1977 = vlaneseq
        %v1978 = vshrl.u32 %v1977, 7
        %v1979 = vsub.s32 0, %v1978
        %v1980 = vrot.slane %v1975, %v1979
        %v1981 = vlaneseq
        %v1982 = vshrl.u32 %v1981, 7
        %v1983 = vsub.s32 1, %v1982
        %v1984 = vrot.slane %v1975, %v1983
        %1985 = vrot.lane.b32.xlu0 %v1980, 34
        %v1986 = vpop.permute.xlu0 %1985
        %1987 = vrot.lane.b32.xlu0 %v1984, 34
        %v1988 = vpop.permute.xlu0 %1987
        %v1989 = vsel %vm537, %v1986, %v1988
        %v1993 = vmul.f32 %v1963, %v1986
        %v1994 = vmul.f32 %v1964, %v1989
        %v1995 = vmul.f32 %v1965, %v1988
        %v1996 = vmul.f32 %v1966, %v1986
        %v1997 = vmul.f32 %v1967, %v1989
        %v1998 = vmul.f32 %v1968, %v1988
        %v1999 = vmul.f32 %v1969, %v1986
        %v2000 = vmul.f32 %v1970, %v1989
        %v2001 = vmul.f32 %v1971, %v1988
        %v2002 = vmul.f32 %v1972, %v1986
        %v2003 = vmul.f32 %v1973, %v1989
        %v2004 = vmul.f32 %v1974, %v1988
        %2017 = vrot.lane.b32.xlu0 %v1993, 94
        %v2018 = vpop.permute.xlu0 %2017
        %2019 = vrot.lane.b32.xlu0 %v1994, 94
        %v2020 = vpop.permute.xlu0 %2019
        %2021 = vrot.lane.b32.xlu0 %v1995, 94
        %v2022 = vpop.permute.xlu0 %2021
        %2023 = vrot.lane.b32.xlu0 %v1996, 94
        %v2024 = vpop.permute.xlu0 %2023
        %2025 = vrot.lane.b32.xlu0 %v1997, 94
        %v2026 = vpop.permute.xlu0 %2025
        %2027 = vrot.lane.b32.xlu0 %v1998, 94
        %v2028 = vpop.permute.xlu0 %2027
        %2029 = vrot.lane.b32.xlu0 %v1999, 94
        %v2030 = vpop.permute.xlu0 %2029
        %2031 = vrot.lane.b32.xlu0 %v2000, 94
        %v2032 = vpop.permute.xlu0 %2031
        %2033 = vrot.lane.b32.xlu0 %v2001, 94
        %v2034 = vpop.permute.xlu0 %2033
        %2035 = vrot.lane.b32.xlu0 %v2002, 94
        %v2036 = vpop.permute.xlu0 %2035
        %2037 = vrot.lane.b32.xlu0 %v2003, 94
        %v2038 = vpop.permute.xlu0 %2037
        %2039 = vrot.lane.b32.xlu0 %v2004, 94
        %v2040 = vpop.permute.xlu0 %2039
        %vm2041 = vcmask 769024
        %v2042 = vsel %vm2041, %v2018, %v2020
        %v2043 = vsel %vm2041, %v2020, %v2022
        %v2044 = vsel %vm2041, %v2024, %v2026
        %v2045 = vsel %vm2041, %v2026, %v2028
        %v2046 = vsel %vm2041, %v2030, %v2032
        %v2047 = vsel %vm2041, %v2032, %v2034
        %v2048 = vsel %vm2041, %v2036, %v2038
        %v2049 = vsel %vm2041, %v2038, %v2040
        %2058 = vst [vmem:[#allocation3] sm:$0xff] %v2042
        %2059 = vst [vmem:[#allocation3 + $0x8] sm:$0xff] %v2043
        %2060 = vst [vmem:[#allocation3 + $0x10] sm:$0xff] %v2044
        %2061 = vst [vmem:[#allocation3 + $0x18] sm:$0xff] %v2045
        %2062 = vst [vmem:[#allocation3 + $0x20] sm:$0xff] %v2046
        %2063 = vst [vmem:[#allocation3 + $0x28] sm:$0xff] %v2047
        %2064 = vst [vmem:[#allocation3 + $0x30] sm:$0xff] %v2048
        %2065 = vst [vmem:[#allocation3 + $0x38] sm:$0xff] %v2049
        %v2066 = vld [vmem:[#allocation2] sm:$0xff]
        %v2067 = vld [vmem:[#allocation2 + $0x8] sm:$0xff]
        %v2068 = vld [vmem:[#allocation2 + $0x10] sm:$0xff]
        %v2069 = vld [vmem:[#allocation2 + $0x18] sm:$0xff]
        %v2070 = vld [vmem:[#allocation2 + $0x20] sm:$0xff]
        %v2071 = vld [vmem:[#allocation2 + $0x28] sm:$0xff]
        %v2072 = vld [vmem:[#allocation2 + $0x30] sm:$0xff]
        %v2073 = vld [vmem:[#allocation2 + $0x38] sm:$0xff]
        %v2074 = vld [vmem:[#allocation2 + $0x40] sm:$0xff]
        %v2075 = vld [vmem:[#allocation2 + $0x48] sm:$0xff]
        %v2076 = vld [vmem:[#allocation2 + $0x50] sm:$0xff]
        %v2077 = vld [vmem:[#allocation2 + $0x58] sm:$0xff]
        %2090 = vrot.lane.b32.xlu0 %v2066, 95
        %v2091 = vpop.permute.xlu0 %2090
        %2092 = vrot.lane.b32.xlu0 %v2067, 95
        %v2093 = vpop.permute.xlu0 %2092
        %2094 = vrot.lane.b32.xlu0 %v2068, 95
        %v2095 = vpop.permute.xlu0 %2094
        %2096 = vrot.lane.b32.xlu0 %v2069, 95
        %v2097 = vpop.permute.xlu0 %2096
        %2098 = vrot.lane.b32.xlu0 %v2070, 95
        %v2099 = vpop.permute.xlu0 %2098
        %2100 = vrot.lane.b32.xlu0 %v2071, 95
        %v2101 = vpop.permute.xlu0 %2100
        %2102 = vrot.lane.b32.xlu0 %v2072, 95
        %v2103 = vpop.permute.xlu0 %2102
        %2104 = vrot.lane.b32.xlu0 %v2073, 95
        %v2105 = vpop.permute.xlu0 %2104
        %2106 = vrot.lane.b32.xlu0 %v2074, 95
        %v2107 = vpop.permute.xlu0 %2106
        %2108 = vrot.lane.b32.xlu0 %v2075, 95
        %v2109 = vpop.permute.xlu0 %2108
        %2110 = vrot.lane.b32.xlu0 %v2076, 95
        %v2111 = vpop.permute.xlu0 %2110
        %2112 = vrot.lane.b32.xlu0 %v2077, 95
        %v2113 = vpop.permute.xlu0 %2112
        %v2114 = vsel %vm1526, %v2091, %v2093
        %v2115 = vsel %vm1526, %v2093, %v2095
        %v2116 = vsel %vm1526, %v2097, %v2099
        %v2117 = vsel %vm1526, %v2099, %v2101
        %v2118 = vsel %vm1526, %v2103, %v2105
        %v2119 = vsel %vm1526, %v2105, %v2107
        %v2120 = vsel %vm1526, %v2109, %v2111
        %v2121 = vsel %vm1526, %v2111, %v2113
        %2130 = vst [vmem:[#allocation3 + $0x40] sm:$0xff] %v2114
        %2131 = vst [vmem:[#allocation3 + $0x48] sm:$0xff] %v2115
        %2132 = vst [vmem:[#allocation3 + $0x50] sm:$0xff] %v2116
        %2133 = vst [vmem:[#allocation3 + $0x58] sm:$0xff] %v2117
        %2134 = vst [vmem:[#allocation3 + $0x60] sm:$0xff] %v2118
        %2135 = vst [vmem:[#allocation3 + $0x68] sm:$0xff] %v2119
        %2136 = vst [vmem:[#allocation3 + $0x70] sm:$0xff] %v2120
        %2137 = vst [vmem:[#allocation3 + $0x78] sm:$0xff] %v2121
        %v2138 = vld [vmem:[#allocation2] sm:$0xff]
        %v2139 = vld [vmem:[#allocation2 + $0x8] sm:$0xff]
        %v2140 = vld [vmem:[#allocation2 + $0x10] sm:$0xff]
        %v2141 = vld [vmem:[#allocation2 + $0x18] sm:$0xff]
        %v2142 = vld [vmem:[#allocation2 + $0x20] sm:$0xff]
        %v2143 = vld [vmem:[#allocation2 + $0x28] sm:$0xff]
        %v2144 = vld [vmem:[#allocation2 + $0x30] sm:$0xff]
        %v2145 = vld [vmem:[#allocation2 + $0x38] sm:$0xff]
        %v2146 = vld [vmem:[#allocation2 + $0x40] sm:$0xff]
        %v2147 = vld [vmem:[#allocation2 + $0x48] sm:$0xff]
        %v2148 = vld [vmem:[#allocation2 + $0x50] sm:$0xff]
        %v2149 = vld [vmem:[#allocation2 + $0x58] sm:$0xff]
        %v2150 = vld [vmem:[%s1003] ss:$4 sm:$0x3]
        %v2152 = vlaneseq
        %v2153 = vshrl.u32 %v2152, 7
        %v2154 = vsub.s32 0, %v2153
        %v2155 = vrot.slane %v2150, %v2154
        %v2156 = vlaneseq
        %v2157 = vshrl.u32 %v2156, 7
        %v2158 = vsub.s32 1, %v2157
        %v2159 = vrot.slane %v2150, %v2158
        %2160 = vrot.lane.b32.xlu0 %v2155, 18
        %v2161 = vpop.permute.xlu0 %2160
        %2162 = vrot.lane.b32.xlu0 %v2159, 18
        %v2163 = vpop.permute.xlu0 %2162
        %v2164 = vsel %vm1018, %v2161, %v2163
        %v2168 = vmul.f32 %v2138, %v2161
        %v2169 = vmul.f32 %v2139, %v2164
        %v2170 = vmul.f32 %v2140, %v2163
        %v2171 = vmul.f32 %v2141, %v2161
        %v2172 = vmul.f32 %v2142, %v2164
        %v2173 = vmul.f32 %v2143, %v2163
        %v2174 = vmul.f32 %v2144, %v2161
        %v2175 = vmul.f32 %v2145, %v2164
        %v2176 = vmul.f32 %v2146, %v2163
        %v2177 = vmul.f32 %v2147, %v2161
        %v2178 = vmul.f32 %v2148, %v2164
        %v2179 = vmul.f32 %v2149, %v2163
        %2192 = vrot.lane.b32.xlu0 %v2168, 110
        %v2193 = vpop.permute.xlu0 %2192
        %2194 = vrot.lane.b32.xlu0 %v2169, 110
        %v2195 = vpop.permute.xlu0 %2194
        %2196 = vrot.lane.b32.xlu0 %v2170, 110
        %v2197 = vpop.permute.xlu0 %2196
        %2198 = vrot.lane.b32.xlu0 %v2171, 110
        %v2199 = vpop.permute.xlu0 %2198
        %2200 = vrot.lane.b32.xlu0 %v2172, 110
        %v2201 = vpop.permute.xlu0 %2200
        %2202 = vrot.lane.b32.xlu0 %v2173, 110
        %v2203 = vpop.permute.xlu0 %2202
        %2204 = vrot.lane.b32.xlu0 %v2174, 110
        %v2205 = vpop.permute.xlu0 %2204
        %2206 = vrot.lane.b32.xlu0 %v2175, 110
        %v2207 = vpop.permute.xlu0 %2206
        %2208 = vrot.lane.b32.xlu0 %v2176, 110
        %v2209 = vpop.permute.xlu0 %2208
        %2210 = vrot.lane.b32.xlu0 %v2177, 110
        %v2211 = vpop.permute.xlu0 %2210
        %2212 = vrot.lane.b32.xlu0 %v2178, 110
        %v2213 = vpop.permute.xlu0 %2212
        %2214 = vrot.lane.b32.xlu0 %v2179, 110
        %v2215 = vpop.permute.xlu0 %2214
        %v2216 = vsel %vm1071, %v2193, %v2195
        %v2217 = vsel %vm1071, %v2195, %v2197
        %v2218 = vsel %vm1071, %v2199, %v2201
        %v2219 = vsel %vm1071, %v2201, %v2203
        %v2220 = vsel %vm1071, %v2205, %v2207
        %v2221 = vsel %vm1071, %v2207, %v2209
        %v2222 = vsel %vm1071, %v2211, %v2213
        %v2223 = vsel %vm1071, %v2213, %v2215
        %2232 = vst [vmem:[#allocation3 + $0x80] sm:$0xff] %v2216
        %2233 = vst [vmem:[#allocation3 + $0x88] sm:$0xff] %v2217
        %2234 = vst [vmem:[#allocation3 + $0x90] sm:$0xff] %v2218
        %2235 = vst [vmem:[#allocation3 + $0x98] sm:$0xff] %v2219
        %2236 = vst [vmem:[#allocation3 + $0xa0] sm:$0xff] %v2220
        %2237 = vst [vmem:[#allocation3 + $0xa8] sm:$0xff] %v2221
        %2238 = vst [vmem:[#allocation3 + $0xb0] sm:$0xff] %v2222
        %2239 = vst [vmem:[#allocation3 + $0xb8] sm:$0xff] %v2223
        %v2240 = vld [vmem:[#allocation2] sm:$0xff]
        %v2241 = vld [vmem:[#allocation2 + $0x8] sm:$0xff]
        %v2242 = vld [vmem:[#allocation2 + $0x10] sm:$0xff]
        %v2243 = vld [vmem:[#allocation2 + $0x18] sm:$0xff]
        %v2244 = vld [vmem:[#allocation2 + $0x20] sm:$0xff]
        %v2245 = vld [vmem:[#allocation2 + $0x28] sm:$0xff]
        %v2246 = vld [vmem:[#allocation2 + $0x30] sm:$0xff]
        %v2247 = vld [vmem:[#allocation2 + $0x38] sm:$0xff]
        %v2248 = vld [vmem:[#allocation2 + $0x40] sm:$0xff]
        %v2249 = vld [vmem:[#allocation2 + $0x48] sm:$0xff]
        %v2250 = vld [vmem:[#allocation2 + $0x50] sm:$0xff]
        %v2251 = vld [vmem:[#allocation2 + $0x58] sm:$0xff]
        %2264 = vrot.lane.b32.xlu0 %v2240, 111
        %v2265 = vpop.permute.xlu0 %2264
        %2266 = vrot.lane.b32.xlu0 %v2241, 111
        %v2267 = vpop.permute.xlu0 %2266
        %2268 = vrot.lane.b32.xlu0 %v2242, 111
        %v2269 = vpop.permute.xlu0 %2268
        %2270 = vrot.lane.b32.xlu0 %v2243, 111
        %v2271 = vpop.permute.xlu0 %2270
        %2272 = vrot.lane.b32.xlu0 %v2244, 111
        %v2273 = vpop.permute.xlu0 %2272
        %2274 = vrot.lane.b32.xlu0 %v2245, 111
        %v2275 = vpop.permute.xlu0 %2274
        %2276 = vrot.lane.b32.xlu0 %v2246, 111
        %v2277 = vpop.permute.xlu0 %2276
        %2278 = vrot.lane.b32.xlu0 %v2247, 111
        %v2279 = vpop.permute.xlu0 %2278
        %2280 = vrot.lane.b32.xlu0 %v2248, 111
        %v2281 = vpop.permute.xlu0 %2280
        %2282 = vrot.lane.b32.xlu0 %v2249, 111
        %v2283 = vpop.permute.xlu0 %2282
        %2284 = vrot.lane.b32.xlu0 %v2250, 111
        %v2285 = vpop.permute.xlu0 %2284
        %2286 = vrot.lane.b32.xlu0 %v2251, 111
        %v2287 = vpop.permute.xlu0 %2286
        %v2288 = vsel %vm600, %v2265, %v2267
        %v2289 = vsel %vm600, %v2267, %v2269
        %v2290 = vsel %vm600, %v2271, %v2273
        %v2291 = vsel %vm600, %v2273, %v2275
        %v2292 = vsel %vm600, %v2277, %v2279
        %v2293 = vsel %vm600, %v2279, %v2281
        %v2294 = vsel %vm600, %v2283, %v2285
        %v2295 = vsel %vm600, %v2285, %v2287
        %2304 = vst [vmem:[#allocation3 + $0xc0] sm:$0xff] %v2288
        %2305 = vst [vmem:[#allocation3 + $0xc8] sm:$0xff] %v2289
        %2306 = vst [vmem:[#allocation3 + $0xd0] sm:$0xff] %v2290
        %2307 = vst [vmem:[#allocation3 + $0xd8] sm:$0xff] %v2291
        %2308 = vst [vmem:[#allocation3 + $0xe0] sm:$0xff] %v2292
        %2309 = vst [vmem:[#allocation3 + $0xe8] sm:$0xff] %v2293
        %2310 = vst [vmem:[#allocation3 + $0xf0] sm:$0xff] %v2294
        %2311 = vst [vmem:[#allocation3 + $0xf8] sm:$0xff] %v2295
        %s2312 = scalar_lea.vmem %s3, 96
        %v2313 = vld [vmem:[%s2312] sm:$0xff]
        %v2314 = vld [vmem:[%s2312 + $0x8] sm:$0xff]
        %v2315 = vld [vmem:[%s2312 + $0x10] sm:$0xff]
        %v2316 = vld [vmem:[%s2312 + $0x18] sm:$0xff]
        %v2317 = vld [vmem:[#allocation3] sm:$0xff]
        %v2318 = vld [vmem:[#allocation3 + $0x8] sm:$0xff]
        %v2319 = vld [vmem:[#allocation3 + $0x10] sm:$0xff]
        %v2320 = vld [vmem:[#allocation3 + $0x18] sm:$0xff]
        %v2321 = vld [vmem:[#allocation3 + $0x20] sm:$0xff]
        %v2322 = vld [vmem:[#allocation3 + $0x28] sm:$0xff]
        %v2323 = vld [vmem:[#allocation3 + $0x30] sm:$0xff]
        %v2324 = vld [vmem:[#allocation3 + $0x38] sm:$0xff]
        %v2325 = vld [vmem:[#allocation3 + $0x40] sm:$0xff]
        %v2326 = vld [vmem:[#allocation3 + $0x48] sm:$0xff]
        %v2327 = vld [vmem:[#allocation3 + $0x50] sm:$0xff]
        %v2328 = vld [vmem:[#allocation3 + $0x58] sm:$0xff]
        %v2329 = vld [vmem:[#allocation3 + $0x60] sm:$0xff]
        %v2330 = vld [vmem:[#allocation3 + $0x68] sm:$0xff]
        %v2331 = vld [vmem:[#allocation3 + $0x70] sm:$0xff]
        %v2332 = vld [vmem:[#allocation3 + $0x78] sm:$0xff]
        %v2333 = vld [vmem:[#allocation3 + $0x80] sm:$0xff]
        %v2334 = vld [vmem:[#allocation3 + $0x88] sm:$0xff]
        %v2335 = vld [vmem:[#allocation3 + $0x90] sm:$0xff]
        %v2336 = vld [vmem:[#allocation3 + $0x98] sm:$0xff]
        %v2337 = vld [vmem:[#allocation3 + $0xa0] sm:$0xff]
        %v2338 = vld [vmem:[#allocation3 + $0xa8] sm:$0xff]
        %v2339 = vld [vmem:[#allocation3 + $0xb0] sm:$0xff]
        %v2340 = vld [vmem:[#allocation3 + $0xb8] sm:$0xff]
        %v2341 = vld [vmem:[#allocation3 + $0xc0] sm:$0xff]
        %v2342 = vld [vmem:[#allocation3 + $0xc8] sm:$0xff]
        %v2343 = vld [vmem:[#allocation3 + $0xd0] sm:$0xff]
        %v2344 = vld [vmem:[#allocation3 + $0xd8] sm:$0xff]
        %v2345 = vld [vmem:[#allocation3 + $0xe0] sm:$0xff]
        %v2346 = vld [vmem:[#allocation3 + $0xe8] sm:$0xff]
        %v2347 = vld [vmem:[#allocation3 + $0xf0] sm:$0xff]
        %v2348 = vld [vmem:[#allocation3 + $0xf8] sm:$0xff]
        %2349 = vmatprep.subr.mxu0 %v2348
        %2350 = vmatpush1.msra.mxu0 %v2347
        %2351 = vmatprep.subr.mxu0 %v2346
        %2352 = vmatpush1.msra.mxu0 %v2345
        %2353 = vmatprep.subr.mxu0 %v2344
        %2354 = vmatpush1.msra.mxu0 %v2343
        %2355 = vmatprep.subr.mxu0 %v2342
        %2356 = vmatpush1.msra.mxu0 %v2341
        %2357 = vmatprep.subr.mxu0 %v2340
        %2358 = vmatpush1.msra.mxu0 %v2339
        %2359 = vmatprep.subr.mxu0 %v2338
        %2360 = vmatpush1.msra.mxu0 %v2337
        %2361 = vmatprep.subr.mxu0 %v2336
        %2362 = vmatpush1.msra.mxu0 %v2335
        %2363 = vmatprep.subr.mxu0 %v2334
        %2364 = vmatpush1.msra.mxu0 %v2333
        %2365 = vmatprep.subr.mxu0 %v2332
        %2366 = vmatpush1.msra.mxu0 %v2331
        %2367 = vmatprep.subr.mxu0 %v2330
        %2368 = vmatpush1.msra.mxu0 %v2329
        %2369 = vmatprep.subr.mxu0 %v2328
        %2370 = vmatpush1.msra.mxu0 %v2327
        %2371 = vmatprep.subr.mxu0 %v2326
        %2372 = vmatpush1.msra.mxu0 %v2325
        %2373 = vmatprep.subr.mxu0 %v2324
        %2374 = vmatpush1.msra.mxu0 %v2323
        %2375 = vmatprep.subr.mxu0 %v2322
        %2376 = vmatpush1.msra.mxu0 %v2321
        %2377 = vmatprep.subr.mxu0 %v2320
        %2378 = vmatpush1.msra.mxu0 %v2319
        %2379 = vmatprep.subr.mxu0 %v2318
        %2380 = vmatpush1.msra.mxu0 %v2317
        %2381 = vmatprep.subr.mxu0 0.0
        %2382 = vmatpush2.msra.mxu0 0.0
        %2383 = vmatprep.subr.mxu0 0.0
        %2384 = vmatpush2.msra.mxu0 0.0
        %2385 = vmatprep.subr.mxu0 0.0
        %2386 = vmatpush2.msra.mxu0 0.0
        %2387 = vmatprep.subr.mxu0 0.0
        %2388 = vmatpush2.msra.mxu0 0.0
        %2389 = vmatprep.subr.mxu0 0.0
        %2390 = vmatpush2.msra.mxu0 0.0
        %2391 = vmatprep.subr.mxu0 0.0
        %2392 = vmatpush2.msra.mxu0 0.0
        %2393 = vmatprep.subr.mxu0 0.0
        %2394 = vmatpush2.msra.mxu0 0.0
        %2395 = vmatprep.subr.mxu0 0.0
        %2396 = vmatpush2.msra.mxu0 0.0
        %2397 = vmatprep.subr.mxu0 0.0
        %2398 = vmatpush2.msra.mxu0 0.0
        %2399 = vmatprep.subr.mxu0 0.0
        %2400 = vmatpush2.msra.mxu0 0.0
        %2401 = vmatprep.subr.mxu0 0.0
        %2402 = vmatpush2.msra.mxu0 0.0
        %2403 = vmatprep.subr.mxu0 0.0
        %2404 = vmatpush2.msra.mxu0 0.0
        %2405 = vmatprep.subr.mxu0 0.0
        %2406 = vmatpush2.msra.mxu0 0.0
        %2407 = vmatprep.subr.mxu0 0.0
        %2408 = vmatpush2.msra.mxu0 0.0
        %2409 = vmatprep.subr.mxu0 0.0
        %2410 = vmatpush2.msra.mxu0 0.0
        %2411 = vmatprep.subr.mxu0 0.0
        %2412 = vmatpush2.msra.mxu0 0.0
        %2413 = vmatprep.mubr.f32.mxu0 0.0
        %2414 = vmatmul.mubr.f32.gmra.mxu0 %v2313
        %v2415 = vpop.f32.mrf.mxu0
        %v2416 = vadd.f32 %v877, %v2415
        %v2417 = vpop.f32.mrf.mxu0
        %v2418 = vadd.f32 %v877, %v2417
        %2419 = vmatprep.mubr.f32.mxu0 0.0
        %2420 = vmatmul.mubr.f32.gmra.mxu0 %v2314
        %v2421 = vpop.f32.mrf.mxu0
        %v2422 = vadd.f32 %v882, %v2421
        %v2423 = vpop.f32.mrf.mxu0
        %v2424 = vadd.f32 %v882, %v2423
        %2425 = vmatprep.mubr.f32.mxu0 0.0
        %2426 = vmatmul.mubr.f32.gmra.mxu0 %v2315
        %v2427 = vpop.f32.mrf.mxu0
        %v2428 = vadd.f32 %v887, %v2427
        %v2429 = vpop.f32.mrf.mxu0
        %v2430 = vadd.f32 %v887, %v2429
        %2431 = vmatprep.mubr.f32.mxu0 0.0
        %2432 = vmatmul.mubr.f32.gmra.mxu0 %v2316
        %v2433 = vpop.f32.mrf.mxu0
        %v2434 = vadd.f32 %v892, %v2433
        %v2435 = vpop.f32.mrf.mxu0
        %v2436 = vadd.f32 %v892, %v2435
        %2437 = vdwg.mxu0
        %2438 = vst [vmem:[%s264 + $0x30] sm:$0xff] %v2416
        %2439 = vst [vmem:[%s264 + $0x38] sm:$0xff] %v2418
        %2440 = vst [vmem:[%s264 + $0x70] sm:$0xff] %v2422
        %2441 = vst [vmem:[%s264 + $0x78] sm:$0xff] %v2424
        %2442 = vst [vmem:[%s264 + $0xb0] sm:$0xff] %v2428
        %2443 = vst [vmem:[%s264 + $0xb8] sm:$0xff] %v2430
        %2444 = vst [vmem:[%s264 + $0xf0] sm:$0xff] %v2434
        %2445 = vst [vmem:[%s264 + $0xf8] sm:$0xff] %v2436
        %p2446 = scmp.lt.s32.totalorder %s18, 1
        %s2447 = scalar_select %p2446, %s18, 1
        %s2448 = smul.addr %s2447, 32
        %s2449 = smul.addr %s2448, 8
        %s2450 = scalar_lea.vmem %s6, %s2449
        // Predicated region
        $region49: #{_lambda_.2} parent=43 // pred_check
          %p2451 = pneg %p167
        $region50: #{_lambda_.2} parent=43 // pred_check_branch
          %2453 = sbr.rel (%p2451) target = $region52
        $region51: #{_lambda_.2} parent=43 // pred_region
          _
        $region52: #{_lambda_.2} parent=43 // pred_fallthru
          _
      $region44: #{_lambda_.2} parent=5 // pred_fallthru
        _
      %p2454 = scmp.le.s32.totalorder 2, %s13
      // Predicated region
      $region53: #{_lambda_.2} parent=5 // pred_check
        %p2455 = pneg %p2454
      $region54: #{_lambda_.2} parent=5 // pred_check_branch
        %2457 = sbr.rel (%p2455) target = $region56
      $region55: #{_lambda_.2} parent=5 // pred_region
        %s2458 = ssub.s32 %s13, 2
        // Predicated region
        $region57: #{_lambda_.2} parent=55 // pred_check
          %p2459 = pneg %p173
        $region58: #{_lambda_.2} parent=55 // pred_check_branch
          %2461 = sbr.rel (%p2459) target = $region60
        $region59: #{_lambda_.2} parent=55 // pred_region
          %p2462 = scmp.lt.s32.totalorder %s19, 1
          %s2463 = scalar_select %p2462, %s19, 1
          %s2464 = smul.addr %s2463, 32
          %s2465 = smul.addr %s2464, 8
          %s2466 = scalar_lea.vmem %s6, %s2465
        $region60: #{_lambda_.2} parent=55 // pred_fallthru
          _
      $region56: #{_lambda_.2} parent=5 // pred_fallthru
        _
    $region6: #{_lambda_.2} parent=1 // loop_footer
      %s17 = sadd.s32 1, %s13
    $region7: #{_lambda_.2} parent=1 // loop_footer_branch
      %12 = sbr.rel target = $region3
    $region8: #{_lambda_.2} parent=1 // loop_exit
      _
    %2467 = vsyncpa [#allocation5], 1
    %s2468 = scalar_lea.sflag [#allocation5], 1
    %2469 = vsyncpa %s2468, 1

</llo_original>
